<compile_context>
chip_gen: v5e
topology: v5e:2x2
jax: 0.10.0
libtpu: 0.0.40
codegen_flags: <defaults>
</compile_context>

<pallas_src>
import functools

import jax
import jax.numpy as jnp
from jax.experimental import pallas as pl
from jax.experimental.pallas import tpu as pltpu

_EPS = 1e-5                # nn.InstanceNorm2d default eps (affine=False)
_MXU_DTYPE = jnp.bfloat16  # matmul input dtype (accumulation stays f32)


def _elu(y):
    # nn.ELU default alpha = 1.0
    return jnp.where(y > 0, y, jnp.exp(jnp.minimum(y, 0.0)) - 1.0)


def _instance_norm_elu(acc):
    # acc: (H*W, C) f32. Per-(image, channel) stats over spatial positions,
    # biased variance, eps=1e-5, affine=False -> matches PyTorch defaults.
    mean = jnp.mean(acc, axis=0, keepdims=True)
    var = jnp.mean(jnp.square(acc - mean), axis=0, keepdims=True)
    return _elu((acc - mean) * jax.lax.rsqrt(var + _EPS))


def _conv3x3_in_elu(a_hwc, w_ref, b_ref):
    """3x3 replicate-pad conv + InstanceNorm + ELU as ONE im2col matmul.

    a_hwc: (H, W, Cin) f32 activation resident in VMEM.
    w_ref: (9*Cin, Cout) bf16 (tap-major, channel-minor rows).
    b_ref: (1, Cout) f32.
    Returns (H*W, Cout) f32.
    """
    H, W, Cin = a_hwc.shape
    HW = H * W
    # Replicate padding: H is the outer dim, W the sublane dim; the channel
    # (lane) dim is untouched, so these are cheap outer/sublane concats.
    ap = jnp.concatenate([a_hwc[:1], a_hwc, a_hwc[-1:]], axis=0)      # (H+2, W, C)
    ap = jnp.concatenate([ap[:, :1], ap, ap[:, -1:]], axis=1)         # (H+2, W+2, C)
    cols = [ap[dy:dy + H, dx:dx + W, :].reshape(HW, Cin)
            for dy in range(3) for dx in range(3)]
    patches = jnp.concatenate(cols, axis=1).astype(_MXU_DTYPE)        # (HW, 9*Cin)
    acc = jnp.dot(patches, w_ref[...], preferred_element_type=jnp.float32)
    return _instance_norm_elu(acc + b_ref[...])


def _fused_head_kernel(p0_ref, w0_ref, b0_ref, w1_ref, b1_ref,
                       w2_ref, b2_ref, wot_ref, bot_ref, o_ref, *, H, W):
    # Layer 0: Conv(1->32) as a single (HW, 9) x (9, 32) matmul on the
    # pre-staged patch tensor (avoids a 1->128 lane-padded input block).
    acc0 = jnp.dot(p0_ref[0].astype(_MXU_DTYPE), w0_ref[...],
                   preferred_element_type=jnp.float32)
    a = _instance_norm_elu(acc0 + b0_ref[...])                        # (HW, 32)

    # Layers 1 & 2: Conv(32->64) and Conv(64->128); activations stay in VMEM.
    a = _conv3x3_in_elu(a.reshape(H, W, a.shape[-1]), w1_ref, b1_ref)  # (HW, 64)
    a = _conv3x3_in_elu(a.reshape(H, W, a.shape[-1]), w2_ref, b2_ref)  # (HW, 128)

    # Out conv 1x1, channel-major: (32,128) @ (128,HW) -> (32,HW).
    # Tile-aligned f32 transpose, then bf16 cast for the MXU.
    a_t = a.T.astype(_MXU_DTYPE)                                      # (128, HW)
    y = jnp.dot(wot_ref[...], a_t,
                preferred_element_type=jnp.float32) + bot_ref[...]    # (32, HW)
    o_ref[0] = y                                                       # lane-dense store


def random_input_head(x_nchw, params):
    """Forward pass of RandomInputHead. Input/output are NCHW like PyTorch."""
    x = x_nchw.astype(jnp.float32)
    B, cin, H, W = x.shape
    assert cin == 1, "RandomInputHead expects a single input channel"
    HW = H * W

    # Layer-0 im2col staged in plain JAX (1 channel, ~9 KiB/image): keeps the
    # kernel's input block dense and turns layer 0 into one K=9 matmul.
    xs = x[:, 0]                                                      # (B, H, W)
    xp = jnp.pad(xs, ((0, 0), (1, 1), (1, 1)), mode="edge")           # replicate
    p0 = jnp.stack([xp[:, dy:dy + H, dx:dx + W].reshape(B, HW)
                    for dy in range(3) for dx in range(3)], axis=-1)  # (B, HW, 9)

    def _w3(w):  # (3,3,Cin,Cout) -> (9*Cin, Cout), tap-major rows
        return w.reshape(-1, w.shape[-1]).astype(_MXU_DTYPE)

    w0, w1, w2 = _w3(params["w0"]), _w3(params["w1"]), _w3(params["w2"])
    b0 = params["b0"].reshape(1, -1)
    b1 = params["b1"].reshape(1, -1)
    b2 = params["b2"].reshape(1, -1)
    wot = params["w_out"].T.astype(_MXU_DTYPE)                        # (32, 128)
    bot = params["b_out"].reshape(-1, 1)                              # (32, 1)
    c_out = wot.shape[0]

    kernel = functools.partial(_fused_head_kernel, H=H, W=W)
    out = pl.pallas_call(
        kernel,
        out_shape=jax.ShapeDtypeStruct((B, c_out, HW), jnp.float32),
        grid_spec=pltpu.PrefetchScalarGridSpec(
            num_scalar_prefetch=0,
            grid=(B,),
            in_specs=[
                pl.BlockSpec((1, HW, 9), lambda b: (b, 0, 0)),
                pl.BlockSpec(w0.shape, lambda b: (0, 0)),
                pl.BlockSpec(b0.shape, lambda b: (0, 0)),
                pl.BlockSpec(w1.shape, lambda b: (0, 0)),
                pl.BlockSpec(b1.shape, lambda b: (0, 0)),
                pl.BlockSpec(w2.shape, lambda b: (0, 0)),
                pl.BlockSpec(b2.shape, lambda b: (0, 0)),
                pl.BlockSpec(wot.shape, lambda b: (0, 0)),
                pl.BlockSpec(bot.shape, lambda b: (0, 0)),
            ],
            out_specs=pl.BlockSpec((1, c_out, HW), lambda b: (b, 0, 0)),
        ),
        compiler_params=pltpu.CompilerParams(
            dimension_semantics=("parallel",)),
    )(p0, w0, b0, w1, b1, w2, b2, wot, bot)
    return out.reshape(B, c_out, H, W)                                # NCHW, no transpose


def init_params(key):
    """Deterministic synthetic init matching the module's shapes.

    Conv2d(1,32,3), Conv2d(32,64,3), Conv2d(64,128,3), Conv2d(128,32,1).
    Weights stored as (kh, kw, Cin, Cout) / (Cin, Cout); master copies in f32.
    """
    dims = [(1, 32), (32, 64), (64, 128)]
    params = {}
    keys = jax.random.split(key, 8)
    for i, (cin, cout) in enumerate(dims):
        std = 1.0 / jnp.sqrt(jnp.float32(cin * 9))
        params[f"w{i}"] = std * jax.random.normal(
            keys[2 * i], (3, 3, cin, cout), jnp.float32)
        params[f"b{i}"] = std * jax.random.normal(
            keys[2 * i + 1], (cout,), jnp.float32)
    std = 1.0 / jnp.sqrt(jnp.float32(128))
    params["w_out"] = std * jax.random.normal(keys[6], (128, 32), jnp.float32)
    params["b_out"] = std * jax.random.normal(keys[7], (32,), jnp.float32)
    return params


def _reference_forward(x_nchw, params):
    """Pure-JAX f32 reference (lax.conv) with PyTorch semantics."""
    a = jnp.transpose(x_nchw.astype(jnp.float32), (0, 2, 3, 1))       # NHWC
    for i in range(3):
        ap = jnp.pad(a, ((0, 0), (1, 1), (1, 1), (0, 0)), mode="edge")
        acc = jax.lax.conv_general_dilated(
            ap, params[f"w{i}"], window_strides=(1, 1), padding="VALID",
            dimension_numbers=("NHWC", "HWIO", "NHWC"),
            precision=jax.lax.Precision.HIGHEST) + params[f"b{i}"]
        mean = jnp.mean(acc, axis=(1, 2), keepdims=True)
        var = jnp.mean(jnp.square(acc - mean), axis=(1, 2), keepdims=True)
        y = (acc - mean) * jax.lax.rsqrt(var + _EPS)
        a = jnp.where(y > 0, y, jnp.exp(jnp.minimum(y, 0.0)) - 1.0)
    y = jnp.einsum("bhwc,co->bhwo", a, params["w_out"],
                   precision=jax.lax.Precision.HIGHEST) + params["b_out"]
    return jnp.transpose(y, (0, 3, 1, 2))


if __name__ == "__main__":
    key = jax.random.PRNGKey(0)
    k_x, k_p = jax.random.split(key)
    # Module's first conv is Conv2d(1, 32, ...): NCHW input with 1 channel.
    x = jax.random.normal(k_x, (2, 1, 16, 16), jnp.float32)
    params = init_params(k_p)

    fwd = jax.jit(random_input_head)
    out = jax.block_until_ready(fwd(x, params))
    assert out.shape == (2, 32, 16, 16), out.shape

    # Sanity-check against a pure-JAX f32 reference (loose tolerance: the
    # kernel feeds bf16 to the MXU with f32 accumulation).
    ref = jax.block_until_ready(_reference_forward(x, params))
    err = float(jnp.max(jnp.abs(out - ref)))
    scale = float(jnp.max(jnp.abs(ref))) + 1e-6
    assert err <= 0.05 * scale, (err, scale)

    print("KERNEL_OK")
</pallas_src>

<mosaic_0001>
module attributes {stable_mosaic.version = 11 : i64} {
  func.func @_fused_head_kernel(%arg0: i32, %arg1: memref<1x256x9xf32, #tpu.memory_space<vmem>>, %arg2: memref<9x32xbf16, #tpu.memory_space<vmem>>, %arg3: memref<1x32xf32, #tpu.memory_space<vmem>>, %arg4: memref<288x64xbf16, #tpu.memory_space<vmem>>, %arg5: memref<1x64xf32, #tpu.memory_space<vmem>>, %arg6: memref<576x128xbf16, #tpu.memory_space<vmem>>, %arg7: memref<1x128xf32, #tpu.memory_space<vmem>>, %arg8: memref<32x128xbf16, #tpu.memory_space<vmem>>, %arg9: memref<32x1xf32, #tpu.memory_space<vmem>>, %arg10: memref<1x32x256xf32, #tpu.memory_space<vmem>>) attributes {dimension_semantics = [#tpu.dimension_semantics<parallel>], iteration_bounds = array<i64: 2>, scalar_prefetch = 0 : i64, scratch_operands = 0 : i64, tpu.core_type = #tpu.core_type<tc>, window_params = [{transform_indices = @transform_0, window_bounds = array<i64: 1, 256, 9>}, {pipeline_mode = #tpu.pipeline_mode<synchronous>, transform_indices = @transform_1, window_bounds = array<i64: 9, 32>}, {pipeline_mode = #tpu.pipeline_mode<synchronous>, transform_indices = @transform_2, window_bounds = array<i64: 1, 32>}, {pipeline_mode = #tpu.pipeline_mode<synchronous>, transform_indices = @transform_3, window_bounds = array<i64: 288, 64>}, {pipeline_mode = #tpu.pipeline_mode<synchronous>, transform_indices = @transform_4, window_bounds = array<i64: 1, 64>}, {pipeline_mode = #tpu.pipeline_mode<synchronous>, transform_indices = @transform_5, window_bounds = array<i64: 576, 128>}, {pipeline_mode = #tpu.pipeline_mode<synchronous>, transform_indices = @transform_6, window_bounds = array<i64: 1, 128>}, {pipeline_mode = #tpu.pipeline_mode<synchronous>, transform_indices = @transform_7, window_bounds = array<i64: 32, 128>}, {pipeline_mode = #tpu.pipeline_mode<synchronous>, transform_indices = @transform_8, window_bounds = array<i64: 32, 1>}, {transform_indices = @transform_9, window_bounds = array<i64: 1, 32, 256>}]} {
    %c0 = arith.constant 0 : index
    %c0_0 = arith.constant 0 : index
    %c0_1 = arith.constant 0 : index
    %0 = vector.load %arg1[%c0, %c0_0, %c0_1] : memref<1x256x9xf32, #tpu.memory_space<vmem>>, vector<1x256x9xf32>
    %1 = vector.shape_cast %0 : vector<1x256x9xf32> to vector<256x9xf32>
    %2 = arith.truncf %1 : vector<256x9xf32> to vector<256x9xbf16>
    %c0_2 = arith.constant 0 : index
    %c0_3 = arith.constant 0 : index
    %3 = vector.load %arg2[%c0_2, %c0_3] : memref<9x32xbf16, #tpu.memory_space<vmem>>, vector<9x32xbf16>
    %cst = arith.constant dense<0.000000e+00> : vector<256x32xf32>
    %4 = tpu.matmul %2, %3, %cst {dimension_numbers = #tpu.dot_dimension_numbers<[1], [0], [0], [1], [0, 0, 1, 1], [], []>} : vector<256x9xbf16>, vector<9x32xbf16>, vector<256x32xf32> -> vector<256x32xf32>
    %c0_4 = arith.constant 0 : index
    %c0_5 = arith.constant 0 : index
    %5 = vector.load %arg3[%c0_4, %c0_5] : memref<1x32xf32, #tpu.memory_space<vmem>>, vector<1x32xf32>
    %6 = vector.broadcast %5 : vector<1x32xf32> to vector<256x32xf32>
    %7 = arith.addf %4, %6 : vector<256x32xf32>
    %cst_6 = arith.constant dense<0.000000e+00> : vector<32xf32>
    %8 = vector.multi_reduction <add>, %7, %cst_6 [0] : vector<256x32xf32> to vector<32xf32>
    %9 = vector.shape_cast %8 : vector<32xf32> to vector<1x32xf32>
    %cst_7 = arith.constant 2.560000e+02 : f32
    %10 = vector.broadcast %cst_7 : f32 to vector<1x32xf32>
    %11 = arith.divf %9, %10 : vector<1x32xf32>
    %12 = vector.broadcast %11 : vector<1x32xf32> to vector<256x32xf32>
    %13 = arith.subf %7, %12 : vector<256x32xf32>
    %14 = arith.mulf %13, %13 : vector<256x32xf32>
    %cst_8 = arith.constant dense<0.000000e+00> : vector<32xf32>
    %15 = vector.multi_reduction <add>, %14, %cst_8 [0] : vector<256x32xf32> to vector<32xf32>
    %16 = vector.shape_cast %15 : vector<32xf32> to vector<1x32xf32>
    %cst_9 = arith.constant 2.560000e+02 : f32
    %17 = vector.broadcast %cst_9 : f32 to vector<1x32xf32>
    %18 = arith.divf %16, %17 : vector<1x32xf32>
    %19 = vector.broadcast %11 : vector<1x32xf32> to vector<256x32xf32>
    %20 = arith.subf %7, %19 : vector<256x32xf32>
    %cst_10 = arith.constant 9.99999974E-6 : f32
    %21 = vector.broadcast %cst_10 : f32 to vector<1x32xf32>
    %22 = arith.addf %18, %21 : vector<1x32xf32>
    %23 = math.rsqrt %22 : vector<1x32xf32>
    %24 = vector.broadcast %23 : vector<1x32xf32> to vector<256x32xf32>
    %25 = arith.mulf %20, %24 : vector<256x32xf32>
    %cst_11 = arith.constant 0.000000e+00 : f32
    %26 = vector.broadcast %cst_11 : f32 to vector<256x32xf32>
    %27 = arith.cmpf ogt, %25, %26 : vector<256x32xf32>
    %cst_12 = arith.constant 0.000000e+00 : f32
    %28 = vector.broadcast %cst_12 : f32 to vector<256x32xf32>
    %29 = arith.minimumf %25, %28 : vector<256x32xf32>
    %30 = math.exp %29 : vector<256x32xf32>
    %cst_13 = arith.constant 1.000000e+00 : f32
    %31 = vector.broadcast %cst_13 : f32 to vector<256x32xf32>
    %32 = arith.subf %30, %31 : vector<256x32xf32>
    %33 = arith.select %27, %25, %32 : vector<256x32xi1>, vector<256x32xf32>
    %34 = vector.shape_cast %33 : vector<256x32xf32> to vector<16x16x32xf32>
    %35 = vector.extract_strided_slice %34 {offsets = [0, 0, 0], sizes = [1, 16, 32], strides = [1, 1, 1]} : vector<16x16x32xf32> to vector<1x16x32xf32>
    %36 = vector.extract_strided_slice %34 {offsets = [15, 0, 0], sizes = [1, 16, 32], strides = [1, 1, 1]} : vector<16x16x32xf32> to vector<1x16x32xf32>
    %37 = tpu.concatenate %35, %34, %36 in 0 : vector<1x16x32xf32>, vector<16x16x32xf32>, vector<1x16x32xf32> -> vector<18x16x32xf32>
    %38 = vector.extract_strided_slice %37 {offsets = [0, 0, 0], sizes = [18, 1, 32], strides = [1, 1, 1]} : vector<18x16x32xf32> to vector<18x1x32xf32>
    %39 = vector.extract_strided_slice %37 {offsets = [0, 15, 0], sizes = [18, 1, 32], strides = [1, 1, 1]} : vector<18x16x32xf32> to vector<18x1x32xf32>
    %40 = tpu.concatenate %38, %37, %39 in 1 : vector<18x1x32xf32>, vector<18x16x32xf32>, vector<18x1x32xf32> -> vector<18x18x32xf32>
    %41 = vector.extract_strided_slice %40 {offsets = [0, 0, 0], sizes = [16, 16, 32], strides = [1, 1, 1]} : vector<18x18x32xf32> to vector<16x16x32xf32>
    %42 = vector.shape_cast %41 : vector<16x16x32xf32> to vector<256x32xf32>
    %43 = vector.extract_strided_slice %40 {offsets = [0, 1, 0], sizes = [16, 16, 32], strides = [1, 1, 1]} : vector<18x18x32xf32> to vector<16x16x32xf32>
    %44 = vector.shape_cast %43 : vector<16x16x32xf32> to vector<256x32xf32>
    %45 = vector.extract_strided_slice %40 {offsets = [0, 2, 0], sizes = [16, 16, 32], strides = [1, 1, 1]} : vector<18x18x32xf32> to vector<16x16x32xf32>
    %46 = vector.shape_cast %45 : vector<16x16x32xf32> to vector<256x32xf32>
    %47 = vector.extract_strided_slice %40 {offsets = [1, 0, 0], sizes = [16, 16, 32], strides = [1, 1, 1]} : vector<18x18x32xf32> to vector<16x16x32xf32>
    %48 = vector.shape_cast %47 : vector<16x16x32xf32> to vector<256x32xf32>
    %49 = vector.extract_strided_slice %40 {offsets = [1, 1, 0], sizes = [16, 16, 32], strides = [1, 1, 1]} : vector<18x18x32xf32> to vector<16x16x32xf32>
    %50 = vector.shape_cast %49 : vector<16x16x32xf32> to vector<256x32xf32>
    %51 = vector.extract_strided_slice %40 {offsets = [1, 2, 0], sizes = [16, 16, 32], strides = [1, 1, 1]} : vector<18x18x32xf32> to vector<16x16x32xf32>
    %52 = vector.shape_cast %51 : vector<16x16x32xf32> to vector<256x32xf32>
    %53 = vector.extract_strided_slice %40 {offsets = [2, 0, 0], sizes = [16, 16, 32], strides = [1, 1, 1]} : vector<18x18x32xf32> to vector<16x16x32xf32>
    %54 = vector.shape_cast %53 : vector<16x16x32xf32> to vector<256x32xf32>
    %55 = vector.extract_strided_slice %40 {offsets = [2, 1, 0], sizes = [16, 16, 32], strides = [1, 1, 1]} : vector<18x18x32xf32> to vector<16x16x32xf32>
    %56 = vector.shape_cast %55 : vector<16x16x32xf32> to vector<256x32xf32>
    %57 = vector.extract_strided_slice %40 {offsets = [2, 2, 0], sizes = [16, 16, 32], strides = [1, 1, 1]} : vector<18x18x32xf32> to vector<16x16x32xf32>
    %58 = vector.shape_cast %57 : vector<16x16x32xf32> to vector<256x32xf32>
    %59 = tpu.concatenate %42, %44, %46, %48, %50, %52, %54, %56, %58 in 1 : vector<256x32xf32>, vector<256x32xf32>, vector<256x32xf32>, vector<256x32xf32>, vector<256x32xf32>, vector<256x32xf32>, vector<256x32xf32>, vector<256x32xf32>, vector<256x32xf32> -> vector<256x288xf32>
    %60 = arith.truncf %59 : vector<256x288xf32> to vector<256x288xbf16>
    %c0_14 = arith.constant 0 : index
    %c0_15 = arith.constant 0 : index
    %61 = vector.load %arg4[%c0_14, %c0_15] : memref<288x64xbf16, #tpu.memory_space<vmem>>, vector<288x64xbf16>
    %cst_16 = arith.constant dense<0.000000e+00> : vector<256x64xf32>
    %62 = tpu.matmul %60, %61, %cst_16 {dimension_numbers = #tpu.dot_dimension_numbers<[1], [0], [0], [1], [0, 0, 1, 1], [], []>} : vector<256x288xbf16>, vector<288x64xbf16>, vector<256x64xf32> -> vector<256x64xf32>
    %c0_17 = arith.constant 0 : index
    %c0_18 = arith.constant 0 : index
    %63 = vector.load %arg5[%c0_17, %c0_18] : memref<1x64xf32, #tpu.memory_space<vmem>>, vector<1x64xf32>
    %64 = vector.broadcast %63 : vector<1x64xf32> to vector<256x64xf32>
    %65 = arith.addf %62, %64 : vector<256x64xf32>
    %cst_19 = arith.constant dense<0.000000e+00> : vector<64xf32>
    %66 = vector.multi_reduction <add>, %65, %cst_19 [0] : vector<256x64xf32> to vector<64xf32>
    %67 = vector.shape_cast %66 : vector<64xf32> to vector<1x64xf32>
    %cst_20 = arith.constant 2.560000e+02 : f32
    %68 = vector.broadcast %cst_20 : f32 to vector<1x64xf32>
    %69 = arith.divf %67, %68 : vector<1x64xf32>
    %70 = vector.broadcast %69 : vector<1x64xf32> to vector<256x64xf32>
    %71 = arith.subf %65, %70 : vector<256x64xf32>
    %72 = arith.mulf %71, %71 : vector<256x64xf32>
    %cst_21 = arith.constant dense<0.000000e+00> : vector<64xf32>
    %73 = vector.multi_reduction <add>, %72, %cst_21 [0] : vector<256x64xf32> to vector<64xf32>
    %74 = vector.shape_cast %73 : vector<64xf32> to vector<1x64xf32>
    %cst_22 = arith.constant 2.560000e+02 : f32
    %75 = vector.broadcast %cst_22 : f32 to vector<1x64xf32>
    %76 = arith.divf %74, %75 : vector<1x64xf32>
    %77 = vector.broadcast %69 : vector<1x64xf32> to vector<256x64xf32>
    %78 = arith.subf %65, %77 : vector<256x64xf32>
    %cst_23 = arith.constant 9.99999974E-6 : f32
    %79 = vector.broadcast %cst_23 : f32 to vector<1x64xf32>
    %80 = arith.addf %76, %79 : vector<1x64xf32>
    %81 = math.rsqrt %80 : vector<1x64xf32>
    %82 = vector.broadcast %81 : vector<1x64xf32> to vector<256x64xf32>
    %83 = arith.mulf %78, %82 : vector<256x64xf32>
    %cst_24 = arith.constant 0.000000e+00 : f32
    %84 = vector.broadcast %cst_24 : f32 to vector<256x64xf32>
    %85 = arith.cmpf ogt, %83, %84 : vector<256x64xf32>
    %cst_25 = arith.constant 0.000000e+00 : f32
    %86 = vector.broadcast %cst_25 : f32 to vector<256x64xf32>
    %87 = arith.minimumf %83, %86 : vector<256x64xf32>
    %88 = math.exp %87 : vector<256x64xf32>
    %cst_26 = arith.constant 1.000000e+00 : f32
    %89 = vector.broadcast %cst_26 : f32 to vector<256x64xf32>
    %90 = arith.subf %88, %89 : vector<256x64xf32>
    %91 = arith.select %85, %83, %90 : vector<256x64xi1>, vector<256x64xf32>
    %92 = vector.shape_cast %91 : vector<256x64xf32> to vector<16x16x64xf32>
    %93 = vector.extract_strided_slice %92 {offsets = [0, 0, 0], sizes = [1, 16, 64], strides = [1, 1, 1]} : vector<16x16x64xf32> to vector<1x16x64xf32>
    %94 = vector.extract_strided_slice %92 {offsets = [15, 0, 0], sizes = [1, 16, 64], strides = [1, 1, 1]} : vector<16x16x64xf32> to vector<1x16x64xf32>
    %95 = tpu.concatenate %93, %92, %94 in 0 : vector<1x16x64xf32>, vector<16x16x64xf32>, vector<1x16x64xf32> -> vector<18x16x64xf32>
    %96 = vector.extract_strided_slice %95 {offsets = [0, 0, 0], sizes = [18, 1, 64], strides = [1, 1, 1]} : vector<18x16x64xf32> to vector<18x1x64xf32>
    %97 = vector.extract_strided_slice %95 {offsets = [0, 15, 0], sizes = [18, 1, 64], strides = [1, 1, 1]} : vector<18x16x64xf32> to vector<18x1x64xf32>
    %98 = tpu.concatenate %96, %95, %97 in 1 : vector<18x1x64xf32>, vector<18x16x64xf32>, vector<18x1x64xf32> -> vector<18x18x64xf32>
    %99 = vector.extract_strided_slice %98 {offsets = [0, 0, 0], sizes = [16, 16, 64], strides = [1, 1, 1]} : vector<18x18x64xf32> to vector<16x16x64xf32>
    %100 = vector.shape_cast %99 : vector<16x16x64xf32> to vector<256x64xf32>
    %101 = vector.extract_strided_slice %98 {offsets = [0, 1, 0], sizes = [16, 16, 64], strides = [1, 1, 1]} : vector<18x18x64xf32> to vector<16x16x64xf32>
    %102 = vector.shape_cast %101 : vector<16x16x64xf32> to vector<256x64xf32>
    %103 = vector.extract_strided_slice %98 {offsets = [0, 2, 0], sizes = [16, 16, 64], strides = [1, 1, 1]} : vector<18x18x64xf32> to vector<16x16x64xf32>
    %104 = vector.shape_cast %103 : vector<16x16x64xf32> to vector<256x64xf32>
    %105 = vector.extract_strided_slice %98 {offsets = [1, 0, 0], sizes = [16, 16, 64], strides = [1, 1, 1]} : vector<18x18x64xf32> to vector<16x16x64xf32>
    %106 = vector.shape_cast %105 : vector<16x16x64xf32> to vector<256x64xf32>
    %107 = vector.extract_strided_slice %98 {offsets = [1, 1, 0], sizes = [16, 16, 64], strides = [1, 1, 1]} : vector<18x18x64xf32> to vector<16x16x64xf32>
    %108 = vector.shape_cast %107 : vector<16x16x64xf32> to vector<256x64xf32>
    %109 = vector.extract_strided_slice %98 {offsets = [1, 2, 0], sizes = [16, 16, 64], strides = [1, 1, 1]} : vector<18x18x64xf32> to vector<16x16x64xf32>
    %110 = vector.shape_cast %109 : vector<16x16x64xf32> to vector<256x64xf32>
    %111 = vector.extract_strided_slice %98 {offsets = [2, 0, 0], sizes = [16, 16, 64], strides = [1, 1, 1]} : vector<18x18x64xf32> to vector<16x16x64xf32>
    %112 = vector.shape_cast %111 : vector<16x16x64xf32> to vector<256x64xf32>
    %113 = vector.extract_strided_slice %98 {offsets = [2, 1, 0], sizes = [16, 16, 64], strides = [1, 1, 1]} : vector<18x18x64xf32> to vector<16x16x64xf32>
    %114 = vector.shape_cast %113 : vector<16x16x64xf32> to vector<256x64xf32>
    %115 = vector.extract_strided_slice %98 {offsets = [2, 2, 0], sizes = [16, 16, 64], strides = [1, 1, 1]} : vector<18x18x64xf32> to vector<16x16x64xf32>
    %116 = vector.shape_cast %115 : vector<16x16x64xf32> to vector<256x64xf32>
    %117 = tpu.concatenate %100, %102, %104, %106, %108, %110, %112, %114, %116 in 1 : vector<256x64xf32>, vector<256x64xf32>, vector<256x64xf32>, vector<256x64xf32>, vector<256x64xf32>, vector<256x64xf32>, vector<256x64xf32>, vector<256x64xf32>, vector<256x64xf32> -> vector<256x576xf32>
    %118 = arith.truncf %117 : vector<256x576xf32> to vector<256x576xbf16>
    %c0_27 = arith.constant 0 : index
    %c0_28 = arith.constant 0 : index
    %119 = vector.load %arg6[%c0_27, %c0_28] : memref<576x128xbf16, #tpu.memory_space<vmem>>, vector<576x128xbf16>
    %cst_29 = arith.constant dense<0.000000e+00> : vector<256x128xf32>
    %120 = tpu.matmul %118, %119, %cst_29 {dimension_numbers = #tpu.dot_dimension_numbers<[1], [0], [0], [1], [0, 0, 1, 1], [], []>} : vector<256x576xbf16>, vector<576x128xbf16>, vector<256x128xf32> -> vector<256x128xf32>
    %c0_30 = arith.constant 0 : index
    %c0_31 = arith.constant 0 : index
    %121 = vector.load %arg7[%c0_30, %c0_31] : memref<1x128xf32, #tpu.memory_space<vmem>>, vector<1x128xf32>
    %122 = vector.broadcast %121 : vector<1x128xf32> to vector<256x128xf32>
    %123 = arith.addf %120, %122 : vector<256x128xf32>
    %cst_32 = arith.constant dense<0.000000e+00> : vector<128xf32>
    %124 = vector.multi_reduction <add>, %123, %cst_32 [0] : vector<256x128xf32> to vector<128xf32>
    %125 = vector.shape_cast %124 : vector<128xf32> to vector<1x128xf32>
    %cst_33 = arith.constant 2.560000e+02 : f32
    %126 = vector.broadcast %cst_33 : f32 to vector<1x128xf32>
    %127 = arith.divf %125, %126 : vector<1x128xf32>
    %128 = vector.broadcast %127 : vector<1x128xf32> to vector<256x128xf32>
    %129 = arith.subf %123, %128 : vector<256x128xf32>
    %130 = arith.mulf %129, %129 : vector<256x128xf32>
    %cst_34 = arith.constant dense<0.000000e+00> : vector<128xf32>
    %131 = vector.multi_reduction <add>, %130, %cst_34 [0] : vector<256x128xf32> to vector<128xf32>
    %132 = vector.shape_cast %131 : vector<128xf32> to vector<1x128xf32>
    %cst_35 = arith.constant 2.560000e+02 : f32
    %133 = vector.broadcast %cst_35 : f32 to vector<1x128xf32>
    %134 = arith.divf %132, %133 : vector<1x128xf32>
    %135 = vector.broadcast %127 : vector<1x128xf32> to vector<256x128xf32>
    %136 = arith.subf %123, %135 : vector<256x128xf32>
    %cst_36 = arith.constant 9.99999974E-6 : f32
    %137 = vector.broadcast %cst_36 : f32 to vector<1x128xf32>
    %138 = arith.addf %134, %137 : vector<1x128xf32>
    %139 = math.rsqrt %138 : vector<1x128xf32>
    %140 = vector.broadcast %139 : vector<1x128xf32> to vector<256x128xf32>
    %141 = arith.mulf %136, %140 : vector<256x128xf32>
    %cst_37 = arith.constant 0.000000e+00 : f32
    %142 = vector.broadcast %cst_37 : f32 to vector<256x128xf32>
    %143 = arith.cmpf ogt, %141, %142 : vector<256x128xf32>
    %cst_38 = arith.constant 0.000000e+00 : f32
    %144 = vector.broadcast %cst_38 : f32 to vector<256x128xf32>
    %145 = arith.minimumf %141, %144 : vector<256x128xf32>
    %146 = math.exp %145 : vector<256x128xf32>
    %cst_39 = arith.constant 1.000000e+00 : f32
    %147 = vector.broadcast %cst_39 : f32 to vector<256x128xf32>
    %148 = arith.subf %146, %147 : vector<256x128xf32>
    %149 = arith.select %143, %141, %148 : vector<256x128xi1>, vector<256x128xf32>
    %150 = tpu.transpose %149, [1, 0] : vector<256x128xf32> -> vector<128x256xf32>
    %151 = arith.truncf %150 : vector<128x256xf32> to vector<128x256xbf16>
    %c0_40 = arith.constant 0 : index
    %c0_41 = arith.constant 0 : index
    %152 = vector.load %arg8[%c0_40, %c0_41] : memref<32x128xbf16, #tpu.memory_space<vmem>>, vector<32x128xbf16>
    %cst_42 = arith.constant dense<0.000000e+00> : vector<32x256xf32>
    %153 = tpu.matmul %152, %151, %cst_42 {dimension_numbers = #tpu.dot_dimension_numbers<[1], [0], [0], [1], [0, 0, 1, 1], [], []>} : vector<32x128xbf16>, vector<128x256xbf16>, vector<32x256xf32> -> vector<32x256xf32>
    %c0_43 = arith.constant 0 : index
    %c0_44 = arith.constant 0 : index
    %154 = vector.load %arg9[%c0_43, %c0_44] : memref<32x1xf32, #tpu.memory_space<vmem>>, vector<32x1xf32>
    %155 = vector.broadcast %154 : vector<32x1xf32> to vector<32x256xf32>
    %156 = arith.addf %153, %155 : vector<32x256xf32>
    %c0_45 = arith.constant 0 : index
    %c0_46 = arith.constant 0 : index
    %c0_47 = arith.constant 0 : index
    %157 = vector.load %arg10[%c0_45, %c0_46, %c0_47] : memref<1x32x256xf32, #tpu.memory_space<vmem>>, vector<1x32x256xf32>
    %158 = vector.shape_cast %157 : vector<1x32x256xf32> to vector<32x256xf32>
    %159 = vector.shape_cast %156 : vector<32x256xf32> to vector<1x32x256xf32>
    tpu.vector_store %arg10[%c0_45, %c0_46, %c0_47], %159 {strides = array<i32>} : memref<1x32x256xf32, #tpu.memory_space<vmem>>, vector<1x32x256xf32>,
    return
  }
  func.func @transform_0(%arg0: i32) -> (i32, i32, i32) {
    %c0_i32 = arith.constant 0 : i32
    %c0_i32_0 = arith.constant 0 : i32
    %c0_i32_1 = arith.constant 0 : i32
    return %arg0, %c0_i32, %c0_i32_0 : i32, i32, i32
  }
  func.func @transform_1(%arg0: i32) -> (i32, i32) {
    %c0_i32 = arith.constant 0 : i32
    %c0_i32_0 = arith.constant 0 : i32
    %c0_i32_1 = arith.constant 0 : i32
    return %c0_i32, %c0_i32_0 : i32, i32
  }
  func.func @transform_2(%arg0: i32) -> (i32, i32) {
    %c0_i32 = arith.constant 0 : i32
    %c0_i32_0 = arith.constant 0 : i32
    %c0_i32_1 = arith.constant 0 : i32
    return %c0_i32, %c0_i32_0 : i32, i32
  }
  func.func @transform_3(%arg0: i32) -> (i32, i32) {
    %c0_i32 = arith.constant 0 : i32
    %c0_i32_0 = arith.constant 0 : i32
    %c0_i32_1 = arith.constant 0 : i32
    return %c0_i32, %c0_i32_0 : i32, i32
  }
  func.func @transform_4(%arg0: i32) -> (i32, i32) {
    %c0_i32 = arith.constant 0 : i32
    %c0_i32_0 = arith.constant 0 : i32
    %c0_i32_1 = arith.constant 0 : i32
    return %c0_i32, %c0_i32_0 : i32, i32
  }
  func.func @transform_5(%arg0: i32) -> (i32, i32) {
    %c0_i32 = arith.constant 0 : i32
    %c0_i32_0 = arith.constant 0 : i32
    %c0_i32_1 = arith.constant 0 : i32
    return %c0_i32, %c0_i32_0 : i32, i32
  }
  func.func @transform_6(%arg0: i32) -> (i32, i32) {
    %c0_i32 = arith.constant 0 : i32
    %c0_i32_0 = arith.constant 0 : i32
    %c0_i32_1 = arith.constant 0 : i32
    return %c0_i32, %c0_i32_0 : i32, i32
  }
  func.func @transform_7(%arg0: i32) -> (i32, i32) {
    %c0_i32 = arith.constant 0 : i32
    %c0_i32_0 = arith.constant 0 : i32
    %c0_i32_1 = arith.constant 0 : i32
    return %c0_i32, %c0_i32_0 : i32, i32
  }
  func.func @transform_8(%arg0: i32) -> (i32, i32) {
    %c0_i32 = arith.constant 0 : i32
    %c0_i32_0 = arith.constant 0 : i32
    %c0_i32_1 = arith.constant 0 : i32
    return %c0_i32, %c0_i32_0 : i32, i32
  }
  func.func @transform_9(%arg0: i32) -> (i32, i32, i32) {
    %c0_i32 = arith.constant 0 : i32
    %c0_i32_0 = arith.constant 0 : i32
    %c0_i32_1 = arith.constant 0 : i32
    return %arg0, %c0_i32, %c0_i32_0 : i32, i32, i32
  }
}

</mosaic_0001>

<llo_original>
// kernel: random_input_head.1
$region0: #{random_input_head.1}
  #allocation0 [shape = 'u32[]', space=smem, size = 0x4, offset = 0x4, fixed_abs, tag = 'smem constant byte address 0x4 - core index']
  #allocation1 [shape = 'u32[72,128]{1,0:T(1,128)}', space=vmem, size = 0x9000, scoped, tag = 'internal scratch']
  %s0 = inlined_call_operand.vmem [shape: f32[2,256,9], index: 0, kind: input, shape index: {}]
  %s1 = inlined_call_operand.vmem [shape: bf16[9,32], index: 1, kind: input, shape index: {}]
  %s2 = inlined_call_operand.vmem [shape: f32[1,32], index: 2, kind: input, shape index: {}]
  %s3 = inlined_call_operand.vmem [shape: bf16[288,64], index: 3, kind: input, shape index: {}]
  %s4 = inlined_call_operand.vmem [shape: f32[1,64], index: 4, kind: input, shape index: {}]
  %s5 = inlined_call_operand.vmem [shape: bf16[576,128], index: 5, kind: input, shape index: {}]
  %s6 = inlined_call_operand.vmem [shape: f32[1,128], index: 6, kind: input, shape index: {}]
  %s7 = inlined_call_operand.vmem [shape: bf16[32,128], index: 7, kind: input, shape index: {}]
  %s8 = inlined_call_operand.vmem [shape: f32[32,1], index: 8, kind: input, shape index: {}]
  %s9 = inlined_call_operand.vmem [shape: f32[2,32,256], index: 9, kind: output, shape index: {}]
  %s10 = sld [smem:[#allocation0]]
  $region69: #{random_input_head.1} parent=0
    _
  %s12 = ssub.s32 1, %s10
  %s13 = scalar_select 0, %s12, %s10
  loop: start=0, step=1, limit=4
  $region2: #{random_input_head.1} parent=0 // loop_pre_header
    _
  $region3: #{random_input_head.1} parent=0 // loop_header
    %s15 = sphi 0, %s19
    %p16 = scmp.ge.s32.totalorder %s15, 4
    %s25 = sphi 0, %s27
    %s28 = sphi 0, %s25
    %s29 = sphi 0, %s28
    %s45 = sphi 0, %s29
    %s49 = sphi 0, %s49
    %s51 = sphi 0, %s49
    %s52 = sphi 0, %s51
    %s66 = sphi 0, %s52
    %s70 = sphi 0, %s70
    %s72 = sphi 0, %s70
    %s73 = sphi 0, %s72
    %s87 = sphi 0, %s73
    %s91 = sphi 0, %s91
    %s93 = sphi 0, %s91
    %s94 = sphi 0, %s93
    %s108 = sphi 0, %s94
    %s112 = sphi 0, %s112
    %s114 = sphi 0, %s112
    %s115 = sphi 0, %s114
    %s129 = sphi 0, %s115
    %s133 = sphi 0, %s133
    %s135 = sphi 0, %s133
    %s136 = sphi 0, %s135
    %s150 = sphi 0, %s136
    %s154 = sphi 0, %s154
    %s156 = sphi 0, %s154
    %s157 = sphi 0, %s156
    %s171 = sphi 0, %s157
    %s175 = sphi 0, %s175
    %s177 = sphi 0, %s175
    %s178 = sphi 0, %s177
    %s192 = sphi 0, %s178
    %s196 = sphi 0, %s196
    %s198 = sphi 0, %s196
    %s199 = sphi 0, %s198
    %s213 = sphi 0, %s199
    %s219 = sphi 0, %s221
    %s222 = sphi 0, %s219
    %s223 = sphi 0, %s222
    %s239 = sphi 0, %s223
  $region4: #{random_input_head.1} parent=0 // loop_header_branch
    %18 = sbr.rel (%p16) target = $region8
  $region5: #{random_input_head.1} parent=0 // loop_body
    %s20 = ssub.s32 %s15, 1
    %s21 = ssub.s32 %s15, 2
    %s22 = sadd.s32 %s15, 1
    %s23 = ssub.s32 %s15, %s22
    %p24 = scmp.eq.s32.totalorder %s23, 0
    %s26 = sadd.s32 %s25, 1
    %s27 = scalar_select %p24, %s25, %s26
    %p30 = pneg %p24
    %p31 = scmp.eq.s32.totalorder %s15, 1
    %p32 = por %p30, %p31
    %p33 = scmp.ne.s32.totalorder %s25, %s28
    %p34 = scmp.eq.s32.totalorder %s15, 0
    %p35 = por %p33, %p34
    %p36 = scmp.ne.s32.totalorder %s25, %s28
    %p37 = scmp.eq.s32.totalorder %s20, 1
    %p38 = por %p36, %p37
    %p39 = scmp.ne.s32.totalorder %s28, %s29
    %p40 = scmp.eq.s32.totalorder %s20, 0
    %p41 = por %p39, %p40
    %p42 = scmp.ne.s32.totalorder %s28, %s29
    %p43 = scmp.eq.s32.totalorder %s21, 1
    %p44 = por %p42, %p43
    %p46 = scmp.ne.s32.totalorder %s29, %s45
    %p47 = scmp.eq.s32.totalorder %s21, 0
    %p48 = por %p46, %p47
    %s50 = sadd.s32 %s49, 1
    %p53 = scmp.eq.s32.totalorder %s15, 1
    %p54 = scmp.ne.s32.totalorder %s49, %s51
    %p55 = scmp.eq.s32.totalorder %s15, 0
    %p56 = por %p54, %p55
    %p57 = scmp.ne.s32.totalorder %s49, %s51
    %p58 = scmp.eq.s32.totalorder %s20, 1
    %p59 = por %p57, %p58
    %p60 = scmp.ne.s32.totalorder %s51, %s52
    %p61 = scmp.eq.s32.totalorder %s20, 0
    %p62 = por %p60, %p61
    %p63 = scmp.ne.s32.totalorder %s51, %s52
    %p64 = scmp.eq.s32.totalorder %s21, 1
    %p65 = por %p63, %p64
    %p67 = scmp.ne.s32.totalorder %s52, %s66
    %p68 = scmp.eq.s32.totalorder %s21, 0
    %p69 = por %p67, %p68
    %s71 = sadd.s32 %s70, 1
    %p74 = scmp.eq.s32.totalorder %s15, 1
    %p75 = scmp.ne.s32.totalorder %s70, %s72
    %p76 = scmp.eq.s32.totalorder %s15, 0
    %p77 = por %p75, %p76
    %p78 = scmp.ne.s32.totalorder %s70, %s72
    %p79 = scmp.eq.s32.totalorder %s20, 1
    %p80 = por %p78, %p79
    %p81 = scmp.ne.s32.totalorder %s72, %s73
    %p82 = scmp.eq.s32.totalorder %s20, 0
    %p83 = por %p81, %p82
    %p84 = scmp.ne.s32.totalorder %s72, %s73
    %p85 = scmp.eq.s32.totalorder %s21, 1
    %p86 = por %p84, %p85
    %p88 = scmp.ne.s32.totalorder %s73, %s87
    %p89 = scmp.eq.s32.totalorder %s21, 0
    %p90 = por %p88, %p89
    %s92 = sadd.s32 %s91, 1
    %p95 = scmp.eq.s32.totalorder %s15, 1
    %p96 = scmp.ne.s32.totalorder %s91, %s93
    %p97 = scmp.eq.s32.totalorder %s15, 0
    %p98 = por %p96, %p97
    %p99 = scmp.ne.s32.totalorder %s91, %s93
    %p100 = scmp.eq.s32.totalorder %s20, 1
    %p101 = por %p99, %p100
    %p102 = scmp.ne.s32.totalorder %s93, %s94
    %p103 = scmp.eq.s32.totalorder %s20, 0
    %p104 = por %p102, %p103
    %p105 = scmp.ne.s32.totalorder %s93, %s94
    %p106 = scmp.eq.s32.totalorder %s21, 1
    %p107 = por %p105, %p106
    %p109 = scmp.ne.s32.totalorder %s94, %s108
    %p110 = scmp.eq.s32.totalorder %s21, 0
    %p111 = por %p109, %p110
    %s113 = sadd.s32 %s112, 1
    %p116 = scmp.eq.s32.totalorder %s15, 1
    %p117 = scmp.ne.s32.totalorder %s112, %s114
    %p118 = scmp.eq.s32.totalorder %s15, 0
    %p119 = por %p117, %p118
    %p120 = scmp.ne.s32.totalorder %s112, %s114
    %p121 = scmp.eq.s32.totalorder %s20, 1
    %p122 = por %p120, %p121
    %p123 = scmp.ne.s32.totalorder %s114, %s115
    %p124 = scmp.eq.s32.totalorder %s20, 0
    %p125 = por %p123, %p124
    %p126 = scmp.ne.s32.totalorder %s114, %s115
    %p127 = scmp.eq.s32.totalorder %s21, 1
    %p128 = por %p126, %p127
    %p130 = scmp.ne.s32.totalorder %s115, %s129
    %p131 = scmp.eq.s32.totalorder %s21, 0
    %p132 = por %p130, %p131
    %s134 = sadd.s32 %s133, 1
    %p137 = scmp.eq.s32.totalorder %s15, 1
    %p138 = scmp.ne.s32.totalorder %s133, %s135
    %p139 = scmp.eq.s32.totalorder %s15, 0
    %p140 = por %p138, %p139
    %p141 = scmp.ne.s32.totalorder %s133, %s135
    %p142 = scmp.eq.s32.totalorder %s20, 1
    %p143 = por %p141, %p142
    %p144 = scmp.ne.s32.totalorder %s135, %s136
    %p145 = scmp.eq.s32.totalorder %s20, 0
    %p146 = por %p144, %p145
    %p147 = scmp.ne.s32.totalorder %s135, %s136
    %p148 = scmp.eq.s32.totalorder %s21, 1
    %p149 = por %p147, %p148
    %p151 = scmp.ne.s32.totalorder %s136, %s150
    %p152 = scmp.eq.s32.totalorder %s21, 0
    %p153 = por %p151, %p152
    %s155 = sadd.s32 %s154, 1
    %p158 = scmp.eq.s32.totalorder %s15, 1
    %p159 = scmp.ne.s32.totalorder %s154, %s156
    %p160 = scmp.eq.s32.totalorder %s15, 0
    %p161 = por %p159, %p160
    %p162 = scmp.ne.s32.totalorder %s154, %s156
    %p163 = scmp.eq.s32.totalorder %s20, 1
    %p164 = por %p162, %p163
    %p165 = scmp.ne.s32.totalorder %s156, %s157
    %p166 = scmp.eq.s32.totalorder %s20, 0
    %p167 = por %p165, %p166
    %p168 = scmp.ne.s32.totalorder %s156, %s157
    %p169 = scmp.eq.s32.totalorder %s21, 1
    %p170 = por %p168, %p169
    %p172 = scmp.ne.s32.totalorder %s157, %s171
    %p173 = scmp.eq.s32.totalorder %s21, 0
    %p174 = por %p172, %p173
    %s176 = sadd.s32 %s175, 1
    %p179 = scmp.eq.s32.totalorder %s15, 1
    %p180 = scmp.ne.s32.totalorder %s175, %s177
    %p181 = scmp.eq.s32.totalorder %s15, 0
    %p182 = por %p180, %p181
    %p183 = scmp.ne.s32.totalorder %s175, %s177
    %p184 = scmp.eq.s32.totalorder %s20, 1
    %p185 = por %p183, %p184
    %p186 = scmp.ne.s32.totalorder %s177, %s178
    %p187 = scmp.eq.s32.totalorder %s20, 0
    %p188 = por %p186, %p187
    %p189 = scmp.ne.s32.totalorder %s177, %s178
    %p190 = scmp.eq.s32.totalorder %s21, 1
    %p191 = por %p189, %p190
    %p193 = scmp.ne.s32.totalorder %s178, %s192
    %p194 = scmp.eq.s32.totalorder %s21, 0
    %p195 = por %p193, %p194
    %s197 = sadd.s32 %s196, 1
    %p200 = scmp.eq.s32.totalorder %s15, 1
    %p201 = scmp.ne.s32.totalorder %s196, %s198
    %p202 = scmp.eq.s32.totalorder %s15, 0
    %p203 = por %p201, %p202
    %p204 = scmp.ne.s32.totalorder %s196, %s198
    %p205 = scmp.eq.s32.totalorder %s20, 1
    %p206 = por %p204, %p205
    %p207 = scmp.ne.s32.totalorder %s198, %s199
    %p208 = scmp.eq.s32.totalorder %s20, 0
    %p209 = por %p207, %p208
    %p210 = scmp.ne.s32.totalorder %s198, %s199
    %p211 = scmp.eq.s32.totalorder %s21, 1
    %p212 = por %p210, %p211
    %p214 = scmp.ne.s32.totalorder %s199, %s213
    %p215 = scmp.eq.s32.totalorder %s21, 0
    %p216 = por %p214, %p215
    %s217 = ssub.s32 %s15, %s22
    %p218 = scmp.eq.s32.totalorder %s217, 0
    %s220 = sadd.s32 %s219, 1
    %s221 = scalar_select %p218, %s219, %s220
    %p224 = pneg %p218
    %p225 = scmp.eq.s32.totalorder %s15, 1
    %p226 = por %p224, %p225
    %p227 = scmp.ne.s32.totalorder %s219, %s222
    %p228 = scmp.eq.s32.totalorder %s15, 0
    %p229 = por %p227, %p228
    %p230 = scmp.ne.s32.totalorder %s219, %s222
    %p231 = scmp.eq.s32.totalorder %s20, 1
    %p232 = por %p230, %p231
    %p233 = scmp.ne.s32.totalorder %s222, %s223
    %p234 = scmp.eq.s32.totalorder %s20, 0
    %p235 = por %p233, %p234
    %p236 = scmp.ne.s32.totalorder %s222, %s223
    %p237 = scmp.eq.s32.totalorder %s21, 1
    %p238 = por %p236, %p237
    %p240 = scmp.ne.s32.totalorder %s223, %s239
    %p241 = scmp.eq.s32.totalorder %s21, 0
    %p242 = por %p240, %p241
    %p243 = scmp.le.s32.totalorder 1, %s15
    %p244 = scmp.lt.s32.totalorder %s15, 3
    %p245 = pnand %p243, %p244
    %p246 = pneg %p245
    // Predicated region
    $region9: #{random_input_head.1} parent=5 // pred_check
      _
    $region10: #{random_input_head.1} parent=5 // pred_check_branch
      %248 = sbr.rel (%p245) target = $region12
    $region11: #{random_input_head.1} parent=5 // pred_region
      %s249 = ssub.s32 %s15, 1
      // Predicated region
      $region13: #{random_input_head.1} parent=11 // pred_check
        %p250 = pneg %p62
      $region14: #{random_input_head.1} parent=11 // pred_check_branch
        %252 = sbr.rel (%p250) target = $region16
      $region15: #{random_input_head.1} parent=11 // pred_region
        _
      $region16: #{random_input_head.1} parent=11 // pred_fallthru
        _
      // Predicated region
      $region17: #{random_input_head.1} parent=11 // pred_check
        %p253 = pneg %p83
      $region18: #{random_input_head.1} parent=11 // pred_check_branch
        %255 = sbr.rel (%p253) target = $region20
      $region19: #{random_input_head.1} parent=11 // pred_region
        _
      $region20: #{random_input_head.1} parent=11 // pred_fallthru
        _
      // Predicated region
      $region21: #{random_input_head.1} parent=11 // pred_check
        %p256 = pneg %p104
      $region22: #{random_input_head.1} parent=11 // pred_check_branch
        %258 = sbr.rel (%p256) target = $region24
      $region23: #{random_input_head.1} parent=11 // pred_region
        _
      $region24: #{random_input_head.1} parent=11 // pred_fallthru
        _
      // Predicated region
      $region25: #{random_input_head.1} parent=11 // pred_check
        %p259 = pneg %p125
      $region26: #{random_input_head.1} parent=11 // pred_check_branch
        %261 = sbr.rel (%p259) target = $region28
      $region27: #{random_input_head.1} parent=11 // pred_region
        _
      $region28: #{random_input_head.1} parent=11 // pred_fallthru
        _
      // Predicated region
      $region29: #{random_input_head.1} parent=11 // pred_check
        %p262 = pneg %p146
      $region30: #{random_input_head.1} parent=11 // pred_check_branch
        %264 = sbr.rel (%p262) target = $region32
      $region31: #{random_input_head.1} parent=11 // pred_region
        _
      $region32: #{random_input_head.1} parent=11 // pred_fallthru
        _
      // Predicated region
      $region33: #{random_input_head.1} parent=11 // pred_check
        %p265 = pneg %p167
      $region34: #{random_input_head.1} parent=11 // pred_check_branch
        %267 = sbr.rel (%p265) target = $region36
      $region35: #{random_input_head.1} parent=11 // pred_region
        _
      $region36: #{random_input_head.1} parent=11 // pred_fallthru
        _
      // Predicated region
      $region37: #{random_input_head.1} parent=11 // pred_check
        %p268 = pneg %p188
      $region38: #{random_input_head.1} parent=11 // pred_check_branch
        %270 = sbr.rel (%p268) target = $region40
      $region39: #{random_input_head.1} parent=11 // pred_region
        _
      $region40: #{random_input_head.1} parent=11 // pred_fallthru
        _
      // Predicated region
      $region41: #{random_input_head.1} parent=11 // pred_check
        %p271 = pneg %p209
      $region42: #{random_input_head.1} parent=11 // pred_check_branch
        %273 = sbr.rel (%p271) target = $region44
      $region43: #{random_input_head.1} parent=11 // pred_region
        _
      $region44: #{random_input_head.1} parent=11 // pred_fallthru
        _
    $region12: #{random_input_head.1} parent=5 // pred_fallthru
      _
    %p274 = scmp.lt.s32.totalorder %s15, 2
    // Predicated region
    $region45: #{random_input_head.1} parent=5 // pred_check
      %p275 = pneg %p274
    $region46: #{random_input_head.1} parent=5 // pred_check_branch
      %277 = sbr.rel (%p275) target = $region48
    $region47: #{random_input_head.1} parent=5 // pred_region
      // Predicated region
      $region49: #{random_input_head.1} parent=47 // pred_check
        %p278 = pneg %p35
      $region50: #{random_input_head.1} parent=47 // pred_check_branch
        %280 = sbr.rel (%p278) target = $region52
      $region51: #{random_input_head.1} parent=47 // pred_region
        %p281 = scmp.lt.s32.totalorder %s15, 1
        %s282 = scalar_select %p281, %s15, 1
        %s283 = smul.addr %s282, 32
        %s284 = smul.addr %s283, 8
        %s285 = scalar_lea.vmem %s0, %s284
      $region52: #{random_input_head.1} parent=47 // pred_fallthru
        _
    $region48: #{random_input_head.1} parent=5 // pred_fallthru
      _
    %p286 = scmp.le.s32.totalorder 1, %s15
    %p287 = scmp.lt.s32.totalorder %s15, 3
    %p288 = pnand %p286, %p287
    %p289 = pneg %p288
    // Predicated region
    $region53: #{random_input_head.1} parent=5 // pred_check
      _
    $region54: #{random_input_head.1} parent=5 // pred_check_branch
      %291 = sbr.rel (%p288) target = $region56
    $region55: #{random_input_head.1} parent=5 // pred_region
      %s292 = ssub.s32 %s15, 1
      %p293 = scmp.lt.s32.totalorder %s20, 1
      %s294 = scalar_select %p293, %s20, 1
      %s295 = smul.addr %s294, 32
      %s296 = smul.addr %s295, 8
      %s297 = scalar_lea.vmem %s0, %s296
      %p298 = pneg %p41
      %p299 = pneg %p38
      %p300 = pneg %p62
      %p301 = pneg %p59
      %p302 = pneg %p83
      %p303 = pneg %p80
      %p304 = pneg %p104
      %p305 = pneg %p101
      %p306 = pneg %p125
      %p307 = pneg %p122
      %p308 = pneg %p146
      %p309 = pneg %p143
      %p310 = pneg %p167
      %p311 = pneg %p164
      %p312 = pneg %p188
      %p313 = pneg %p185
      %p314 = pneg %p209
      %p315 = pneg %p206
      %p316 = pneg %p235
      %p317 = pneg %p232
      %p318 = scmp.lt.s32.totalorder %s20, 1
      %s319 = scalar_select %p318, %s20, 1
      %s320 = smul.addr %s319, 8
      %s321 = smul.addr %s320, 8
      %s322 = scalar_lea.vmem %s9, %s321
      %p323 = scmp.lt.s32.totalorder %s20, 1
      %s324 = scalar_select %p323, %s20, 1
      %s325 = smul.addr %s324, 32
      %s326 = smul.addr %s325, 8
      %s327 = scalar_lea.vmem %s0, %s326
      %p328 = scmp.lt.s32.totalorder %s20, 1
      %s329 = scalar_select %p328, %s20, 1
      %s330 = smul.addr %s329, 8
      %s331 = smul.addr %s330, 8
      %s332 = scalar_lea.vmem %s9, %s331
      %v334 = vld [vmem:[%s327] sm:$0xff]
      %v335 = vld [vmem:[%s327 + $0x8] sm:$0xff]
      %v336 = vld [vmem:[%s327 + $0x10] sm:$0xff]
      %v337 = vld [vmem:[%s327 + $0x18] sm:$0xff]
      %v338 = vld [vmem:[%s327 + $0x20] sm:$0xff]
      %v339 = vld [vmem:[%s327 + $0x28] sm:$0xff]
      %v340 = vld [vmem:[%s327 + $0x30] sm:$0xff]
      %v341 = vld [vmem:[%s327 + $0x38] sm:$0xff]
      %v342 = vld [vmem:[%s327 + $0x40] sm:$0xff]
      %v343 = vld [vmem:[%s327 + $0x48] sm:$0xff]
      %v344 = vld [vmem:[%s327 + $0x50] sm:$0xff]
      %v345 = vld [vmem:[%s327 + $0x58] sm:$0xff]
      %v346 = vld [vmem:[%s327 + $0x60] sm:$0xff]
      %v347 = vld [vmem:[%s327 + $0x68] sm:$0xff]
      %v348 = vld [vmem:[%s327 + $0x70] sm:$0xff]
      %v349 = vld [vmem:[%s327 + $0x78] sm:$0xff]
      %v350 = vld [vmem:[%s327 + $0x80] sm:$0xff]
      %v351 = vld [vmem:[%s327 + $0x88] sm:$0xff]
      %v352 = vld [vmem:[%s327 + $0x90] sm:$0xff]
      %v353 = vld [vmem:[%s327 + $0x98] sm:$0xff]
      %v354 = vld [vmem:[%s327 + $0xa0] sm:$0xff]
      %v355 = vld [vmem:[%s327 + $0xa8] sm:$0xff]
      %v356 = vld [vmem:[%s327 + $0xb0] sm:$0xff]
      %v357 = vld [vmem:[%s327 + $0xb8] sm:$0xff]
      %v358 = vld [vmem:[%s327 + $0xc0] sm:$0xff]
      %v359 = vld [vmem:[%s327 + $0xc8] sm:$0xff]
      %v360 = vld [vmem:[%s327 + $0xd0] sm:$0xff]
      %v361 = vld [vmem:[%s327 + $0xd8] sm:$0xff]
      %v362 = vld [vmem:[%s327 + $0xe0] sm:$0xff]
      %v363 = vld [vmem:[%s327 + $0xe8] sm:$0xff]
      %v364 = vld [vmem:[%s327 + $0xf0] sm:$0xff]
      %v365 = vld [vmem:[%s327 + $0xf8] sm:$0xff]
      %v366 = vpack.c.bf16 %v335, %v334
      %v367 = vpack.c.bf16 %v337, %v336
      %v368 = vpack.c.bf16 %v339, %v338
      %v369 = vpack.c.bf16 %v341, %v340
      %v370 = vpack.c.bf16 %v343, %v342
      %v371 = vpack.c.bf16 %v345, %v344
      %v372 = vpack.c.bf16 %v347, %v346
      %v373 = vpack.c.bf16 %v349, %v348
      %v374 = vpack.c.bf16 %v351, %v350
      %v375 = vpack.c.bf16 %v353, %v352
      %v376 = vpack.c.bf16 %v355, %v354
      %v377 = vpack.c.bf16 %v357, %v356
      %v378 = vpack.c.bf16 %v359, %v358
      %v379 = vpack.c.bf16 %v361, %v360
      %v380 = vpack.c.bf16 %v363, %v362
      %v381 = vpack.c.bf16 %v365, %v364
      %v382 = vld [vmem:[%s1] sm:$0xf]
      %v383 = vld [vmem:[%s1 + $0x4] sm:$0x1]
      %v384 = vld [vmem:[%s2] sm:$0x1]
      %v386 = vperm.slane %v384, 0
      %v390 = vunpack.c.l.b16 %v382
      %v391 = vunpack.c.l.b16 %v383
      %v392 = vpack.c.b16 %v391, %v390
      %vm393 = vcmask 72704
      %v395 = vsel %vm393, %v366, 0
      %v398 = vsel %vm393, %v367, 0
      %v401 = vsel %vm393, %v368, 0
      %v404 = vsel %vm393, %v369, 0
      %v407 = vsel %vm393, %v370, 0
      %v410 = vsel %vm393, %v371, 0
      %v413 = vsel %vm393, %v372, 0
      %v416 = vsel %vm393, %v373, 0
      %v419 = vsel %vm393, %v374, 0
      %v422 = vsel %vm393, %v375, 0
      %v425 = vsel %vm393, %v376, 0
      %v428 = vsel %vm393, %v377, 0
      %v431 = vsel %vm393, %v378, 0
      %v434 = vsel %vm393, %v379, 0
      %v437 = vsel %vm393, %v380, 0
      %v440 = vsel %vm393, %v381, 0
      %vm442 = vcmask 1043456
      %vm443 = vcmask 1044480
      %v444 = vsel %vm442, 4294967295, 65535
      %v445 = vsel %vm443, %v444, 0
      %v447 = vand.u32 %v392, %v445
      %449 = vmatpush.bf16.msra.mxu0 0
      %450 = vmatpush.bf16.msra.mxu0 0
      %451 = vmatpush.bf16.msra.mxu0 0
      %452 = vmatpush.bf16.msra.mxu0 0
      %453 = vmatpush.bf16.msra.mxu0 0
      %454 = vmatpush.bf16.msra.mxu0 0
      %455 = vmatpush.bf16.msra.mxu0 0
      %456 = vmatpush.bf16.msra.mxu0 %v447
      %457 = vmatmul.bf16.gmra.mxu0 %v395
      %v458 = vpop.f32.mrf.mxu0
      %v459 = vadd.f32 %v386, %v458
      %v460 = vpop.f32.mrf.mxu0
      %v461 = vadd.f32 %v386, %v460
      %462 = vmatmul.bf16.gmra.mxu0 %v398
      %v463 = vpop.f32.mrf.mxu0
      %v464 = vadd.f32 %v386, %v463
      %v465 = vpop.f32.mrf.mxu0
      %v466 = vadd.f32 %v386, %v465
      %467 = vmatmul.bf16.gmra.mxu0 %v401
      %v468 = vpop.f32.mrf.mxu0
      %v469 = vadd.f32 %v386, %v468
      %v470 = vpop.f32.mrf.mxu0
      %v471 = vadd.f32 %v386, %v470
      %472 = vmatmul.bf16.gmra.mxu0 %v404
      %v473 = vpop.f32.mrf.mxu0
      %v474 = vadd.f32 %v386, %v473
      %v475 = vpop.f32.mrf.mxu0
      %v476 = vadd.f32 %v386, %v475
      %477 = vmatmul.bf16.gmra.mxu0 %v407
      %v478 = vpop.f32.mrf.mxu0
      %v479 = vadd.f32 %v386, %v478
      %v480 = vpop.f32.mrf.mxu0
      %v481 = vadd.f32 %v386, %v480
      %482 = vmatmul.bf16.gmra.mxu0 %v410
      %v483 = vpop.f32.mrf.mxu0
      %v484 = vadd.f32 %v386, %v483
      %v485 = vpop.f32.mrf.mxu0
      %v486 = vadd.f32 %v386, %v485
      %487 = vmatmul.bf16.gmra.mxu0 %v413
      %v488 = vpop.f32.mrf.mxu0
      %v489 = vadd.f32 %v386, %v488
      %v490 = vpop.f32.mrf.mxu0
      %v491 = vadd.f32 %v386, %v490
      %492 = vmatmul.bf16.gmra.mxu0 %v416
      %v493 = vpop.f32.mrf.mxu0
      %v494 = vadd.f32 %v386, %v493
      %v495 = vpop.f32.mrf.mxu0
      %v496 = vadd.f32 %v386, %v495
      %497 = vmatmul.bf16.gmra.mxu0 %v419
      %v498 = vpop.f32.mrf.mxu0
      %v499 = vadd.f32 %v386, %v498
      %v500 = vpop.f32.mrf.mxu0
      %v501 = vadd.f32 %v386, %v500
      %502 = vmatmul.bf16.gmra.mxu0 %v422
      %v503 = vpop.f32.mrf.mxu0
      %v504 = vadd.f32 %v386, %v503
      %v505 = vpop.f32.mrf.mxu0
      %v506 = vadd.f32 %v386, %v505
      %507 = vmatmul.bf16.gmra.mxu0 %v425
      %v508 = vpop.f32.mrf.mxu0
      %v509 = vadd.f32 %v386, %v508
      %v510 = vpop.f32.mrf.mxu0
      %v511 = vadd.f32 %v386, %v510
      %512 = vmatmul.bf16.gmra.mxu0 %v428
      %v513 = vpop.f32.mrf.mxu0
      %v514 = vadd.f32 %v386, %v513
      %v515 = vpop.f32.mrf.mxu0
      %v516 = vadd.f32 %v386, %v515
      %517 = vmatmul.bf16.gmra.mxu0 %v431
      %v518 = vpop.f32.mrf.mxu0
      %v519 = vadd.f32 %v386, %v518
      %v520 = vpop.f32.mrf.mxu0
      %v521 = vadd.f32 %v386, %v520
      %522 = vmatmul.bf16.gmra.mxu0 %v434
      %v523 = vpop.f32.mrf.mxu0
      %v524 = vadd.f32 %v386, %v523
      %v525 = vpop.f32.mrf.mxu0
      %v526 = vadd.f32 %v386, %v525
      %527 = vmatmul.bf16.gmra.mxu0 %v437
      %v528 = vpop.f32.mrf.mxu0
      %v529 = vadd.f32 %v386, %v528
      %v530 = vpop.f32.mrf.mxu0
      %v531 = vadd.f32 %v386, %v530
      %532 = vmatmul.bf16.gmra.mxu0 %v440
      %v533 = vpop.f32.mrf.mxu0
      %v534 = vadd.f32 %v386, %v533
      %v535 = vpop.f32.mrf.mxu0
      %v536 = vadd.f32 %v386, %v535
      %537 = vdwg.mxu0
      %vm538 = vcmask 261120
      %v539 = vsel %vm538, %v459, 0.0
      %v540 = vsel %vm538, %v461, 0.0
      %v541 = vadd.f32 %v539, %v540
      %v542 = vsel %vm538, %v464, 0.0
      %v543 = vadd.f32 %v541, %v542
      %v544 = vsel %vm538, %v466, 0.0
      %v545 = vadd.f32 %v543, %v544
      %v546 = vsel %vm538, %v469, 0.0
      %v547 = vadd.f32 %v545, %v546
      %v548 = vsel %vm538, %v471, 0.0
      %v549 = vadd.f32 %v547, %v548
      %v550 = vsel %vm538, %v474, 0.0
      %v551 = vadd.f32 %v549, %v550
      %v552 = vsel %vm538, %v476, 0.0
      %v553 = vadd.f32 %v551, %v552
      %v554 = vsel %vm538, %v479, 0.0
      %v555 = vadd.f32 %v553, %v554
      %v556 = vsel %vm538, %v481, 0.0
      %v557 = vadd.f32 %v555, %v556
      %v558 = vsel %vm538, %v484, 0.0
      %v559 = vadd.f32 %v557, %v558
      %v560 = vsel %vm538, %v486, 0.0
      %v561 = vadd.f32 %v559, %v560
      %v562 = vsel %vm538, %v489, 0.0
      %v563 = vadd.f32 %v561, %v562
      %v564 = vsel %vm538, %v491, 0.0
      %v565 = vadd.f32 %v563, %v564
      %v566 = vsel %vm538, %v494, 0.0
      %v567 = vadd.f32 %v565, %v566
      %v568 = vsel %vm538, %v496, 0.0
      %v569 = vadd.f32 %v567, %v568
      %v570 = vsel %vm538, %v499, 0.0
      %v571 = vadd.f32 %v569, %v570
      %v572 = vsel %vm538, %v501, 0.0
      %v573 = vadd.f32 %v571, %v572
      %v574 = vsel %vm538, %v504, 0.0
      %v575 = vadd.f32 %v573, %v574
      %v576 = vsel %vm538, %v506, 0.0
      %v577 = vadd.f32 %v575, %v576
      %v578 = vsel %vm538, %v509, 0.0
      %v579 = vadd.f32 %v577, %v578
      %v580 = vsel %vm538, %v511, 0.0
      %v581 = vadd.f32 %v579, %v580
      %v582 = vsel %vm538, %v514, 0.0
      %v583 = vadd.f32 %v581, %v582
      %v584 = vsel %vm538, %v516, 0.0
      %v585 = vadd.f32 %v583, %v584
      %v586 = vsel %vm538, %v519, 0.0
      %v587 = vadd.f32 %v585, %v586
      %v588 = vsel %vm538, %v521, 0.0
      %v589 = vadd.f32 %v587, %v588
      %v590 = vsel %vm538, %v524, 0.0
      %v591 = vadd.f32 %v589, %v590
      %v592 = vsel %vm538, %v526, 0.0
      %v593 = vadd.f32 %v591, %v592
      %v594 = vsel %vm538, %v529, 0.0
      %v595 = vadd.f32 %v593, %v594
      %v596 = vsel %vm538, %v531, 0.0
      %v597 = vadd.f32 %v595, %v596
      %v598 = vsel %vm538, %v534, 0.0
      %v599 = vadd.f32 %v597, %v598
      %v600 = vsel %vm538, %v536, 0.0
      %v601 = vadd.f32 %v599, %v600
      %v602 = vrot.slane %v601, 4
      %v603 = vadd.f32 %v601, %v602
      %v604 = vrot.slane %v603, 2
      %v605 = vadd.f32 %v603, %v604
      %v606 = vrot.slane %v605, 1
      %v607 = vadd.f32 %v605, %v606
      %v608 = vrcp.pop 256.0
      %v609 = vmul.f32 256.0, %v608
      %v610 = vsub.f32 1.0, %v609
      %v611 = vmul.f32 %v608, %v610
      %v612 = vadd.f32 %v608, %v611
      %vm613 = vweird.f32 %v608
      %v614 = vsel %vm613, %v608, %v612
      %v615 = vmul.f32 %v607, %v614
      %v616 = vsub.f32 %v459, %v615
      %v617 = vsub.f32 %v461, %v615
      %v618 = vsub.f32 %v464, %v615
      %v619 = vsub.f32 %v466, %v615
      %v620 = vsub.f32 %v469, %v615
      %v621 = vsub.f32 %v471, %v615
      %v622 = vsub.f32 %v474, %v615
      %v623 = vsub.f32 %v476, %v615
      %v624 = vsub.f32 %v479, %v615
      %v625 = vsub.f32 %v481, %v615
      %v626 = vsub.f32 %v484, %v615
      %v627 = vsub.f32 %v486, %v615
      %v628 = vsub.f32 %v489, %v615
      %v629 = vsub.f32 %v491, %v615
      %v630 = vsub.f32 %v494, %v615
      %v631 = vsub.f32 %v496, %v615
      %v632 = vsub.f32 %v499, %v615
      %v633 = vsub.f32 %v501, %v615
      %v634 = vsub.f32 %v504, %v615
      %v635 = vsub.f32 %v506, %v615
      %v636 = vsub.f32 %v509, %v615
      %v637 = vsub.f32 %v511, %v615
      %v638 = vsub.f32 %v514, %v615
      %v639 = vsub.f32 %v516, %v615
      %v640 = vsub.f32 %v519, %v615
      %v641 = vsub.f32 %v521, %v615
      %v642 = vsub.f32 %v524, %v615
      %v643 = vsub.f32 %v526, %v615
      %v644 = vsub.f32 %v529, %v615
      %v645 = vsub.f32 %v531, %v615
      %v646 = vsub.f32 %v534, %v615
      %v647 = vsub.f32 %v536, %v615
      %v648 = vmul.f32 %v616, %v616
      %v649 = vmul.f32 %v617, %v617
      %v650 = vmul.f32 %v618, %v618
      %v651 = vmul.f32 %v619, %v619
      %v652 = vmul.f32 %v620, %v620
      %v653 = vmul.f32 %v621, %v621
      %v654 = vmul.f32 %v622, %v622
      %v655 = vmul.f32 %v623, %v623
      %v656 = vmul.f32 %v624, %v624
      %v657 = vmul.f32 %v625, %v625
      %v658 = vmul.f32 %v626, %v626
      %v659 = vmul.f32 %v627, %v627
      %v660 = vmul.f32 %v628, %v628
      %v661 = vmul.f32 %v629, %v629
      %v662 = vmul.f32 %v630, %v630
      %v663 = vmul.f32 %v631, %v631
      %v664 = vmul.f32 %v632, %v632
      %v665 = vmul.f32 %v633, %v633
      %v666 = vmul.f32 %v634, %v634
      %v667 = vmul.f32 %v635, %v635
      %v668 = vmul.f32 %v636, %v636
      %v669 = vmul.f32 %v637, %v637
      %v670 = vmul.f32 %v638, %v638
      %v671 = vmul.f32 %v639, %v639
      %v672 = vmul.f32 %v640, %v640
      %v673 = vmul.f32 %v641, %v641
      %v674 = vmul.f32 %v642, %v642
      %v675 = vmul.f32 %v643, %v643
      %v676 = vmul.f32 %v644, %v644
      %v677 = vmul.f32 %v645, %v645
      %v678 = vmul.f32 %v646, %v646
      %v679 = vmul.f32 %v647, %v647
      %v680 = vsel %vm538, %v648, 0.0
      %v681 = vsel %vm538, %v649, 0.0
      %v682 = vadd.f32 %v680, %v681
      %v683 = vsel %vm538, %v650, 0.0
      %v684 = vadd.f32 %v682, %v683
      %v685 = vsel %vm538, %v651, 0.0
      %v686 = vadd.f32 %v684, %v685
      %v687 = vsel %vm538, %v652, 0.0
      %v688 = vadd.f32 %v686, %v687
      %v689 = vsel %vm538, %v653, 0.0
      %v690 = vadd.f32 %v688, %v689
      %v691 = vsel %vm538, %v654, 0.0
      %v692 = vadd.f32 %v690, %v691
      %v693 = vsel %vm538, %v655, 0.0
      %v694 = vadd.f32 %v692, %v693
      %v695 = vsel %vm538, %v656, 0.0
      %v696 = vadd.f32 %v694, %v695
      %v697 = vsel %vm538, %v657, 0.0
      %v698 = vadd.f32 %v696, %v697
      %v699 = vsel %vm538, %v658, 0.0
      %v700 = vadd.f32 %v698, %v699
      %v701 = vsel %vm538, %v659, 0.0
      %v702 = vadd.f32 %v700, %v701
      %v703 = vsel %vm538, %v660, 0.0
      %v704 = vadd.f32 %v702, %v703
      %v705 = vsel %vm538, %v661, 0.0
      %v706 = vadd.f32 %v704, %v705
      %v707 = vsel %vm538, %v662, 0.0
      %v708 = vadd.f32 %v706, %v707
      %v709 = vsel %vm538, %v663, 0.0
      %v710 = vadd.f32 %v708, %v709
      %v711 = vsel %vm538, %v664, 0.0
      %v712 = vadd.f32 %v710, %v711
      %v713 = vsel %vm538, %v665, 0.0
      %v714 = vadd.f32 %v712, %v713
      %v715 = vsel %vm538, %v666, 0.0
      %v716 = vadd.f32 %v714, %v715
      %v717 = vsel %vm538, %v667, 0.0
      %v718 = vadd.f32 %v716, %v717
      %v719 = vsel %vm538, %v668, 0.0
      %v720 = vadd.f32 %v718, %v719
      %v721 = vsel %vm538, %v669, 0.0
      %v722 = vadd.f32 %v720, %v721
      %v723 = vsel %vm538, %v670, 0.0
      %v724 = vadd.f32 %v722, %v723
      %v725 = vsel %vm538, %v671, 0.0
      %v726 = vadd.f32 %v724, %v725
      %v727 = vsel %vm538, %v672, 0.0
      %v728 = vadd.f32 %v726, %v727
      %v729 = vsel %vm538, %v673, 0.0
      %v730 = vadd.f32 %v728, %v729
      %v731 = vsel %vm538, %v674, 0.0
      %v732 = vadd.f32 %v730, %v731
      %v733 = vsel %vm538, %v675, 0.0
      %v734 = vadd.f32 %v732, %v733
      %v735 = vsel %vm538, %v676, 0.0
      %v736 = vadd.f32 %v734, %v735
      %v737 = vsel %vm538, %v677, 0.0
      %v738 = vadd.f32 %v736, %v737
      %v739 = vsel %vm538, %v678, 0.0
      %v740 = vadd.f32 %v738, %v739
      %v741 = vsel %vm538, %v679, 0.0
      %v742 = vadd.f32 %v740, %v741
      %v743 = vrot.slane %v742, 4
      %v744 = vadd.f32 %v742, %v743
      %v745 = vrot.slane %v744, 2
      %v746 = vadd.f32 %v744, %v745
      %v747 = vrot.slane %v746, 1
      %v748 = vadd.f32 %v746, %v747
      %v749 = vmul.f32 %v748, %v614
      %v750 = vadd.f32 %v749, 1e-05
      %v751 = vrsqrt.pop %v750
      %v752 = vmul.f32 %v751, %v750
      %v753 = vmul.f32 %v752, %v751
      %v754 = vmul.f32 0.5, %v753
      %v755 = vsub.f32 1.5, %v754
      %v756 = vmul.f32 %v751, %v755
      %vm757 = vweird.f32 %v750
      %vm758 = vweird.f32 %v751
      %vm759 = vmor %vm757, %vm758
      %v760 = vsel %vm759, %v751, %v756
      %v761 = vmul.f32 %v616, %v760
      %v762 = vmul.f32 %v617, %v760
      %v763 = vmul.f32 %v618, %v760
      %v764 = vmul.f32 %v619, %v760
      %v765 = vmul.f32 %v620, %v760
      %v766 = vmul.f32 %v621, %v760
      %v767 = vmul.f32 %v622, %v760
      %v768 = vmul.f32 %v623, %v760
      %v769 = vmul.f32 %v624, %v760
      %v770 = vmul.f32 %v625, %v760
      %v771 = vmul.f32 %v626, %v760
      %v772 = vmul.f32 %v627, %v760
      %v773 = vmul.f32 %v628, %v760
      %v774 = vmul.f32 %v629, %v760
      %v775 = vmul.f32 %v630, %v760
      %v776 = vmul.f32 %v631, %v760
      %v777 = vmul.f32 %v632, %v760
      %v778 = vmul.f32 %v633, %v760
      %v779 = vmul.f32 %v634, %v760
      %v780 = vmul.f32 %v635, %v760
      %v781 = vmul.f32 %v636, %v760
      %v782 = vmul.f32 %v637, %v760
      %v783 = vmul.f32 %v638, %v760
      %v784 = vmul.f32 %v639, %v760
      %v785 = vmul.f32 %v640, %v760
      %v786 = vmul.f32 %v641, %v760
      %v787 = vmul.f32 %v642, %v760
      %v788 = vmul.f32 %v643, %v760
      %v789 = vmul.f32 %v644, %v760
      %v790 = vmul.f32 %v645, %v760
      %v791 = vmul.f32 %v646, %v760
      %v792 = vmul.f32 %v647, %v760
      %vm793 = vcmp.gt.f32.partialorder %v761, 0.0
      %vm794 = vcmp.gt.f32.partialorder %v762, 0.0
      %vm795 = vcmp.gt.f32.partialorder %v763, 0.0
      %vm796 = vcmp.gt.f32.partialorder %v764, 0.0
      %vm797 = vcmp.gt.f32.partialorder %v765, 0.0
      %vm798 = vcmp.gt.f32.partialorder %v766, 0.0
      %vm799 = vcmp.gt.f32.partialorder %v767, 0.0
      %vm800 = vcmp.gt.f32.partialorder %v768, 0.0
      %vm801 = vcmp.gt.f32.partialorder %v769, 0.0
      %vm802 = vcmp.gt.f32.partialorder %v770, 0.0
      %vm803 = vcmp.gt.f32.partialorder %v771, 0.0
      %vm804 = vcmp.gt.f32.partialorder %v772, 0.0
      %vm805 = vcmp.gt.f32.partialorder %v773, 0.0
      %vm806 = vcmp.gt.f32.partialorder %v774, 0.0
      %vm807 = vcmp.gt.f32.partialorder %v775, 0.0
      %vm808 = vcmp.gt.f32.partialorder %v776, 0.0
      %vm809 = vcmp.gt.f32.partialorder %v777, 0.0
      %vm810 = vcmp.gt.f32.partialorder %v778, 0.0
      %vm811 = vcmp.gt.f32.partialorder %v779, 0.0
      %vm812 = vcmp.gt.f32.partialorder %v780, 0.0
      %vm813 = vcmp.gt.f32.partialorder %v781, 0.0
      %vm814 = vcmp.gt.f32.partialorder %v782, 0.0
      %vm815 = vcmp.gt.f32.partialorder %v783, 0.0
      %vm816 = vcmp.gt.f32.partialorder %v784, 0.0
      %vm817 = vcmp.gt.f32.partialorder %v785, 0.0
      %vm818 = vcmp.gt.f32.partialorder %v786, 0.0
      %vm819 = vcmp.gt.f32.partialorder %v787, 0.0
      %vm820 = vcmp.gt.f32.partialorder %v788, 0.0
      %vm821 = vcmp.gt.f32.partialorder %v789, 0.0
      %vm822 = vcmp.gt.f32.partialorder %v790, 0.0
      %vm823 = vcmp.gt.f32.partialorder %v791, 0.0
      %vm824 = vcmp.gt.f32.partialorder %v792, 0.0
      %v825 = vmin.f32 %v761, 0.0
      %v826 = vmin.f32 %v762, 0.0
      %v827 = vmin.f32 %v763, 0.0
      %v828 = vmin.f32 %v764, 0.0
      %v829 = vmin.f32 %v765, 0.0
      %v830 = vmin.f32 %v766, 0.0
      %v831 = vmin.f32 %v767, 0.0
      %v832 = vmin.f32 %v768, 0.0
      %v833 = vmin.f32 %v769, 0.0
      %v834 = vmin.f32 %v770, 0.0
      %v835 = vmin.f32 %v771, 0.0
      %v836 = vmin.f32 %v772, 0.0
      %v837 = vmin.f32 %v773, 0.0
      %v838 = vmin.f32 %v774, 0.0
      %v839 = vmin.f32 %v775, 0.0
      %v840 = vmin.f32 %v776, 0.0
      %v841 = vmin.f32 %v777, 0.0
      %v842 = vmin.f32 %v778, 0.0
      %v843 = vmin.f32 %v779, 0.0
      %v844 = vmin.f32 %v780, 0.0
      %v845 = vmin.f32 %v781, 0.0
      %v846 = vmin.f32 %v782, 0.0
      %v847 = vmin.f32 %v783, 0.0
      %v848 = vmin.f32 %v784, 0.0
      %v849 = vmin.f32 %v785, 0.0
      %v850 = vmin.f32 %v786, 0.0
      %v851 = vmin.f32 %v787, 0.0
      %v852 = vmin.f32 %v788, 0.0
      %v853 = vmin.f32 %v789, 0.0
      %v854 = vmin.f32 %v790, 0.0
      %v855 = vmin.f32 %v791, 0.0
      %v856 = vmin.f32 %v792, 0.0
      %v857 = vmul.f32 %v825, 1.442695
      %v858 = vpow.pop %v857
      %v859 = vmul.f32 %v826, 1.442695
      %v860 = vpow.pop %v859
      %v861 = vmul.f32 %v827, 1.442695
      %v862 = vpow.pop %v861
      %v863 = vmul.f32 %v828, 1.442695
      %v864 = vpow.pop %v863
      %v865 = vmul.f32 %v829, 1.442695
      %v866 = vpow.pop %v865
      %v867 = vmul.f32 %v830, 1.442695
      %v868 = vpow.pop %v867
      %v869 = vmul.f32 %v831, 1.442695
      %v870 = vpow.pop %v869
      %v871 = vmul.f32 %v832, 1.442695
      %v872 = vpow.pop %v871
      %v873 = vmul.f32 %v833, 1.442695
      %v874 = vpow.pop %v873
      %v875 = vmul.f32 %v834, 1.442695
      %v876 = vpow.pop %v875
      %v877 = vmul.f32 %v835, 1.442695
      %v878 = vpow.pop %v877
      %v879 = vmul.f32 %v836, 1.442695
      %v880 = vpow.pop %v879
      %v881 = vmul.f32 %v837, 1.442695
      %v882 = vpow.pop %v881
      %v883 = vmul.f32 %v838, 1.442695
      %v884 = vpow.pop %v883
      %v885 = vmul.f32 %v839, 1.442695
      %v886 = vpow.pop %v885
      %v887 = vmul.f32 %v840, 1.442695
      %v888 = vpow.pop %v887
      %v889 = vmul.f32 %v841, 1.442695
      %v890 = vpow.pop %v889
      %v891 = vmul.f32 %v842, 1.442695
      %v892 = vpow.pop %v891
      %v893 = vmul.f32 %v843, 1.442695
      %v894 = vpow.pop %v893
      %v895 = vmul.f32 %v844, 1.442695
      %v896 = vpow.pop %v895
      %v897 = vmul.f32 %v845, 1.442695
      %v898 = vpow.pop %v897
      %v899 = vmul.f32 %v846, 1.442695
      %v900 = vpow.pop %v899
      %v901 = vmul.f32 %v847, 1.442695
      %v902 = vpow.pop %v901
      %v903 = vmul.f32 %v848, 1.442695
      %v904 = vpow.pop %v903
      %v905 = vmul.f32 %v849, 1.442695
      %v906 = vpow.pop %v905
      %v907 = vmul.f32 %v850, 1.442695
      %v908 = vpow.pop %v907
      %v909 = vmul.f32 %v851, 1.442695
      %v910 = vpow.pop %v909
      %v911 = vmul.f32 %v852, 1.442695
      %v912 = vpow.pop %v911
      %v913 = vmul.f32 %v853, 1.442695
      %v914 = vpow.pop %v913
      %v915 = vmul.f32 %v854, 1.442695
      %v916 = vpow.pop %v915
      %v917 = vmul.f32 %v855, 1.442695
      %v918 = vpow.pop %v917
      %v919 = vmul.f32 %v856, 1.442695
      %v920 = vpow.pop %v919
      %v921 = vsub.f32 %v858, 1.0
      %v922 = vsub.f32 %v860, 1.0
      %v923 = vsub.f32 %v862, 1.0
      %v924 = vsub.f32 %v864, 1.0
      %v925 = vsub.f32 %v866, 1.0
      %v926 = vsub.f32 %v868, 1.0
      %v927 = vsub.f32 %v870, 1.0
      %v928 = vsub.f32 %v872, 1.0
      %v929 = vsub.f32 %v874, 1.0
      %v930 = vsub.f32 %v876, 1.0
      %v931 = vsub.f32 %v878, 1.0
      %v932 = vsub.f32 %v880, 1.0
      %v933 = vsub.f32 %v882, 1.0
      %v934 = vsub.f32 %v884, 1.0
      %v935 = vsub.f32 %v886, 1.0
      %v936 = vsub.f32 %v888, 1.0
      %v937 = vsub.f32 %v890, 1.0
      %v938 = vsub.f32 %v892, 1.0
      %v939 = vsub.f32 %v894, 1.0
      %v940 = vsub.f32 %v896, 1.0
      %v941 = vsub.f32 %v898, 1.0
      %v942 = vsub.f32 %v900, 1.0
      %v943 = vsub.f32 %v902, 1.0
      %v944 = vsub.f32 %v904, 1.0
      %v945 = vsub.f32 %v906, 1.0
      %v946 = vsub.f32 %v908, 1.0
      %v947 = vsub.f32 %v910, 1.0
      %v948 = vsub.f32 %v912, 1.0
      %v949 = vsub.f32 %v914, 1.0
      %v950 = vsub.f32 %v916, 1.0
      %v951 = vsub.f32 %v918, 1.0
      %v952 = vsub.f32 %v920, 1.0
      %v953 = vsel %vm793, %v761, %v921
      %v954 = vsel %vm794, %v762, %v922
      %v955 = vsel %vm795, %v763, %v923
      %v956 = vsel %vm796, %v764, %v924
      %v957 = vsel %vm797, %v765, %v925
      %v958 = vsel %vm798, %v766, %v926
      %v959 = vsel %vm799, %v767, %v927
      %v960 = vsel %vm800, %v768, %v928
      %v961 = vsel %vm801, %v769, %v929
      %v962 = vsel %vm802, %v770, %v930
      %v963 = vsel %vm803, %v771, %v931
      %v964 = vsel %vm804, %v772, %v932
      %v965 = vsel %vm805, %v773, %v933
      %v966 = vsel %vm806, %v774, %v934
      %v967 = vsel %vm807, %v775, %v935
      %v968 = vsel %vm808, %v776, %v936
      %v969 = vsel %vm809, %v777, %v937
      %v970 = vsel %vm810, %v778, %v938
      %v971 = vsel %vm811, %v779, %v939
      %v972 = vsel %vm812, %v780, %v940
      %v973 = vsel %vm813, %v781, %v941
      %v974 = vsel %vm814, %v782, %v942
      %v975 = vsel %vm815, %v783, %v943
      %v976 = vsel %vm816, %v784, %v944
      %v977 = vsel %vm817, %v785, %v945
      %v978 = vsel %vm818, %v786, %v946
      %v979 = vsel %vm819, %v787, %v947
      %v980 = vsel %vm820, %v788, %v948
      %v981 = vsel %vm821, %v789, %v949
      %v982 = vsel %vm822, %v790, %v950
      %v983 = vsel %vm823, %v791, %v951
      %v984 = vsel %vm824, %v792, %v952
      %vm1017 = vcmask 1040384
      %v1018 = vrot.slane %v953, 7
      %v1019 = vrot.slane %v954, 7
      %v1020 = vsel %vm1017, %v1018, %v1019
      %v1021 = vrot.slane %v955, 7
      %v1022 = vrot.slane %v956, 7
      %v1023 = vsel %vm1017, %v1021, %v1022
      %v1024 = vrot.slane %v957, 7
      %v1025 = vrot.slane %v958, 7
      %v1026 = vsel %vm1017, %v1024, %v1025
      %v1027 = vrot.slane %v959, 7
      %v1028 = vrot.slane %v960, 7
      %v1029 = vsel %vm1017, %v1027, %v1028
      %v1030 = vrot.slane %v961, 7
      %v1031 = vrot.slane %v962, 7
      %v1032 = vsel %vm1017, %v1030, %v1031
      %v1033 = vrot.slane %v963, 7
      %v1034 = vrot.slane %v964, 7
      %v1035 = vsel %vm1017, %v1033, %v1034
      %v1036 = vrot.slane %v965, 7
      %v1037 = vrot.slane %v966, 7
      %v1038 = vsel %vm1017, %v1036, %v1037
      %v1039 = vrot.slane %v967, 7
      %v1040 = vrot.slane %v968, 7
      %v1041 = vsel %vm1017, %v1039, %v1040
      %v1042 = vrot.slane %v969, 7
      %v1043 = vrot.slane %v970, 7
      %v1044 = vsel %vm1017, %v1042, %v1043
      %v1045 = vrot.slane %v971, 7
      %v1046 = vrot.slane %v972, 7
      %v1047 = vsel %vm1017, %v1045, %v1046
      %v1048 = vrot.slane %v973, 7
      %v1049 = vrot.slane %v974, 7
      %v1050 = vsel %vm1017, %v1048, %v1049
      %v1051 = vrot.slane %v975, 7
      %v1052 = vrot.slane %v976, 7
      %v1053 = vsel %vm1017, %v1051, %v1052
      %v1054 = vrot.slane %v977, 7
      %v1055 = vrot.slane %v978, 7
      %v1056 = vsel %vm1017, %v1054, %v1055
      %v1057 = vrot.slane %v979, 7
      %v1058 = vrot.slane %v980, 7
      %v1059 = vsel %vm1017, %v1057, %v1058
      %v1060 = vrot.slane %v981, 7
      %v1061 = vrot.slane %v982, 7
      %v1062 = vsel %vm1017, %v1060, %v1061
      %v1063 = vrot.slane %v983, 7
      %v1064 = vrot.slane %v984, 7
      %v1065 = vsel %vm1017, %v1063, %v1064
      %v1113 = vrot.slane %v954, 6
      %v1114 = vrot.slane %v956, 6
      %v1115 = vrot.slane %v958, 6
      %v1116 = vrot.slane %v960, 6
      %v1117 = vrot.slane %v962, 6
      %v1118 = vrot.slane %v964, 6
      %v1119 = vrot.slane %v966, 6
      %v1120 = vrot.slane %v968, 6
      %v1121 = vrot.slane %v970, 6
      %v1122 = vrot.slane %v972, 6
      %v1123 = vrot.slane %v974, 6
      %v1124 = vrot.slane %v976, 6
      %v1125 = vrot.slane %v978, 6
      %v1126 = vrot.slane %v980, 6
      %v1127 = vrot.slane %v982, 6
      %v1128 = vrot.slane %v984, 6
      %v1145 = vsel %vm1017, %v953, %v1018
      %v1146 = vsel %vm1017, %v955, %v1021
      %v1147 = vsel %vm1017, %v957, %v1024
      %v1148 = vsel %vm1017, %v959, %v1027
      %v1149 = vsel %vm1017, %v961, %v1030
      %v1150 = vsel %vm1017, %v963, %v1033
      %v1151 = vsel %vm1017, %v965, %v1036
      %v1152 = vsel %vm1017, %v967, %v1039
      %v1153 = vsel %vm1017, %v969, %v1042
      %v1154 = vsel %vm1017, %v971, %v1045
      %v1155 = vsel %vm1017, %v973, %v1048
      %v1156 = vsel %vm1017, %v975, %v1051
      %v1157 = vsel %vm1017, %v977, %v1054
      %v1158 = vsel %vm1017, %v979, %v1057
      %v1159 = vsel %vm1017, %v981, %v1060
      %v1160 = vsel %vm1017, %v983, %v1063
      %v1161 = vsel %vm1017, %v1019, %v1113
      %v1162 = vsel %vm1017, %v1022, %v1114
      %v1163 = vsel %vm1017, %v1025, %v1115
      %v1164 = vsel %vm1017, %v1028, %v1116
      %v1165 = vsel %vm1017, %v1031, %v1117
      %v1166 = vsel %vm1017, %v1034, %v1118
      %v1167 = vsel %vm1017, %v1037, %v1119
      %v1168 = vsel %vm1017, %v1040, %v1120
      %v1169 = vsel %vm1017, %v1043, %v1121
      %v1170 = vsel %vm1017, %v1046, %v1122
      %v1171 = vsel %vm1017, %v1049, %v1123
      %v1172 = vsel %vm1017, %v1052, %v1124
      %v1173 = vsel %vm1017, %v1055, %v1125
      %v1174 = vsel %vm1017, %v1058, %v1126
      %v1175 = vsel %vm1017, %v1061, %v1127
      %v1176 = vsel %vm1017, %v1064, %v1128
      %vm1207 = vcmask 1046528
      %v1208 = vrot.slane %v1145, 1
      %v1209 = vrot.slane %v1020, 1
      %v1210 = vsel %vm1207, %v1208, %v1209
      %v1211 = vrot.slane %v1161, 1
      %v1212 = vsel %vm1207, %v1209, %v1211
      %v1213 = vrot.slane %v1146, 1
      %v1214 = vrot.slane %v1023, 1
      %v1215 = vsel %vm1207, %v1213, %v1214
      %v1216 = vrot.slane %v1162, 1
      %v1217 = vsel %vm1207, %v1214, %v1216
      %v1218 = vrot.slane %v1147, 1
      %v1219 = vrot.slane %v1026, 1
      %v1220 = vsel %vm1207, %v1218, %v1219
      %v1221 = vrot.slane %v1163, 1
      %v1222 = vsel %vm1207, %v1219, %v1221
      %v1223 = vrot.slane %v1148, 1
      %v1224 = vrot.slane %v1029, 1
      %v1225 = vsel %vm1207, %v1223, %v1224
      %v1226 = vrot.slane %v1164, 1
      %v1227 = vsel %vm1207, %v1224, %v1226
      %v1228 = vrot.slane %v1149, 1
      %v1229 = vrot.slane %v1032, 1
      %v1230 = vsel %vm1207, %v1228, %v1229
      %v1231 = vrot.slane %v1165, 1
      %v1232 = vsel %vm1207, %v1229, %v1231
      %v1233 = vrot.slane %v1150, 1
      %v1234 = vrot.slane %v1035, 1
      %v1235 = vsel %vm1207, %v1233, %v1234
      %v1236 = vrot.slane %v1166, 1
      %v1237 = vsel %vm1207, %v1234, %v1236
      %v1238 = vrot.slane %v1151, 1
      %v1239 = vrot.slane %v1038, 1
      %v1240 = vsel %vm1207, %v1238, %v1239
      %v1241 = vrot.slane %v1167, 1
      %v1242 = vsel %vm1207, %v1239, %v1241
      %v1243 = vrot.slane %v1152, 1
      %v1244 = vrot.slane %v1041, 1
      %v1245 = vsel %vm1207, %v1243, %v1244
      %v1246 = vrot.slane %v1168, 1
      %v1247 = vsel %vm1207, %v1244, %v1246
      %v1248 = vrot.slane %v1153, 1
      %v1249 = vrot.slane %v1044, 1
      %v1250 = vsel %vm1207, %v1248, %v1249
      %v1251 = vrot.slane %v1169, 1
      %v1252 = vsel %vm1207, %v1249, %v1251
      %v1253 = vrot.slane %v1154, 1
      %v1254 = vrot.slane %v1047, 1
      %v1255 = vsel %vm1207, %v1253, %v1254
      %v1256 = vrot.slane %v1170, 1
      %v1257 = vsel %vm1207, %v1254, %v1256
      %v1258 = vrot.slane %v1155, 1
      %v1259 = vrot.slane %v1050, 1
      %v1260 = vsel %vm1207, %v1258, %v1259
      %v1261 = vrot.slane %v1171, 1
      %v1262 = vsel %vm1207, %v1259, %v1261
      %v1263 = vrot.slane %v1156, 1
      %v1264 = vrot.slane %v1053, 1
      %v1265 = vsel %vm1207, %v1263, %v1264
      %v1266 = vrot.slane %v1172, 1
      %v1267 = vsel %vm1207, %v1264, %v1266
      %v1268 = vrot.slane %v1157, 1
      %v1269 = vrot.slane %v1056, 1
      %v1270 = vsel %vm1207, %v1268, %v1269
      %v1271 = vrot.slane %v1173, 1
      %v1272 = vsel %vm1207, %v1269, %v1271
      %v1273 = vrot.slane %v1158, 1
      %v1274 = vrot.slane %v1059, 1
      %v1275 = vsel %vm1207, %v1273, %v1274
      %v1276 = vrot.slane %v1174, 1
      %v1277 = vsel %vm1207, %v1274, %v1276
      %v1278 = vrot.slane %v1159, 1
      %v1279 = vrot.slane %v1062, 1
      %v1280 = vsel %vm1207, %v1278, %v1279
      %v1281 = vrot.slane %v1175, 1
      %v1282 = vsel %vm1207, %v1279, %v1281
      %vm1283 = vcmask 1045504
      %v1284 = vrot.slane %v1145, 2
      %v1285 = vrot.slane %v1020, 2
      %v1286 = vsel %vm1283, %v1284, %v1285
      %v1287 = vrot.slane %v1161, 2
      %v1288 = vsel %vm1283, %v1285, %v1287
      %v1289 = vrot.slane %v1146, 2
      %v1290 = vrot.slane %v1023, 2
      %v1291 = vsel %vm1283, %v1289, %v1290
      %v1292 = vrot.slane %v1162, 2
      %v1293 = vsel %vm1283, %v1290, %v1292
      %v1294 = vrot.slane %v1147, 2
      %v1295 = vrot.slane %v1026, 2
      %v1296 = vsel %vm1283, %v1294, %v1295
      %v1297 = vrot.slane %v1163, 2
      %v1298 = vsel %vm1283, %v1295, %v1297
      %v1299 = vrot.slane %v1148, 2
      %v1300 = vrot.slane %v1029, 2
      %v1301 = vsel %vm1283, %v1299, %v1300
      %v1302 = vrot.slane %v1164, 2
      %v1303 = vsel %vm1283, %v1300, %v1302
      %v1304 = vrot.slane %v1149, 2
      %v1305 = vrot.slane %v1032, 2
      %v1306 = vsel %vm1283, %v1304, %v1305
      %v1307 = vrot.slane %v1165, 2
      %v1308 = vsel %vm1283, %v1305, %v1307
      %v1309 = vrot.slane %v1150, 2
      %v1310 = vrot.slane %v1035, 2
      %v1311 = vsel %vm1283, %v1309, %v1310
      %v1312 = vrot.slane %v1166, 2
      %v1313 = vsel %vm1283, %v1310, %v1312
      %v1314 = vrot.slane %v1151, 2
      %v1315 = vrot.slane %v1038, 2
      %v1316 = vsel %vm1283, %v1314, %v1315
      %v1317 = vrot.slane %v1167, 2
      %v1318 = vsel %vm1283, %v1315, %v1317
      %v1319 = vrot.slane %v1152, 2
      %v1320 = vrot.slane %v1041, 2
      %v1321 = vsel %vm1283, %v1319, %v1320
      %v1322 = vrot.slane %v1168, 2
      %v1323 = vsel %vm1283, %v1320, %v1322
      %v1324 = vrot.slane %v1153, 2
      %v1325 = vrot.slane %v1044, 2
      %v1326 = vsel %vm1283, %v1324, %v1325
      %v1327 = vrot.slane %v1169, 2
      %v1328 = vsel %vm1283, %v1325, %v1327
      %v1329 = vrot.slane %v1154, 2
      %v1330 = vrot.slane %v1047, 2
      %v1331 = vsel %vm1283, %v1329, %v1330
      %v1332 = vrot.slane %v1170, 2
      %v1333 = vsel %vm1283, %v1330, %v1332
      %v1334 = vrot.slane %v1155, 2
      %v1335 = vrot.slane %v1050, 2
      %v1336 = vsel %vm1283, %v1334, %v1335
      %v1337 = vrot.slane %v1171, 2
      %v1338 = vsel %vm1283, %v1335, %v1337
      %v1339 = vrot.slane %v1156, 2
      %v1340 = vrot.slane %v1053, 2
      %v1341 = vsel %vm1283, %v1339, %v1340
      %v1342 = vrot.slane %v1172, 2
      %v1343 = vsel %vm1283, %v1340, %v1342
      %v1344 = vrot.slane %v1157, 2
      %v1345 = vrot.slane %v1056, 2
      %v1346 = vsel %vm1283, %v1344, %v1345
      %v1347 = vrot.slane %v1173, 2
      %v1348 = vsel %vm1283, %v1345, %v1347
      %v1349 = vrot.slane %v1158, 2
      %v1350 = vrot.slane %v1059, 2
      %v1351 = vsel %vm1283, %v1349, %v1350
      %v1352 = vrot.slane %v1174, 2
      %v1353 = vsel %vm1283, %v1350, %v1352
      %v1354 = vrot.slane %v1159, 2
      %v1355 = vrot.slane %v1062, 2
      %v1356 = vsel %vm1283, %v1354, %v1355
      %v1357 = vrot.slane %v1175, 2
      %v1358 = vsel %vm1283, %v1355, %v1357
      %v1361 = vrot.slane %v1160, 1
      %v1362 = vrot.slane %v1065, 1
      %v1363 = vsel %vm1207, %v1361, %v1362
      %v1364 = vrot.slane %v1176, 1
      %v1365 = vsel %vm1207, %v1362, %v1364
      %v1398 = vrot.slane %v1160, 2
      %v1399 = vrot.slane %v1065, 2
      %v1400 = vsel %vm1283, %v1398, %v1399
      %v1401 = vrot.slane %v1176, 2
      %v1402 = vsel %vm1283, %v1399, %v1401
      %1433 = vrot.lane.b32.xlu0 %v1210, 32
      %v1434 = vpop.permute.xlu0 %1433
      %1435 = vrot.lane.b32.xlu0 %v1212, 32
      %v1436 = vpop.permute.xlu0 %1435
      %1437 = vrot.lane.b32.xlu0 %v1215, 32
      %v1438 = vpop.permute.xlu0 %1437
      %1439 = vrot.lane.b32.xlu0 %v1217, 32
      %v1440 = vpop.permute.xlu0 %1439
      %1441 = vrot.lane.b32.xlu0 %v1220, 32
      %v1442 = vpop.permute.xlu0 %1441
      %1443 = vrot.lane.b32.xlu0 %v1222, 32
      %v1444 = vpop.permute.xlu0 %1443
      %1445 = vrot.lane.b32.xlu0 %v1225, 32
      %v1446 = vpop.permute.xlu0 %1445
      %1447 = vrot.lane.b32.xlu0 %v1227, 32
      %v1448 = vpop.permute.xlu0 %1447
      %1449 = vrot.lane.b32.xlu0 %v1230, 32
      %v1450 = vpop.permute.xlu0 %1449
      %1451 = vrot.lane.b32.xlu0 %v1232, 32
      %v1452 = vpop.permute.xlu0 %1451
      %1453 = vrot.lane.b32.xlu0 %v1235, 32
      %v1454 = vpop.permute.xlu0 %1453
      %1455 = vrot.lane.b32.xlu0 %v1237, 32
      %v1456 = vpop.permute.xlu0 %1455
      %1457 = vrot.lane.b32.xlu0 %v1240, 32
      %v1458 = vpop.permute.xlu0 %1457
      %1459 = vrot.lane.b32.xlu0 %v1242, 32
      %v1460 = vpop.permute.xlu0 %1459
      %1461 = vrot.lane.b32.xlu0 %v1245, 32
      %v1462 = vpop.permute.xlu0 %1461
      %1463 = vrot.lane.b32.xlu0 %v1247, 32
      %v1464 = vpop.permute.xlu0 %1463
      %1465 = vrot.lane.b32.xlu0 %v1250, 32
      %v1466 = vpop.permute.xlu0 %1465
      %1467 = vrot.lane.b32.xlu0 %v1252, 32
      %v1468 = vpop.permute.xlu0 %1467
      %1469 = vrot.lane.b32.xlu0 %v1255, 32
      %v1470 = vpop.permute.xlu0 %1469
      %1471 = vrot.lane.b32.xlu0 %v1257, 32
      %v1472 = vpop.permute.xlu0 %1471
      %1473 = vrot.lane.b32.xlu0 %v1260, 32
      %v1474 = vpop.permute.xlu0 %1473
      %1475 = vrot.lane.b32.xlu0 %v1262, 32
      %v1476 = vpop.permute.xlu0 %1475
      %1477 = vrot.lane.b32.xlu0 %v1265, 32
      %v1478 = vpop.permute.xlu0 %1477
      %1479 = vrot.lane.b32.xlu0 %v1267, 32
      %v1480 = vpop.permute.xlu0 %1479
      %1481 = vrot.lane.b32.xlu0 %v1270, 32
      %v1482 = vpop.permute.xlu0 %1481
      %1483 = vrot.lane.b32.xlu0 %v1272, 32
      %v1484 = vpop.permute.xlu0 %1483
      %1485 = vrot.lane.b32.xlu0 %v1275, 32
      %v1486 = vpop.permute.xlu0 %1485
      %1487 = vrot.lane.b32.xlu0 %v1277, 32
      %v1488 = vpop.permute.xlu0 %1487
      %1489 = vrot.lane.b32.xlu0 %v1280, 32
      %v1490 = vpop.permute.xlu0 %1489
      %1491 = vrot.lane.b32.xlu0 %v1282, 32
      %v1492 = vpop.permute.xlu0 %1491
      %1523 = vrot.lane.b32.xlu0 %v1286, 64
      %v1524 = vpop.permute.xlu0 %1523
      %1525 = vrot.lane.b32.xlu0 %v1288, 64
      %v1526 = vpop.permute.xlu0 %1525
      %1527 = vrot.lane.b32.xlu0 %v1291, 64
      %v1528 = vpop.permute.xlu0 %1527
      %1529 = vrot.lane.b32.xlu0 %v1293, 64
      %v1530 = vpop.permute.xlu0 %1529
      %1531 = vrot.lane.b32.xlu0 %v1296, 64
      %v1532 = vpop.permute.xlu0 %1531
      %1533 = vrot.lane.b32.xlu0 %v1298, 64
      %v1534 = vpop.permute.xlu0 %1533
      %1535 = vrot.lane.b32.xlu0 %v1301, 64
      %v1536 = vpop.permute.xlu0 %1535
      %1537 = vrot.lane.b32.xlu0 %v1303, 64
      %v1538 = vpop.permute.xlu0 %1537
      %1539 = vrot.lane.b32.xlu0 %v1306, 64
      %v1540 = vpop.permute.xlu0 %1539
      %1541 = vrot.lane.b32.xlu0 %v1308, 64
      %v1542 = vpop.permute.xlu0 %1541
      %1543 = vrot.lane.b32.xlu0 %v1311, 64
      %v1544 = vpop.permute.xlu0 %1543
      %1545 = vrot.lane.b32.xlu0 %v1313, 64
      %v1546 = vpop.permute.xlu0 %1545
      %1547 = vrot.lane.b32.xlu0 %v1316, 64
      %v1548 = vpop.permute.xlu0 %1547
      %1549 = vrot.lane.b32.xlu0 %v1318, 64
      %v1550 = vpop.permute.xlu0 %1549
      %1551 = vrot.lane.b32.xlu0 %v1321, 64
      %v1552 = vpop.permute.xlu0 %1551
      %1553 = vrot.lane.b32.xlu0 %v1323, 64
      %v1554 = vpop.permute.xlu0 %1553
      %1555 = vrot.lane.b32.xlu0 %v1326, 64
      %v1556 = vpop.permute.xlu0 %1555
      %1557 = vrot.lane.b32.xlu0 %v1328, 64
      %v1558 = vpop.permute.xlu0 %1557
      %1559 = vrot.lane.b32.xlu0 %v1331, 64
      %v1560 = vpop.permute.xlu0 %1559
      %1561 = vrot.lane.b32.xlu0 %v1333, 64
      %v1562 = vpop.permute.xlu0 %1561
      %1563 = vrot.lane.b32.xlu0 %v1336, 64
      %v1564 = vpop.permute.xlu0 %1563
      %1565 = vrot.lane.b32.xlu0 %v1338, 64
      %v1566 = vpop.permute.xlu0 %1565
      %1567 = vrot.lane.b32.xlu0 %v1341, 64
      %v1568 = vpop.permute.xlu0 %1567
      %1569 = vrot.lane.b32.xlu0 %v1343, 64
      %v1570 = vpop.permute.xlu0 %1569
      %1571 = vrot.lane.b32.xlu0 %v1346, 64
      %v1572 = vpop.permute.xlu0 %1571
      %1573 = vrot.lane.b32.xlu0 %v1348, 64
      %v1574 = vpop.permute.xlu0 %1573
      %1575 = vrot.lane.b32.xlu0 %v1351, 64
      %v1576 = vpop.permute.xlu0 %1575
      %1577 = vrot.lane.b32.xlu0 %v1353, 64
      %v1578 = vpop.permute.xlu0 %1577
      %1579 = vrot.lane.b32.xlu0 %v1356, 64
      %v1580 = vpop.permute.xlu0 %1579
      %1581 = vrot.lane.b32.xlu0 %v1358, 64
      %v1582 = vpop.permute.xlu0 %1581
      %1613 = vrot.lane.b32.xlu0 %v1145, 96
      %v1614 = vpop.permute.xlu0 %1613
      %1615 = vrot.lane.b32.xlu0 %v1020, 96
      %v1616 = vpop.permute.xlu0 %1615
      %1617 = vrot.lane.b32.xlu0 %v1146, 96
      %v1618 = vpop.permute.xlu0 %1617
      %1619 = vrot.lane.b32.xlu0 %v1023, 96
      %v1620 = vpop.permute.xlu0 %1619
      %1621 = vrot.lane.b32.xlu0 %v1147, 96
      %v1622 = vpop.permute.xlu0 %1621
      %1623 = vrot.lane.b32.xlu0 %v1026, 96
      %v1624 = vpop.permute.xlu0 %1623
      %1625 = vrot.lane.b32.xlu0 %v1148, 96
      %v1626 = vpop.permute.xlu0 %1625
      %1627 = vrot.lane.b32.xlu0 %v1029, 96
      %v1628 = vpop.permute.xlu0 %1627
      %1629 = vrot.lane.b32.xlu0 %v1149, 96
      %v1630 = vpop.permute.xlu0 %1629
      %1631 = vrot.lane.b32.xlu0 %v1032, 96
      %v1632 = vpop.permute.xlu0 %1631
      %1633 = vrot.lane.b32.xlu0 %v1150, 96
      %v1634 = vpop.permute.xlu0 %1633
      %1635 = vrot.lane.b32.xlu0 %v1035, 96
      %v1636 = vpop.permute.xlu0 %1635
      %1637 = vrot.lane.b32.xlu0 %v1151, 96
      %v1638 = vpop.permute.xlu0 %1637
      %1639 = vrot.lane.b32.xlu0 %v1038, 96
      %v1640 = vpop.permute.xlu0 %1639
      %1641 = vrot.lane.b32.xlu0 %v1152, 96
      %v1642 = vpop.permute.xlu0 %1641
      %1643 = vrot.lane.b32.xlu0 %v1041, 96
      %v1644 = vpop.permute.xlu0 %1643
      %1645 = vrot.lane.b32.xlu0 %v1153, 96
      %v1646 = vpop.permute.xlu0 %1645
      %1647 = vrot.lane.b32.xlu0 %v1044, 96
      %v1648 = vpop.permute.xlu0 %1647
      %1649 = vrot.lane.b32.xlu0 %v1154, 96
      %v1650 = vpop.permute.xlu0 %1649
      %1651 = vrot.lane.b32.xlu0 %v1047, 96
      %v1652 = vpop.permute.xlu0 %1651
      %1653 = vrot.lane.b32.xlu0 %v1155, 96
      %v1654 = vpop.permute.xlu0 %1653
      %1655 = vrot.lane.b32.xlu0 %v1050, 96
      %v1656 = vpop.permute.xlu0 %1655
      %1657 = vrot.lane.b32.xlu0 %v1156, 96
      %v1658 = vpop.permute.xlu0 %1657
      %1659 = vrot.lane.b32.xlu0 %v1053, 96
      %v1660 = vpop.permute.xlu0 %1659
      %1661 = vrot.lane.b32.xlu0 %v1157, 96
      %v1662 = vpop.permute.xlu0 %1661
      %1663 = vrot.lane.b32.xlu0 %v1056, 96
      %v1664 = vpop.permute.xlu0 %1663
      %1665 = vrot.lane.b32.xlu0 %v1158, 96
      %v1666 = vpop.permute.xlu0 %1665
      %1667 = vrot.lane.b32.xlu0 %v1059, 96
      %v1668 = vpop.permute.xlu0 %1667
      %1669 = vrot.lane.b32.xlu0 %v1159, 96
      %v1670 = vpop.permute.xlu0 %1669
      %1671 = vrot.lane.b32.xlu0 %v1062, 96
      %v1672 = vpop.permute.xlu0 %1671
      %1673 = vrot.lane.b32.xlu0 %v1160, 96
      %v1674 = vpop.permute.xlu0 %1673
      %1675 = vrot.lane.b32.xlu0 %v1065, 96
      %v1676 = vpop.permute.xlu0 %1675
      %1709 = vrot.lane.b32.xlu0 %v1286, 32
      %v1710 = vpop.permute.xlu0 %1709
      %1711 = vrot.lane.b32.xlu0 %v1288, 32
      %v1712 = vpop.permute.xlu0 %1711
      %1713 = vrot.lane.b32.xlu0 %v1291, 32
      %v1714 = vpop.permute.xlu0 %1713
      %1715 = vrot.lane.b32.xlu0 %v1293, 32
      %v1716 = vpop.permute.xlu0 %1715
      %1717 = vrot.lane.b32.xlu0 %v1296, 32
      %v1718 = vpop.permute.xlu0 %1717
      %1719 = vrot.lane.b32.xlu0 %v1298, 32
      %v1720 = vpop.permute.xlu0 %1719
      %1721 = vrot.lane.b32.xlu0 %v1301, 32
      %v1722 = vpop.permute.xlu0 %1721
      %1723 = vrot.lane.b32.xlu0 %v1303, 32
      %v1724 = vpop.permute.xlu0 %1723
      %1725 = vrot.lane.b32.xlu0 %v1306, 32
      %v1726 = vpop.permute.xlu0 %1725
      %1727 = vrot.lane.b32.xlu0 %v1308, 32
      %v1728 = vpop.permute.xlu0 %1727
      %1729 = vrot.lane.b32.xlu0 %v1311, 32
      %v1730 = vpop.permute.xlu0 %1729
      %1731 = vrot.lane.b32.xlu0 %v1313, 32
      %v1732 = vpop.permute.xlu0 %1731
      %1733 = vrot.lane.b32.xlu0 %v1316, 32
      %v1734 = vpop.permute.xlu0 %1733
      %1735 = vrot.lane.b32.xlu0 %v1318, 32
      %v1736 = vpop.permute.xlu0 %1735
      %1737 = vrot.lane.b32.xlu0 %v1321, 32
      %v1738 = vpop.permute.xlu0 %1737
      %1739 = vrot.lane.b32.xlu0 %v1323, 32
      %v1740 = vpop.permute.xlu0 %1739
      %1741 = vrot.lane.b32.xlu0 %v1326, 32
      %v1742 = vpop.permute.xlu0 %1741
      %1743 = vrot.lane.b32.xlu0 %v1328, 32
      %v1744 = vpop.permute.xlu0 %1743
      %1745 = vrot.lane.b32.xlu0 %v1331, 32
      %v1746 = vpop.permute.xlu0 %1745
      %1747 = vrot.lane.b32.xlu0 %v1333, 32
      %v1748 = vpop.permute.xlu0 %1747
      %1749 = vrot.lane.b32.xlu0 %v1336, 32
      %v1750 = vpop.permute.xlu0 %1749
      %1751 = vrot.lane.b32.xlu0 %v1338, 32
      %v1752 = vpop.permute.xlu0 %1751
      %1753 = vrot.lane.b32.xlu0 %v1341, 32
      %v1754 = vpop.permute.xlu0 %1753
      %1755 = vrot.lane.b32.xlu0 %v1343, 32
      %v1756 = vpop.permute.xlu0 %1755
      %1757 = vrot.lane.b32.xlu0 %v1346, 32
      %v1758 = vpop.permute.xlu0 %1757
      %1759 = vrot.lane.b32.xlu0 %v1348, 32
      %v1760 = vpop.permute.xlu0 %1759
      %1761 = vrot.lane.b32.xlu0 %v1351, 32
      %v1762 = vpop.permute.xlu0 %1761
      %1763 = vrot.lane.b32.xlu0 %v1353, 32
      %v1764 = vpop.permute.xlu0 %1763
      %1765 = vrot.lane.b32.xlu0 %v1356, 32
      %v1766 = vpop.permute.xlu0 %1765
      %1767 = vrot.lane.b32.xlu0 %v1358, 32
      %v1768 = vpop.permute.xlu0 %1767
      %1769 = vrot.lane.b32.xlu0 %v1400, 32
      %v1770 = vpop.permute.xlu0 %1769
      %1771 = vrot.lane.b32.xlu0 %v1402, 32
      %v1772 = vpop.permute.xlu0 %1771
      %1805 = vrot.lane.b32.xlu0 %v1146, 64
      %v1806 = vpop.permute.xlu0 %1805
      %1807 = vrot.lane.b32.xlu0 %v1023, 64
      %v1808 = vpop.permute.xlu0 %1807
      %1809 = vrot.lane.b32.xlu0 %v1147, 64
      %v1810 = vpop.permute.xlu0 %1809
      %1811 = vrot.lane.b32.xlu0 %v1026, 64
      %v1812 = vpop.permute.xlu0 %1811
      %1813 = vrot.lane.b32.xlu0 %v1148, 64
      %v1814 = vpop.permute.xlu0 %1813
      %1815 = vrot.lane.b32.xlu0 %v1029, 64
      %v1816 = vpop.permute.xlu0 %1815
      %1817 = vrot.lane.b32.xlu0 %v1149, 64
      %v1818 = vpop.permute.xlu0 %1817
      %1819 = vrot.lane.b32.xlu0 %v1032, 64
      %v1820 = vpop.permute.xlu0 %1819
      %1821 = vrot.lane.b32.xlu0 %v1150, 64
      %v1822 = vpop.permute.xlu0 %1821
      %1823 = vrot.lane.b32.xlu0 %v1035, 64
      %v1824 = vpop.permute.xlu0 %1823
      %1825 = vrot.lane.b32.xlu0 %v1151, 64
      %v1826 = vpop.permute.xlu0 %1825
      %1827 = vrot.lane.b32.xlu0 %v1038, 64
      %v1828 = vpop.permute.xlu0 %1827
      %1829 = vrot.lane.b32.xlu0 %v1152, 64
      %v1830 = vpop.permute.xlu0 %1829
      %1831 = vrot.lane.b32.xlu0 %v1041, 64
      %v1832 = vpop.permute.xlu0 %1831
      %1833 = vrot.lane.b32.xlu0 %v1153, 64
      %v1834 = vpop.permute.xlu0 %1833
      %1835 = vrot.lane.b32.xlu0 %v1044, 64
      %v1836 = vpop.permute.xlu0 %1835
      %1837 = vrot.lane.b32.xlu0 %v1154, 64
      %v1838 = vpop.permute.xlu0 %1837
      %1839 = vrot.lane.b32.xlu0 %v1047, 64
      %v1840 = vpop.permute.xlu0 %1839
      %1841 = vrot.lane.b32.xlu0 %v1155, 64
      %v1842 = vpop.permute.xlu0 %1841
      %1843 = vrot.lane.b32.xlu0 %v1050, 64
      %v1844 = vpop.permute.xlu0 %1843
      %1845 = vrot.lane.b32.xlu0 %v1156, 64
      %v1846 = vpop.permute.xlu0 %1845
      %1847 = vrot.lane.b32.xlu0 %v1053, 64
      %v1848 = vpop.permute.xlu0 %1847
      %1849 = vrot.lane.b32.xlu0 %v1157, 64
      %v1850 = vpop.permute.xlu0 %1849
      %1851 = vrot.lane.b32.xlu0 %v1056, 64
      %v1852 = vpop.permute.xlu0 %1851
      %1853 = vrot.lane.b32.xlu0 %v1158, 64
      %v1854 = vpop.permute.xlu0 %1853
      %1855 = vrot.lane.b32.xlu0 %v1059, 64
      %v1856 = vpop.permute.xlu0 %1855
      %1857 = vrot.lane.b32.xlu0 %v1159, 64
      %v1858 = vpop.permute.xlu0 %1857
      %1859 = vrot.lane.b32.xlu0 %v1062, 64
      %v1860 = vpop.permute.xlu0 %1859
      %1861 = vrot.lane.b32.xlu0 %v1160, 64
      %v1862 = vpop.permute.xlu0 %1861
      %1863 = vrot.lane.b32.xlu0 %v1065, 64
      %v1864 = vpop.permute.xlu0 %1863
      %1895 = vrot.lane.b32.xlu0 %v1215, 96
      %v1896 = vpop.permute.xlu0 %1895
      %1897 = vrot.lane.b32.xlu0 %v1217, 96
      %v1898 = vpop.permute.xlu0 %1897
      %1899 = vrot.lane.b32.xlu0 %v1220, 96
      %v1900 = vpop.permute.xlu0 %1899
      %1901 = vrot.lane.b32.xlu0 %v1222, 96
      %v1902 = vpop.permute.xlu0 %1901
      %1903 = vrot.lane.b32.xlu0 %v1225, 96
      %v1904 = vpop.permute.xlu0 %1903
      %1905 = vrot.lane.b32.xlu0 %v1227, 96
      %v1906 = vpop.permute.xlu0 %1905
      %1907 = vrot.lane.b32.xlu0 %v1230, 96
      %v1908 = vpop.permute.xlu0 %1907
      %1909 = vrot.lane.b32.xlu0 %v1232, 96
      %v1910 = vpop.permute.xlu0 %1909
      %1911 = vrot.lane.b32.xlu0 %v1235, 96
      %v1912 = vpop.permute.xlu0 %1911
      %1913 = vrot.lane.b32.xlu0 %v1237, 96
      %v1914 = vpop.permute.xlu0 %1913
      %1915 = vrot.lane.b32.xlu0 %v1240, 96
      %v1916 = vpop.permute.xlu0 %1915
      %1917 = vrot.lane.b32.xlu0 %v1242, 96
      %v1918 = vpop.permute.xlu0 %1917
      %1919 = vrot.lane.b32.xlu0 %v1245, 96
      %v1920 = vpop.permute.xlu0 %1919
      %1921 = vrot.lane.b32.xlu0 %v1247, 96
      %v1922 = vpop.permute.xlu0 %1921
      %1923 = vrot.lane.b32.xlu0 %v1250, 96
      %v1924 = vpop.permute.xlu0 %1923
      %1925 = vrot.lane.b32.xlu0 %v1252, 96
      %v1926 = vpop.permute.xlu0 %1925
      %1927 = vrot.lane.b32.xlu0 %v1255, 96
      %v1928 = vpop.permute.xlu0 %1927
      %1929 = vrot.lane.b32.xlu0 %v1257, 96
      %v1930 = vpop.permute.xlu0 %1929
      %1931 = vrot.lane.b32.xlu0 %v1260, 96
      %v1932 = vpop.permute.xlu0 %1931
      %1933 = vrot.lane.b32.xlu0 %v1262, 96
      %v1934 = vpop.permute.xlu0 %1933
      %1935 = vrot.lane.b32.xlu0 %v1265, 96
      %v1936 = vpop.permute.xlu0 %1935
      %1937 = vrot.lane.b32.xlu0 %v1267, 96
      %v1938 = vpop.permute.xlu0 %1937
      %1939 = vrot.lane.b32.xlu0 %v1270, 96
      %v1940 = vpop.permute.xlu0 %1939
      %1941 = vrot.lane.b32.xlu0 %v1272, 96
      %v1942 = vpop.permute.xlu0 %1941
      %1943 = vrot.lane.b32.xlu0 %v1275, 96
      %v1944 = vpop.permute.xlu0 %1943
      %1945 = vrot.lane.b32.xlu0 %v1277, 96
      %v1946 = vpop.permute.xlu0 %1945
      %1947 = vrot.lane.b32.xlu0 %v1280, 96
      %v1948 = vpop.permute.xlu0 %1947
      %1949 = vrot.lane.b32.xlu0 %v1282, 96
      %v1950 = vpop.permute.xlu0 %1949
      %1951 = vrot.lane.b32.xlu0 %v1363, 96
      %v1952 = vpop.permute.xlu0 %1951
      %1953 = vrot.lane.b32.xlu0 %v1365, 96
      %v1954 = vpop.permute.xlu0 %1953
      %v1985 = vsel %vm538, %v1145, %v1434
      %v1986 = vsel %vm538, %v1020, %v1436
      %v1987 = vsel %vm538, %v1146, %v1438
      %v1988 = vsel %vm538, %v1023, %v1440
      %v1989 = vsel %vm538, %v1147, %v1442
      %v1990 = vsel %vm538, %v1026, %v1444
      %v1991 = vsel %vm538, %v1148, %v1446
      %v1992 = vsel %vm538, %v1029, %v1448
      %v1993 = vsel %vm538, %v1149, %v1450
      %v1994 = vsel %vm538, %v1032, %v1452
      %v1995 = vsel %vm538, %v1150, %v1454
      %v1996 = vsel %vm538, %v1035, %v1456
      %v1997 = vsel %vm538, %v1151, %v1458
      %v1998 = vsel %vm538, %v1038, %v1460
      %v1999 = vsel %vm538, %v1152, %v1462
      %v2000 = vsel %vm538, %v1041, %v1464
      %v2001 = vsel %vm538, %v1153, %v1466
      %v2002 = vsel %vm538, %v1044, %v1468
      %v2003 = vsel %vm538, %v1154, %v1470
      %v2004 = vsel %vm538, %v1047, %v1472
      %v2005 = vsel %vm538, %v1155, %v1474
      %v2006 = vsel %vm538, %v1050, %v1476
      %v2007 = vsel %vm538, %v1156, %v1478
      %v2008 = vsel %vm538, %v1053, %v1480
      %v2009 = vsel %vm538, %v1157, %v1482
      %v2010 = vsel %vm538, %v1056, %v1484
      %v2011 = vsel %vm538, %v1158, %v1486
      %v2012 = vsel %vm538, %v1059, %v1488
      %v2013 = vsel %vm538, %v1159, %v1490
      %v2014 = vsel %vm538, %v1062, %v1492
      %vm2015 = vcmask 523264
      %v2016 = vsel %vm2015, %v1985, %v1524
      %v2017 = vsel %vm2015, %v1986, %v1526
      %v2018 = vsel %vm2015, %v1987, %v1528
      %v2019 = vsel %vm2015, %v1988, %v1530
      %v2020 = vsel %vm2015, %v1989, %v1532
      %v2021 = vsel %vm2015, %v1990, %v1534
      %v2022 = vsel %vm2015, %v1991, %v1536
      %v2023 = vsel %vm2015, %v1992, %v1538
      %v2024 = vsel %vm2015, %v1993, %v1540
      %v2025 = vsel %vm2015, %v1994, %v1542
      %v2026 = vsel %vm2015, %v1995, %v1544
      %v2027 = vsel %vm2015, %v1996, %v1546
      %v2028 = vsel %vm2015, %v1997, %v1548
      %v2029 = vsel %vm2015, %v1998, %v1550
      %v2030 = vsel %vm2015, %v1999, %v1552
      %v2031 = vsel %vm2015, %v2000, %v1554
      %v2032 = vsel %vm2015, %v2001, %v1556
      %v2033 = vsel %vm2015, %v2002, %v1558
      %v2034 = vsel %vm2015, %v2003, %v1560
      %v2035 = vsel %vm2015, %v2004, %v1562
      %v2036 = vsel %vm2015, %v2005, %v1564
      %v2037 = vsel %vm2015, %v2006, %v1566
      %v2038 = vsel %vm2015, %v2007, %v1568
      %v2039 = vsel %vm2015, %v2008, %v1570
      %v2040 = vsel %vm2015, %v2009, %v1572
      %v2041 = vsel %vm2015, %v2010, %v1574
      %v2042 = vsel %vm2015, %v2011, %v1576
      %v2043 = vsel %vm2015, %v2012, %v1578
      %v2044 = vsel %vm2015, %v2013, %v1580
      %v2045 = vsel %vm2015, %v2014, %v1582
      %vm2046 = vcmask 785408
      %v2047 = vsel %vm2046, %v2016, %v1614
      %v2048 = vsel %vm2046, %v2017, %v1616
      %v2049 = vsel %vm2046, %v2016, %v1618
      %v2050 = vsel %vm2046, %v2017, %v1620
      %v2051 = vsel %vm2046, %v2018, %v1622
      %v2052 = vsel %vm2046, %v2019, %v1624
      %v2053 = vsel %vm2046, %v2020, %v1626
      %v2054 = vsel %vm2046, %v2021, %v1628
      %v2055 = vsel %vm2046, %v2022, %v1630
      %v2056 = vsel %vm2046, %v2023, %v1632
      %v2057 = vsel %vm2046, %v2024, %v1634
      %v2058 = vsel %vm2046, %v2025, %v1636
      %v2059 = vsel %vm2046, %v2026, %v1638
      %v2060 = vsel %vm2046, %v2027, %v1640
      %v2061 = vsel %vm2046, %v2028, %v1642
      %v2062 = vsel %vm2046, %v2029, %v1644
      %v2063 = vsel %vm2046, %v2030, %v1646
      %v2064 = vsel %vm2046, %v2031, %v1648
      %v2065 = vsel %vm2046, %v2032, %v1650
      %v2066 = vsel %vm2046, %v2033, %v1652
      %v2067 = vsel %vm2046, %v2034, %v1654
      %v2068 = vsel %vm2046, %v2035, %v1656
      %v2069 = vsel %vm2046, %v2036, %v1658
      %v2070 = vsel %vm2046, %v2037, %v1660
      %v2071 = vsel %vm2046, %v2038, %v1662
      %v2072 = vsel %vm2046, %v2039, %v1664
      %v2073 = vsel %vm2046, %v2040, %v1666
      %v2074 = vsel %vm2046, %v2041, %v1668
      %v2075 = vsel %vm2046, %v2042, %v1670
      %v2076 = vsel %vm2046, %v2043, %v1672
      %v2077 = vsel %vm2046, %v2044, %v1674
      %v2078 = vsel %vm2046, %v2045, %v1676
      %v2079 = vsel %vm538, %v1210, %v1710
      %v2080 = vsel %vm538, %v1212, %v1712
      %v2081 = vsel %vm538, %v1215, %v1714
      %v2082 = vsel %vm538, %v1217, %v1716
      %v2083 = vsel %vm538, %v1220, %v1718
      %v2084 = vsel %vm538, %v1222, %v1720
      %v2085 = vsel %vm538, %v1225, %v1722
      %v2086 = vsel %vm538, %v1227, %v1724
      %v2087 = vsel %vm538, %v1230, %v1726
      %v2088 = vsel %vm538, %v1232, %v1728
      %v2089 = vsel %vm538, %v1235, %v1730
      %v2090 = vsel %vm538, %v1237, %v1732
      %v2091 = vsel %vm538, %v1240, %v1734
      %v2092 = vsel %vm538, %v1242, %v1736
      %v2093 = vsel %vm538, %v1245, %v1738
      %v2094 = vsel %vm538, %v1247, %v1740
      %v2095 = vsel %vm538, %v1250, %v1742
      %v2096 = vsel %vm538, %v1252, %v1744
      %v2097 = vsel %vm538, %v1255, %v1746
      %v2098 = vsel %vm538, %v1257, %v1748
      %v2099 = vsel %vm538, %v1260, %v1750
      %v2100 = vsel %vm538, %v1262, %v1752
      %v2101 = vsel %vm538, %v1265, %v1754
      %v2102 = vsel %vm538, %v1267, %v1756
      %v2103 = vsel %vm538, %v1270, %v1758
      %v2104 = vsel %vm538, %v1272, %v1760
      %v2105 = vsel %vm538, %v1275, %v1762
      %v2106 = vsel %vm538, %v1277, %v1764
      %v2107 = vsel %vm538, %v1280, %v1766
      %v2108 = vsel %vm538, %v1282, %v1768
      %v2109 = vsel %vm538, %v1363, %v1770
      %v2110 = vsel %vm538, %v1365, %v1772
      %v2111 = vsel %vm2015, %v2079, %v1806
      %v2112 = vsel %vm2015, %v2080, %v1808
      %v2113 = vsel %vm2015, %v2081, %v1810
      %v2114 = vsel %vm2015, %v2082, %v1812
      %v2115 = vsel %vm2015, %v2083, %v1814
      %v2116 = vsel %vm2015, %v2084, %v1816
      %v2117 = vsel %vm2015, %v2085, %v1818
      %v2118 = vsel %vm2015, %v2086, %v1820
      %v2119 = vsel %vm2015, %v2087, %v1822
      %v2120 = vsel %vm2015, %v2088, %v1824
      %v2121 = vsel %vm2015, %v2089, %v1826
      %v2122 = vsel %vm2015, %v2090, %v1828
      %v2123 = vsel %vm2015, %v2091, %v1830
      %v2124 = vsel %vm2015, %v2092, %v1832
      %v2125 = vsel %vm2015, %v2093, %v1834
      %v2126 = vsel %vm2015, %v2094, %v1836
      %v2127 = vsel %vm2015, %v2095, %v1838
      %v2128 = vsel %vm2015, %v2096, %v1840
      %v2129 = vsel %vm2015, %v2097, %v1842
      %v2130 = vsel %vm2015, %v2098, %v1844
      %v2131 = vsel %vm2015, %v2099, %v1846
      %v2132 = vsel %vm2015, %v2100, %v1848
      %v2133 = vsel %vm2015, %v2101, %v1850
      %v2134 = vsel %vm2015, %v2102, %v1852
      %v2135 = vsel %vm2015, %v2103, %v1854
      %v2136 = vsel %vm2015, %v2104, %v1856
      %v2137 = vsel %vm2015, %v2105, %v1858
      %v2138 = vsel %vm2015, %v2106, %v1860
      %v2139 = vsel %vm2015, %v2107, %v1862
      %v2140 = vsel %vm2015, %v2108, %v1864
      %v2141 = vsel %vm2015, %v2109, %v1862
      %v2142 = vsel %vm2015, %v2110, %v1864
      %v2143 = vsel %vm2046, %v2111, %v1896
      %v2144 = vsel %vm2046, %v2112, %v1898
      %v2145 = vsel %vm2046, %v2113, %v1900
      %v2146 = vsel %vm2046, %v2114, %v1902
      %v2147 = vsel %vm2046, %v2115, %v1904
      %v2148 = vsel %vm2046, %v2116, %v1906
      %v2149 = vsel %vm2046, %v2117, %v1908
      %v2150 = vsel %vm2046, %v2118, %v1910
      %v2151 = vsel %vm2046, %v2119, %v1912
      %v2152 = vsel %vm2046, %v2120, %v1914
      %v2153 = vsel %vm2046, %v2121, %v1916
      %v2154 = vsel %vm2046, %v2122, %v1918
      %v2155 = vsel %vm2046, %v2123, %v1920
      %v2156 = vsel %vm2046, %v2124, %v1922
      %v2157 = vsel %vm2046, %v2125, %v1924
      %v2158 = vsel %vm2046, %v2126, %v1926
      %v2159 = vsel %vm2046, %v2127, %v1928
      %v2160 = vsel %vm2046, %v2128, %v1930
      %v2161 = vsel %vm2046, %v2129, %v1932
      %v2162 = vsel %vm2046, %v2130, %v1934
      %v2163 = vsel %vm2046, %v2131, %v1936
      %v2164 = vsel %vm2046, %v2132, %v1938
      %v2165 = vsel %vm2046, %v2133, %v1940
      %v2166 = vsel %vm2046, %v2134, %v1942
      %v2167 = vsel %vm2046, %v2135, %v1944
      %v2168 = vsel %vm2046, %v2136, %v1946
      %v2169 = vsel %vm2046, %v2137, %v1948
      %v2170 = vsel %vm2046, %v2138, %v1950
      %v2171 = vsel %vm2046, %v2139, %v1952
      %v2172 = vsel %vm2046, %v2140, %v1954
      %v2173 = vsel %vm2046, %v2141, %v1952
      %v2174 = vsel %vm2046, %v2142, %v1954
      %v2175 = vpack.c.bf16 %v2048, %v2047
      %v2176 = vpack.c.bf16 %v2144, %v2143
      %v2177 = vpack.c.bf16 %v1293, %v1291
      %v2178 = vpack.c.bf16 %v2050, %v2049
      %v2179 = vpack.c.bf16 %v2146, %v2145
      %v2180 = vpack.c.bf16 %v1298, %v1296
      %v2181 = vpack.c.bf16 %v2052, %v2051
      %v2182 = vpack.c.bf16 %v2148, %v2147
      %v2183 = vpack.c.bf16 %v1303, %v1301
      %v2184 = vpack.c.bf16 %v2054, %v2053
      %v2185 = vpack.c.bf16 %v2150, %v2149
      %v2186 = vpack.c.bf16 %v1308, %v1306
      %v2187 = vpack.c.bf16 %v2056, %v2055
      %v2188 = vpack.c.bf16 %v2152, %v2151
      %v2189 = vpack.c.bf16 %v1313, %v1311
      %v2190 = vpack.c.bf16 %v2058, %v2057
      %v2191 = vpack.c.bf16 %v2154, %v2153
      %v2192 = vpack.c.bf16 %v1318, %v1316
      %v2193 = vpack.c.bf16 %v2060, %v2059
      %v2194 = vpack.c.bf16 %v2156, %v2155
      %v2195 = vpack.c.bf16 %v1323, %v1321
      %v2196 = vpack.c.bf16 %v2062, %v2061
      %v2197 = vpack.c.bf16 %v2158, %v2157
      %v2198 = vpack.c.bf16 %v1328, %v1326
      %v2199 = vpack.c.bf16 %v2064, %v2063
      %v2200 = vpack.c.bf16 %v2160, %v2159
      %v2201 = vpack.c.bf16 %v1333, %v1331
      %v2202 = vpack.c.bf16 %v2066, %v2065
      %v2203 = vpack.c.bf16 %v2162, %v2161
      %v2204 = vpack.c.bf16 %v1338, %v1336
      %v2205 = vpack.c.bf16 %v2068, %v2067
      %v2206 = vpack.c.bf16 %v2164, %v2163
      %v2207 = vpack.c.bf16 %v1343, %v1341
      %v2208 = vpack.c.bf16 %v2070, %v2069
      %v2209 = vpack.c.bf16 %v2166, %v2165
      %v2210 = vpack.c.bf16 %v1348, %v1346
      %v2211 = vpack.c.bf16 %v2072, %v2071
      %v2212 = vpack.c.bf16 %v2168, %v2167
      %v2213 = vpack.c.bf16 %v1353, %v1351
      %v2214 = vpack.c.bf16 %v2074, %v2073
      %v2215 = vpack.c.bf16 %v2170, %v2169
      %v2216 = vpack.c.bf16 %v1358, %v1356
      %v2217 = vpack.c.bf16 %v2076, %v2075
      %v2218 = vpack.c.bf16 %v2172, %v2171
      %v2219 = vpack.c.bf16 %v1402, %v1400
      %v2220 = vpack.c.bf16 %v2078, %v2077
      %v2221 = vpack.c.bf16 %v2174, %v2173
      %v2222 = vld [vmem:[%s3] sm:$0xf]
      %v2223 = vld [vmem:[%s3 + $0x4] sm:$0xf]
      %v2224 = vld [vmem:[%s3 + $0x8] sm:$0xf]
      %v2225 = vld [vmem:[%s3 + $0xc] sm:$0xf]
      %v2226 = vld [vmem:[%s3 + $0x10] sm:$0xf]
      %v2227 = vld [vmem:[%s3 + $0x14] sm:$0xf]
      %v2228 = vld [vmem:[%s3 + $0x18] sm:$0xf]
      %v2229 = vld [vmem:[%s3 + $0x1c] sm:$0xf]
      %v2230 = vld [vmem:[%s3 + $0x20] sm:$0xf]
      %v2231 = vld [vmem:[%s3 + $0x24] sm:$0xf]
      %v2232 = vld [vmem:[%s3 + $0x28] sm:$0xf]
      %v2233 = vld [vmem:[%s3 + $0x2c] sm:$0xf]
      %v2234 = vld [vmem:[%s3 + $0x30] sm:$0xf]
      %v2235 = vld [vmem:[%s3 + $0x34] sm:$0xf]
      %v2236 = vld [vmem:[%s3 + $0x38] sm:$0xf]
      %v2237 = vld [vmem:[%s3 + $0x3c] sm:$0xf]
      %v2238 = vld [vmem:[%s3 + $0x40] sm:$0xf]
      %v2239 = vld [vmem:[%s3 + $0x44] sm:$0xf]
      %v2240 = vld [vmem:[%s3 + $0x48] sm:$0xf]
      %v2241 = vld [vmem:[%s3 + $0x4c] sm:$0xf]
      %v2242 = vld [vmem:[%s3 + $0x50] sm:$0xf]
      %v2243 = vld [vmem:[%s3 + $0x54] sm:$0xf]
      %v2244 = vld [vmem:[%s3 + $0x58] sm:$0xf]
      %v2245 = vld [vmem:[%s3 + $0x5c] sm:$0xf]
      %v2246 = vld [vmem:[%s3 + $0x60] sm:$0xf]
      %v2247 = vld [vmem:[%s3 + $0x64] sm:$0xf]
      %v2248 = vld [vmem:[%s3 + $0x68] sm:$0xf]
      %v2249 = vld [vmem:[%s3 + $0x6c] sm:$0xf]
      %v2250 = vld [vmem:[%s3 + $0x70] sm:$0xf]
      %v2251 = vld [vmem:[%s3 + $0x74] sm:$0xf]
      %v2252 = vld [vmem:[%s3 + $0x78] sm:$0xf]
      %v2253 = vld [vmem:[%s3 + $0x7c] sm:$0xf]
      %v2254 = vld [vmem:[%s3 + $0x80] sm:$0xf]
      %v2255 = vld [vmem:[%s3 + $0x84] sm:$0xf]
      %v2256 = vld [vmem:[%s3 + $0x88] sm:$0xf]
      %v2257 = vld [vmem:[%s3 + $0x8c] sm:$0xf]
      %v2258 = vld [vmem:[%s4] sm:$0x1]
      %v2260 = vperm.slane %v2258, 0
      %v2298 = vunpack.c.l.b16 %v2222
      %v2299 = vunpack.c.l.b16 %v2223
      %v2300 = vunpack.c.l.b16 %v2224
      %v2301 = vunpack.c.l.b16 %v2225
      %v2302 = vunpack.c.l.b16 %v2226
      %v2303 = vunpack.c.l.b16 %v2227
      %v2304 = vunpack.c.l.b16 %v2228
      %v2305 = vunpack.c.l.b16 %v2229
      %v2306 = vunpack.c.l.b16 %v2230
      %v2307 = vunpack.c.l.b16 %v2231
      %v2308 = vunpack.c.l.b16 %v2232
      %v2309 = vunpack.c.l.b16 %v2233
      %v2310 = vunpack.c.l.b16 %v2234
      %v2311 = vunpack.c.l.b16 %v2235
      %v2312 = vunpack.c.l.b16 %v2236
      %v2313 = vunpack.c.l.b16 %v2237
      %v2314 = vunpack.c.l.b16 %v2238
      %v2315 = vunpack.c.l.b16 %v2239
      %v2316 = vunpack.c.l.b16 %v2240
      %v2317 = vunpack.c.l.b16 %v2241
      %v2318 = vunpack.c.l.b16 %v2242
      %v2319 = vunpack.c.l.b16 %v2243
      %v2320 = vunpack.c.l.b16 %v2244
      %v2321 = vunpack.c.l.b16 %v2245
      %v2322 = vunpack.c.l.b16 %v2246
      %v2323 = vunpack.c.l.b16 %v2247
      %v2324 = vunpack.c.l.b16 %v2248
      %v2325 = vunpack.c.l.b16 %v2249
      %v2326 = vunpack.c.l.b16 %v2250
      %v2327 = vunpack.c.l.b16 %v2251
      %v2328 = vunpack.c.l.b16 %v2252
      %v2329 = vunpack.c.l.b16 %v2253
      %v2330 = vunpack.c.l.b16 %v2254
      %v2331 = vunpack.c.l.b16 %v2255
      %v2332 = vunpack.c.l.b16 %v2256
      %v2333 = vunpack.c.l.b16 %v2257
      %v2334 = vpack.c.b16 %v2299, %v2298
      %v2335 = vpack.c.b16 %v2301, %v2300
      %v2336 = vpack.c.b16 %v2303, %v2302
      %v2337 = vpack.c.b16 %v2305, %v2304
      %v2338 = vpack.c.b16 %v2307, %v2306
      %v2339 = vpack.c.b16 %v2309, %v2308
      %v2340 = vpack.c.b16 %v2311, %v2310
      %v2341 = vpack.c.b16 %v2313, %v2312
      %v2342 = vpack.c.b16 %v2315, %v2314
      %v2343 = vpack.c.b16 %v2317, %v2316
      %v2344 = vpack.c.b16 %v2319, %v2318
      %v2345 = vpack.c.b16 %v2321, %v2320
      %v2346 = vpack.c.b16 %v2323, %v2322
      %v2347 = vpack.c.b16 %v2325, %v2324
      %v2348 = vpack.c.b16 %v2327, %v2326
      %v2349 = vpack.c.b16 %v2329, %v2328
      %v2350 = vpack.c.b16 %v2331, %v2330
      %v2351 = vpack.c.b16 %v2333, %v2332
      %v2371 = vsel %vm538, %v2177, 0
      %v2374 = vsel %vm538, %v2180, 0
      %v2377 = vsel %vm538, %v2183, 0
      %v2380 = vsel %vm538, %v2186, 0
      %v2383 = vsel %vm538, %v2189, 0
      %v2386 = vsel %vm538, %v2192, 0
      %v2389 = vsel %vm538, %v2195, 0
      %v2392 = vsel %vm538, %v2198, 0
      %v2395 = vsel %vm538, %v2201, 0
      %v2398 = vsel %vm538, %v2204, 0
      %v2401 = vsel %vm538, %v2207, 0
      %v2404 = vsel %vm538, %v2210, 0
      %v2407 = vsel %vm538, %v2213, 0
      %v2410 = vsel %vm538, %v2216, 0
      %v2413 = vsel %vm538, %v2219, 0
      %2415 = vmatpush.bf16.msra.mxu0 %v2341
      %2416 = vmatpush.bf16.msra.mxu0 %v2340
      %2417 = vmatpush.bf16.msra.mxu0 %v2339
      %2418 = vmatpush.bf16.msra.mxu0 %v2338
      %2419 = vmatpush.bf16.msra.mxu0 %v2337
      %2420 = vmatpush.bf16.msra.mxu0 %v2336
      %2421 = vmatpush.bf16.msra.mxu0 %v2335
      %2422 = vmatpush.bf16.msra.mxu0 %v2334
      %2423 = vmatmul.bf16.gmra.mxu0 %v2175
      %v2424 = vpop.f32.mrf.mxu0
      %v2425 = vadd.f32 %v2260, %v2424
      %v2426 = vpop.f32.mrf.mxu0
      %v2427 = vadd.f32 %v2260, %v2426
      %2428 = vmatmul.bf16.gmra.mxu0 %v2178
      %v2429 = vpop.f32.mrf.mxu0
      %v2430 = vadd.f32 %v2260, %v2429
      %v2431 = vpop.f32.mrf.mxu0
      %v2432 = vadd.f32 %v2260, %v2431
      %2433 = vmatmul.bf16.gmra.mxu0 %v2181
      %v2434 = vpop.f32.mrf.mxu0
      %v2435 = vadd.f32 %v2260, %v2434
      %v2436 = vpop.f32.mrf.mxu0
      %v2437 = vadd.f32 %v2260, %v2436
      %2438 = vmatmul.bf16.gmra.mxu0 %v2184
      %v2439 = vpop.f32.mrf.mxu0
      %v2440 = vadd.f32 %v2260, %v2439
      %v2441 = vpop.f32.mrf.mxu0
      %v2442 = vadd.f32 %v2260, %v2441
      %2443 = vmatmul.bf16.gmra.mxu0 %v2187
      %v2444 = vpop.f32.mrf.mxu0
      %v2445 = vadd.f32 %v2260, %v2444
      %v2446 = vpop.f32.mrf.mxu0
      %v2447 = vadd.f32 %v2260, %v2446
      %2448 = vmatmul.bf16.gmra.mxu0 %v2190
      %v2449 = vpop.f32.mrf.mxu0
      %v2450 = vadd.f32 %v2260, %v2449
      %v2451 = vpop.f32.mrf.mxu0
      %v2452 = vadd.f32 %v2260, %v2451
      %2453 = vmatmul.bf16.gmra.mxu0 %v2193
      %v2454 = vpop.f32.mrf.mxu0
      %v2455 = vadd.f32 %v2260, %v2454
      %v2456 = vpop.f32.mrf.mxu0
      %v2457 = vadd.f32 %v2260, %v2456
      %2458 = vmatmul.bf16.gmra.mxu0 %v2196
      %v2459 = vpop.f32.mrf.mxu0
      %v2460 = vadd.f32 %v2260, %v2459
      %v2461 = vpop.f32.mrf.mxu0
      %v2462 = vadd.f32 %v2260, %v2461
      %2463 = vmatmul.bf16.gmra.mxu0 %v2199
      %v2464 = vpop.f32.mrf.mxu0
      %v2465 = vadd.f32 %v2260, %v2464
      %v2466 = vpop.f32.mrf.mxu0
      %v2467 = vadd.f32 %v2260, %v2466
      %2468 = vmatmul.bf16.gmra.mxu0 %v2202
      %v2469 = vpop.f32.mrf.mxu0
      %v2470 = vadd.f32 %v2260, %v2469
      %v2471 = vpop.f32.mrf.mxu0
      %v2472 = vadd.f32 %v2260, %v2471
      %2473 = vmatmul.bf16.gmra.mxu0 %v2205
      %v2474 = vpop.f32.mrf.mxu0
      %v2475 = vadd.f32 %v2260, %v2474
      %v2476 = vpop.f32.mrf.mxu0
      %v2477 = vadd.f32 %v2260, %v2476
      %2478 = vmatmul.bf16.gmra.mxu0 %v2208
      %v2479 = vpop.f32.mrf.mxu0
      %v2480 = vadd.f32 %v2260, %v2479
      %v2481 = vpop.f32.mrf.mxu0
      %v2482 = vadd.f32 %v2260, %v2481
      %2483 = vmatmul.bf16.gmra.mxu0 %v2211
      %v2484 = vpop.f32.mrf.mxu0
      %v2485 = vadd.f32 %v2260, %v2484
      %v2486 = vpop.f32.mrf.mxu0
      %v2487 = vadd.f32 %v2260, %v2486
      %2488 = vmatmul.bf16.gmra.mxu0 %v2214
      %v2489 = vpop.f32.mrf.mxu0
      %v2490 = vadd.f32 %v2260, %v2489
      %v2491 = vpop.f32.mrf.mxu0
      %v2492 = vadd.f32 %v2260, %v2491
      %2493 = vmatmul.bf16.gmra.mxu0 %v2217
      %v2494 = vpop.f32.mrf.mxu0
      %v2495 = vadd.f32 %v2260, %v2494
      %v2496 = vpop.f32.mrf.mxu0
      %v2497 = vadd.f32 %v2260, %v2496
      %2498 = vmatmul.bf16.gmra.mxu0 %v2220
      %v2499 = vpop.f32.mrf.mxu0
      %v2500 = vadd.f32 %v2260, %v2499
      %v2501 = vpop.f32.mrf.mxu0
      %v2502 = vadd.f32 %v2260, %v2501
      %2503 = vdwg.mxu0
      %2504 = vmatpush.bf16.msra.mxu0 %v2349
      %2505 = vmatpush.bf16.msra.mxu0 %v2348
      %2506 = vmatpush.bf16.msra.mxu0 %v2347
      %2507 = vmatpush.bf16.msra.mxu0 %v2346
      %2508 = vmatpush.bf16.msra.mxu0 %v2345
      %2509 = vmatpush.bf16.msra.mxu0 %v2344
      %2510 = vmatpush.bf16.msra.mxu0 %v2343
      %2511 = vmatpush.bf16.msra.mxu0 %v2342
      %2512 = vmatmul.bf16.gmra.mxu0 %v2176
      %v2513 = vpop.f32.mrf.mxu0
      %v2514 = vadd.f32 %v2425, %v2513
      %v2515 = vpop.f32.mrf.mxu0
      %v2516 = vadd.f32 %v2427, %v2515
      %2517 = vmatmul.bf16.gmra.mxu0 %v2179
      %v2518 = vpop.f32.mrf.mxu0
      %v2519 = vadd.f32 %v2430, %v2518
      %v2520 = vpop.f32.mrf.mxu0
      %v2521 = vadd.f32 %v2432, %v2520
      %2522 = vmatmul.bf16.gmra.mxu0 %v2182
      %v2523 = vpop.f32.mrf.mxu0
      %v2524 = vadd.f32 %v2435, %v2523
      %v2525 = vpop.f32.mrf.mxu0
      %v2526 = vadd.f32 %v2437, %v2525
      %2527 = vmatmul.bf16.gmra.mxu0 %v2185
      %v2528 = vpop.f32.mrf.mxu0
      %v2529 = vadd.f32 %v2440, %v2528
      %v2530 = vpop.f32.mrf.mxu0
      %v2531 = vadd.f32 %v2442, %v2530
      %2532 = vmatmul.bf16.gmra.mxu0 %v2188
      %v2533 = vpop.f32.mrf.mxu0
      %v2534 = vadd.f32 %v2445, %v2533
      %v2535 = vpop.f32.mrf.mxu0
      %v2536 = vadd.f32 %v2447, %v2535
      %2537 = vmatmul.bf16.gmra.mxu0 %v2191
      %v2538 = vpop.f32.mrf.mxu0
      %v2539 = vadd.f32 %v2450, %v2538
      %v2540 = vpop.f32.mrf.mxu0
      %v2541 = vadd.f32 %v2452, %v2540
      %2542 = vmatmul.bf16.gmra.mxu0 %v2194
      %v2543 = vpop.f32.mrf.mxu0
      %v2544 = vadd.f32 %v2455, %v2543
      %v2545 = vpop.f32.mrf.mxu0
      %v2546 = vadd.f32 %v2457, %v2545
      %2547 = vmatmul.bf16.gmra.mxu0 %v2197
      %v2548 = vpop.f32.mrf.mxu0
      %v2549 = vadd.f32 %v2460, %v2548
      %v2550 = vpop.f32.mrf.mxu0
      %v2551 = vadd.f32 %v2462, %v2550
      %2552 = vmatmul.bf16.gmra.mxu0 %v2200
      %v2553 = vpop.f32.mrf.mxu0
      %v2554 = vadd.f32 %v2465, %v2553
      %v2555 = vpop.f32.mrf.mxu0
      %v2556 = vadd.f32 %v2467, %v2555
      %2557 = vmatmul.bf16.gmra.mxu0 %v2203
      %v2558 = vpop.f32.mrf.mxu0
      %v2559 = vadd.f32 %v2470, %v2558
      %v2560 = vpop.f32.mrf.mxu0
      %v2561 = vadd.f32 %v2472, %v2560
      %2562 = vmatmul.bf16.gmra.mxu0 %v2206
      %v2563 = vpop.f32.mrf.mxu0
      %v2564 = vadd.f32 %v2475, %v2563
      %v2565 = vpop.f32.mrf.mxu0
      %v2566 = vadd.f32 %v2477, %v2565
      %2567 = vmatmul.bf16.gmra.mxu0 %v2209
      %v2568 = vpop.f32.mrf.mxu0
      %v2569 = vadd.f32 %v2480, %v2568
      %v2570 = vpop.f32.mrf.mxu0
      %v2571 = vadd.f32 %v2482, %v2570
      %2572 = vmatmul.bf16.gmra.mxu0 %v2212
      %v2573 = vpop.f32.mrf.mxu0
      %v2574 = vadd.f32 %v2485, %v2573
      %v2575 = vpop.f32.mrf.mxu0
      %v2576 = vadd.f32 %v2487, %v2575
      %2577 = vmatmul.bf16.gmra.mxu0 %v2215
      %v2578 = vpop.f32.mrf.mxu0
      %v2579 = vadd.f32 %v2490, %v2578
      %v2580 = vpop.f32.mrf.mxu0
      %v2581 = vadd.f32 %v2492, %v2580
      %2582 = vmatmul.bf16.gmra.mxu0 %v2218
      %v2583 = vpop.f32.mrf.mxu0
      %v2584 = vadd.f32 %v2495, %v2583
      %v2585 = vpop.f32.mrf.mxu0
      %v2586 = vadd.f32 %v2497, %v2585
      %2587 = vmatmul.bf16.gmra.mxu0 %v2221
      %v2588 = vpop.f32.mrf.mxu0
      %v2589 = vadd.f32 %v2500, %v2588
      %v2590 = vpop.f32.mrf.mxu0
      %v2591 = vadd.f32 %v2502, %v2590
      %2592 = vdwg.mxu0
      %2593 = vmatpush.bf16.msra.mxu0 0
      %2594 = vmatpush.bf16.msra.mxu0 0
      %2595 = vmatpush.bf16.msra.mxu0 0
      %2596 = vmatpush.bf16.msra.mxu0 0
      %2597 = vmatpush.bf16.msra.mxu0 0
      %2598 = vmatpush.bf16.msra.mxu0 0
      %2599 = vmatpush.bf16.msra.mxu0 %v2351
      %2600 = vmatpush.bf16.msra.mxu0 %v2350
      %2601 = vmatmul.bf16.gmra.mxu0 %v2371
      %v2602 = vpop.f32.mrf.mxu0
      %v2603 = vadd.f32 %v2514, %v2602
      %v2604 = vpop.f32.mrf.mxu0
      %v2605 = vadd.f32 %v2516, %v2604
      %2606 = vmatmul.bf16.gmra.mxu0 %v2374
      %v2607 = vpop.f32.mrf.mxu0
      %v2608 = vadd.f32 %v2519, %v2607
      %v2609 = vpop.f32.mrf.mxu0
      %v2610 = vadd.f32 %v2521, %v2609
      %2611 = vmatmul.bf16.gmra.mxu0 %v2377
      %v2612 = vpop.f32.mrf.mxu0
      %v2613 = vadd.f32 %v2524, %v2612
      %v2614 = vpop.f32.mrf.mxu0
      %v2615 = vadd.f32 %v2526, %v2614
      %2616 = vmatmul.bf16.gmra.mxu0 %v2380
      %v2617 = vpop.f32.mrf.mxu0
      %v2618 = vadd.f32 %v2529, %v2617
      %v2619 = vpop.f32.mrf.mxu0
      %v2620 = vadd.f32 %v2531, %v2619
      %2621 = vmatmul.bf16.gmra.mxu0 %v2383
      %v2622 = vpop.f32.mrf.mxu0
      %v2623 = vadd.f32 %v2534, %v2622
      %v2624 = vpop.f32.mrf.mxu0
      %v2625 = vadd.f32 %v2536, %v2624
      %2626 = vmatmul.bf16.gmra.mxu0 %v2386
      %v2627 = vpop.f32.mrf.mxu0
      %v2628 = vadd.f32 %v2539, %v2627
      %v2629 = vpop.f32.mrf.mxu0
      %v2630 = vadd.f32 %v2541, %v2629
      %2631 = vmatmul.bf16.gmra.mxu0 %v2389
      %v2632 = vpop.f32.mrf.mxu0
      %v2633 = vadd.f32 %v2544, %v2632
      %v2634 = vpop.f32.mrf.mxu0
      %v2635 = vadd.f32 %v2546, %v2634
      %2636 = vmatmul.bf16.gmra.mxu0 %v2392
      %v2637 = vpop.f32.mrf.mxu0
      %v2638 = vadd.f32 %v2549, %v2637
      %v2639 = vpop.f32.mrf.mxu0
      %v2640 = vadd.f32 %v2551, %v2639
      %2641 = vmatmul.bf16.gmra.mxu0 %v2395
      %v2642 = vpop.f32.mrf.mxu0
      %v2643 = vadd.f32 %v2554, %v2642
      %v2644 = vpop.f32.mrf.mxu0
      %v2645 = vadd.f32 %v2556, %v2644
      %2646 = vmatmul.bf16.gmra.mxu0 %v2398
      %v2647 = vpop.f32.mrf.mxu0
      %v2648 = vadd.f32 %v2559, %v2647
      %v2649 = vpop.f32.mrf.mxu0
      %v2650 = vadd.f32 %v2561, %v2649
      %2651 = vmatmul.bf16.gmra.mxu0 %v2401
      %v2652 = vpop.f32.mrf.mxu0
      %v2653 = vadd.f32 %v2564, %v2652
      %v2654 = vpop.f32.mrf.mxu0
      %v2655 = vadd.f32 %v2566, %v2654
      %2656 = vmatmul.bf16.gmra.mxu0 %v2404
      %v2657 = vpop.f32.mrf.mxu0
      %v2658 = vadd.f32 %v2569, %v2657
      %v2659 = vpop.f32.mrf.mxu0
      %v2660 = vadd.f32 %v2571, %v2659
      %2661 = vmatmul.bf16.gmra.mxu0 %v2407
      %v2662 = vpop.f32.mrf.mxu0
      %v2663 = vadd.f32 %v2574, %v2662
      %v2664 = vpop.f32.mrf.mxu0
      %v2665 = vadd.f32 %v2576, %v2664
      %2666 = vmatmul.bf16.gmra.mxu0 %v2410
      %v2667 = vpop.f32.mrf.mxu0
      %v2668 = vadd.f32 %v2579, %v2667
      %v2669 = vpop.f32.mrf.mxu0
      %v2670 = vadd.f32 %v2581, %v2669
      %2671 = vmatmul.bf16.gmra.mxu0 %v2413
      %v2672 = vpop.f32.mrf.mxu0
      %v2673 = vadd.f32 %v2584, %v2672
      %v2674 = vpop.f32.mrf.mxu0
      %v2675 = vadd.f32 %v2586, %v2674
      %2676 = vmatmul.bf16.gmra.mxu0 %v2413
      %v2677 = vpop.f32.mrf.mxu0
      %v2678 = vadd.f32 %v2589, %v2677
      %v2679 = vpop.f32.mrf.mxu0
      %v2680 = vadd.f32 %v2591, %v2679
      %2681 = vdwg.mxu0
      %v2682 = vsel %vm2015, %v2603, 0.0
      %v2683 = vsel %vm2015, %v2605, 0.0
      %v2684 = vadd.f32 %v2682, %v2683
      %v2685 = vsel %vm2015, %v2608, 0.0
      %v2686 = vadd.f32 %v2684, %v2685
      %v2687 = vsel %vm2015, %v2610, 0.0
      %v2688 = vadd.f32 %v2686, %v2687
      %v2689 = vsel %vm2015, %v2613, 0.0
      %v2690 = vadd.f32 %v2688, %v2689
      %v2691 = vsel %vm2015, %v2615, 0.0
      %v2692 = vadd.f32 %v2690, %v2691
      %v2693 = vsel %vm2015, %v2618, 0.0
      %v2694 = vadd.f32 %v2692, %v2693
      %v2695 = vsel %vm2015, %v2620, 0.0
      %v2696 = vadd.f32 %v2694, %v2695
      %v2697 = vsel %vm2015, %v2623, 0.0
      %v2698 = vadd.f32 %v2696, %v2697
      %v2699 = vsel %vm2015, %v2625, 0.0
      %v2700 = vadd.f32 %v2698, %v2699
      %v2701 = vsel %vm2015, %v2628, 0.0
      %v2702 = vadd.f32 %v2700, %v2701
      %v2703 = vsel %vm2015, %v2630, 0.0
      %v2704 = vadd.f32 %v2702, %v2703
      %v2705 = vsel %vm2015, %v2633, 0.0
      %v2706 = vadd.f32 %v2704, %v2705
      %v2707 = vsel %vm2015, %v2635, 0.0
      %v2708 = vadd.f32 %v2706, %v2707
      %v2709 = vsel %vm2015, %v2638, 0.0
      %v2710 = vadd.f32 %v2708, %v2709
      %v2711 = vsel %vm2015, %v2640, 0.0
      %v2712 = vadd.f32 %v2710, %v2711
      %v2713 = vsel %vm2015, %v2643, 0.0
      %v2714 = vadd.f32 %v2712, %v2713
      %v2715 = vsel %vm2015, %v2645, 0.0
      %v2716 = vadd.f32 %v2714, %v2715
      %v2717 = vsel %vm2015, %v2648, 0.0
      %v2718 = vadd.f32 %v2716, %v2717
      %v2719 = vsel %vm2015, %v2650, 0.0
      %v2720 = vadd.f32 %v2718, %v2719
      %v2721 = vsel %vm2015, %v2653, 0.0
      %v2722 = vadd.f32 %v2720, %v2721
      %v2723 = vsel %vm2015, %v2655, 0.0
      %v2724 = vadd.f32 %v2722, %v2723
      %v2725 = vsel %vm2015, %v2658, 0.0
      %v2726 = vadd.f32 %v2724, %v2725
      %v2727 = vsel %vm2015, %v2660, 0.0
      %v2728 = vadd.f32 %v2726, %v2727
      %v2729 = vsel %vm2015, %v2663, 0.0
      %v2730 = vadd.f32 %v2728, %v2729
      %v2731 = vsel %vm2015, %v2665, 0.0
      %v2732 = vadd.f32 %v2730, %v2731
      %v2733 = vsel %vm2015, %v2668, 0.0
      %v2734 = vadd.f32 %v2732, %v2733
      %v2735 = vsel %vm2015, %v2670, 0.0
      %v2736 = vadd.f32 %v2734, %v2735
      %v2737 = vsel %vm2015, %v2673, 0.0
      %v2738 = vadd.f32 %v2736, %v2737
      %v2739 = vsel %vm2015, %v2675, 0.0
      %v2740 = vadd.f32 %v2738, %v2739
      %v2741 = vsel %vm2015, %v2678, 0.0
      %v2742 = vadd.f32 %v2740, %v2741
      %v2743 = vsel %vm2015, %v2680, 0.0
      %v2744 = vadd.f32 %v2742, %v2743
      %v2745 = vrot.slane %v2744, 4
      %v2746 = vadd.f32 %v2744, %v2745
      %v2747 = vrot.slane %v2746, 2
      %v2748 = vadd.f32 %v2746, %v2747
      %v2749 = vrot.slane %v2748, 1
      %v2750 = vadd.f32 %v2748, %v2749
      %v2751 = vmul.f32 %v2750, %v614
      %v2752 = vsub.f32 %v2603, %v2751
      %v2753 = vsub.f32 %v2605, %v2751
      %v2754 = vsub.f32 %v2608, %v2751
      %v2755 = vsub.f32 %v2610, %v2751
      %v2756 = vsub.f32 %v2613, %v2751
      %v2757 = vsub.f32 %v2615, %v2751
      %v2758 = vsub.f32 %v2618, %v2751
      %v2759 = vsub.f32 %v2620, %v2751
      %v2760 = vsub.f32 %v2623, %v2751
      %v2761 = vsub.f32 %v2625, %v2751
      %v2762 = vsub.f32 %v2628, %v2751
      %v2763 = vsub.f32 %v2630, %v2751
      %v2764 = vsub.f32 %v2633, %v2751
      %v2765 = vsub.f32 %v2635, %v2751
      %v2766 = vsub.f32 %v2638, %v2751
      %v2767 = vsub.f32 %v2640, %v2751
      %v2768 = vsub.f32 %v2643, %v2751
      %v2769 = vsub.f32 %v2645, %v2751
      %v2770 = vsub.f32 %v2648, %v2751
      %v2771 = vsub.f32 %v2650, %v2751
      %v2772 = vsub.f32 %v2653, %v2751
      %v2773 = vsub.f32 %v2655, %v2751
      %v2774 = vsub.f32 %v2658, %v2751
      %v2775 = vsub.f32 %v2660, %v2751
      %v2776 = vsub.f32 %v2663, %v2751
      %v2777 = vsub.f32 %v2665, %v2751
      %v2778 = vsub.f32 %v2668, %v2751
      %v2779 = vsub.f32 %v2670, %v2751
      %v2780 = vsub.f32 %v2673, %v2751
      %v2781 = vsub.f32 %v2675, %v2751
      %v2782 = vsub.f32 %v2678, %v2751
      %v2783 = vsub.f32 %v2680, %v2751
      %v2784 = vmul.f32 %v2752, %v2752
      %v2785 = vmul.f32 %v2753, %v2753
      %v2786 = vmul.f32 %v2754, %v2754
      %v2787 = vmul.f32 %v2755, %v2755
      %v2788 = vmul.f32 %v2756, %v2756
      %v2789 = vmul.f32 %v2757, %v2757
      %v2790 = vmul.f32 %v2758, %v2758
      %v2791 = vmul.f32 %v2759, %v2759
      %v2792 = vmul.f32 %v2760, %v2760
      %v2793 = vmul.f32 %v2761, %v2761
      %v2794 = vmul.f32 %v2762, %v2762
      %v2795 = vmul.f32 %v2763, %v2763
      %v2796 = vmul.f32 %v2764, %v2764
      %v2797 = vmul.f32 %v2765, %v2765
      %v2798 = vmul.f32 %v2766, %v2766
      %v2799 = vmul.f32 %v2767, %v2767
      %v2800 = vmul.f32 %v2768, %v2768
      %v2801 = vmul.f32 %v2769, %v2769
      %v2802 = vmul.f32 %v2770, %v2770
      %v2803 = vmul.f32 %v2771, %v2771
      %v2804 = vmul.f32 %v2772, %v2772
      %v2805 = vmul.f32 %v2773, %v2773
      %v2806 = vmul.f32 %v2774, %v2774
      %v2807 = vmul.f32 %v2775, %v2775
      %v2808 = vmul.f32 %v2776, %v2776
      %v2809 = vmul.f32 %v2777, %v2777
      %v2810 = vmul.f32 %v2778, %v2778
      %v2811 = vmul.f32 %v2779, %v2779
      %v2812 = vmul.f32 %v2780, %v2780
      %v2813 = vmul.f32 %v2781, %v2781
      %v2814 = vmul.f32 %v2782, %v2782
      %v2815 = vmul.f32 %v2783, %v2783
      %v2816 = vsel %vm2015, %v2784, 0.0
      %v2817 = vsel %vm2015, %v2785, 0.0
      %v2818 = vadd.f32 %v2816, %v2817
      %v2819 = vsel %vm2015, %v2786, 0.0
      %v2820 = vadd.f32 %v2818, %v2819
      %v2821 = vsel %vm2015, %v2787, 0.0
      %v2822 = vadd.f32 %v2820, %v2821
      %v2823 = vsel %vm2015, %v2788, 0.0
      %v2824 = vadd.f32 %v2822, %v2823
      %v2825 = vsel %vm2015, %v2789, 0.0
      %v2826 = vadd.f32 %v2824, %v2825
      %v2827 = vsel %vm2015, %v2790, 0.0
      %v2828 = vadd.f32 %v2826, %v2827
      %v2829 = vsel %vm2015, %v2791, 0.0
      %v2830 = vadd.f32 %v2828, %v2829
      %v2831 = vsel %vm2015, %v2792, 0.0
      %v2832 = vadd.f32 %v2830, %v2831
      %v2833 = vsel %vm2015, %v2793, 0.0
      %v2834 = vadd.f32 %v2832, %v2833
      %v2835 = vsel %vm2015, %v2794, 0.0
      %v2836 = vadd.f32 %v2834, %v2835
      %v2837 = vsel %vm2015, %v2795, 0.0
      %v2838 = vadd.f32 %v2836, %v2837
      %v2839 = vsel %vm2015, %v2796, 0.0
      %v2840 = vadd.f32 %v2838, %v2839
      %v2841 = vsel %vm2015, %v2797, 0.0
      %v2842 = vadd.f32 %v2840, %v2841
      %v2843 = vsel %vm2015, %v2798, 0.0
      %v2844 = vadd.f32 %v2842, %v2843
      %v2845 = vsel %vm2015, %v2799, 0.0
      %v2846 = vadd.f32 %v2844, %v2845
      %v2847 = vsel %vm2015, %v2800, 0.0
      %v2848 = vadd.f32 %v2846, %v2847
      %v2849 = vsel %vm2015, %v2801, 0.0
      %v2850 = vadd.f32 %v2848, %v2849
      %v2851 = vsel %vm2015, %v2802, 0.0
      %v2852 = vadd.f32 %v2850, %v2851
      %v2853 = vsel %vm2015, %v2803, 0.0
      %v2854 = vadd.f32 %v2852, %v2853
      %v2855 = vsel %vm2015, %v2804, 0.0
      %v2856 = vadd.f32 %v2854, %v2855
      %v2857 = vsel %vm2015, %v2805, 0.0
      %v2858 = vadd.f32 %v2856, %v2857
      %v2859 = vsel %vm2015, %v2806, 0.0
      %v2860 = vadd.f32 %v2858, %v2859
      %v2861 = vsel %vm2015, %v2807, 0.0
      %v2862 = vadd.f32 %v2860, %v2861
      %v2863 = vsel %vm2015, %v2808, 0.0
      %v2864 = vadd.f32 %v2862, %v2863
      %v2865 = vsel %vm2015, %v2809, 0.0
      %v2866 = vadd.f32 %v2864, %v2865
      %v2867 = vsel %vm2015, %v2810, 0.0
      %v2868 = vadd.f32 %v2866, %v2867
      %v2869 = vsel %vm2015, %v2811, 0.0
      %v2870 = vadd.f32 %v2868, %v2869
      %v2871 = vsel %vm2015, %v2812, 0.0
      %v2872 = vadd.f32 %v2870, %v2871
      %v2873 = vsel %vm2015, %v2813, 0.0
      %v2874 = vadd.f32 %v2872, %v2873
      %v2875 = vsel %vm2015, %v2814, 0.0
      %v2876 = vadd.f32 %v2874, %v2875
      %v2877 = vsel %vm2015, %v2815, 0.0
      %v2878 = vadd.f32 %v2876, %v2877
      %v2879 = vrot.slane %v2878, 4
      %v2880 = vadd.f32 %v2878, %v2879
      %v2881 = vrot.slane %v2880, 2
      %v2882 = vadd.f32 %v2880, %v2881
      %v2883 = vrot.slane %v2882, 1
      %v2884 = vadd.f32 %v2882, %v2883
      %v2885 = vmul.f32 %v2884, %v614
      %v2886 = vadd.f32 %v2885, 1e-05
      %v2887 = vrsqrt.pop %v2886
      %v2888 = vmul.f32 %v2887, %v2886
      %v2889 = vmul.f32 %v2888, %v2887
      %v2890 = vmul.f32 0.5, %v2889
      %v2891 = vsub.f32 1.5, %v2890
      %v2892 = vmul.f32 %v2887, %v2891
      %vm2893 = vweird.f32 %v2886
      %vm2894 = vweird.f32 %v2887
      %vm2895 = vmor %vm2893, %vm2894
      %v2896 = vsel %vm2895, %v2887, %v2892
      %v2897 = vmul.f32 %v2752, %v2896
      %v2898 = vmul.f32 %v2753, %v2896
      %v2899 = vmul.f32 %v2754, %v2896
      %v2900 = vmul.f32 %v2755, %v2896
      %v2901 = vmul.f32 %v2756, %v2896
      %v2902 = vmul.f32 %v2757, %v2896
      %v2903 = vmul.f32 %v2758, %v2896
      %v2904 = vmul.f32 %v2759, %v2896
      %v2905 = vmul.f32 %v2760, %v2896
      %v2906 = vmul.f32 %v2761, %v2896
      %v2907 = vmul.f32 %v2762, %v2896
      %v2908 = vmul.f32 %v2763, %v2896
      %v2909 = vmul.f32 %v2764, %v2896
      %v2910 = vmul.f32 %v2765, %v2896
      %v2911 = vmul.f32 %v2766, %v2896
      %v2912 = vmul.f32 %v2767, %v2896
      %v2913 = vmul.f32 %v2768, %v2896
      %v2914 = vmul.f32 %v2769, %v2896
      %v2915 = vmul.f32 %v2770, %v2896
      %v2916 = vmul.f32 %v2771, %v2896
      %v2917 = vmul.f32 %v2772, %v2896
      %v2918 = vmul.f32 %v2773, %v2896
      %v2919 = vmul.f32 %v2774, %v2896
      %v2920 = vmul.f32 %v2775, %v2896
      %v2921 = vmul.f32 %v2776, %v2896
      %v2922 = vmul.f32 %v2777, %v2896
      %v2923 = vmul.f32 %v2778, %v2896
      %v2924 = vmul.f32 %v2779, %v2896
      %v2925 = vmul.f32 %v2780, %v2896
      %v2926 = vmul.f32 %v2781, %v2896
      %v2927 = vmul.f32 %v2782, %v2896
      %v2928 = vmul.f32 %v2783, %v2896
      %vm2929 = vcmp.gt.f32.partialorder %v2897, 0.0
      %vm2930 = vcmp.gt.f32.partialorder %v2898, 0.0
      %vm2931 = vcmp.gt.f32.partialorder %v2899, 0.0
      %vm2932 = vcmp.gt.f32.partialorder %v2900, 0.0
      %vm2933 = vcmp.gt.f32.partialorder %v2901, 0.0
      %vm2934 = vcmp.gt.f32.partialorder %v2902, 0.0
      %vm2935 = vcmp.gt.f32.partialorder %v2903, 0.0
      %vm2936 = vcmp.gt.f32.partialorder %v2904, 0.0
      %vm2937 = vcmp.gt.f32.partialorder %v2905, 0.0
      %vm2938 = vcmp.gt.f32.partialorder %v2906, 0.0
      %vm2939 = vcmp.gt.f32.partialorder %v2907, 0.0
      %vm2940 = vcmp.gt.f32.partialorder %v2908, 0.0
      %vm2941 = vcmp.gt.f32.partialorder %v2909, 0.0
      %vm2942 = vcmp.gt.f32.partialorder %v2910, 0.0
      %vm2943 = vcmp.gt.f32.partialorder %v2911, 0.0
      %vm2944 = vcmp.gt.f32.partialorder %v2912, 0.0
      %vm2945 = vcmp.gt.f32.partialorder %v2913, 0.0
      %vm2946 = vcmp.gt.f32.partialorder %v2914, 0.0
      %vm2947 = vcmp.gt.f32.partialorder %v2915, 0.0
      %vm2948 = vcmp.gt.f32.partialorder %v2916, 0.0
      %vm2949 = vcmp.gt.f32.partialorder %v2917, 0.0
      %vm2950 = vcmp.gt.f32.partialorder %v2918, 0.0
      %vm2951 = vcmp.gt.f32.partialorder %v2919, 0.0
      %vm2952 = vcmp.gt.f32.partialorder %v2920, 0.0
      %vm2953 = vcmp.gt.f32.partialorder %v2921, 0.0
      %vm2954 = vcmp.gt.f32.partialorder %v2922, 0.0
      %vm2955 = vcmp.gt.f32.partialorder %v2923, 0.0
      %vm2956 = vcmp.gt.f32.partialorder %v2924, 0.0
      %vm2957 = vcmp.gt.f32.partialorder %v2925, 0.0
      %vm2958 = vcmp.gt.f32.partialorder %v2926, 0.0
      %vm2959 = vcmp.gt.f32.partialorder %v2927, 0.0
      %vm2960 = vcmp.gt.f32.partialorder %v2928, 0.0
      %v2961 = vmin.f32 %v2897, 0.0
      %v2962 = vmin.f32 %v2898, 0.0
      %v2963 = vmin.f32 %v2899, 0.0
      %v2964 = vmin.f32 %v2900, 0.0
      %v2965 = vmin.f32 %v2901, 0.0
      %v2966 = vmin.f32 %v2902, 0.0
      %v2967 = vmin.f32 %v2903, 0.0
      %v2968 = vmin.f32 %v2904, 0.0
      %v2969 = vmin.f32 %v2905, 0.0
      %v2970 = vmin.f32 %v2906, 0.0
      %v2971 = vmin.f32 %v2907, 0.0
      %v2972 = vmin.f32 %v2908, 0.0
      %v2973 = vmin.f32 %v2909, 0.0
      %v2974 = vmin.f32 %v2910, 0.0
      %v2975 = vmin.f32 %v2911, 0.0
      %v2976 = vmin.f32 %v2912, 0.0
      %v2977 = vmin.f32 %v2913, 0.0
      %v2978 = vmin.f32 %v2914, 0.0
      %v2979 = vmin.f32 %v2915, 0.0
      %v2980 = vmin.f32 %v2916, 0.0
      %v2981 = vmin.f32 %v2917, 0.0
      %v2982 = vmin.f32 %v2918, 0.0
      %v2983 = vmin.f32 %v2919, 0.0
      %v2984 = vmin.f32 %v2920, 0.0
      %v2985 = vmin.f32 %v2921, 0.0
      %v2986 = vmin.f32 %v2922, 0.0
      %v2987 = vmin.f32 %v2923, 0.0
      %v2988 = vmin.f32 %v2924, 0.0
      %v2989 = vmin.f32 %v2925, 0.0
      %v2990 = vmin.f32 %v2926, 0.0
      %v2991 = vmin.f32 %v2927, 0.0
      %v2992 = vmin.f32 %v2928, 0.0
      %v2993 = vmul.f32 %v2961, 1.442695
      %v2994 = vpow.pop %v2993
      %v2995 = vmul.f32 %v2962, 1.442695
      %v2996 = vpow.pop %v2995
      %v2997 = vmul.f32 %v2963, 1.442695
      %v2998 = vpow.pop %v2997
      %v2999 = vmul.f32 %v2964, 1.442695
      %v3000 = vpow.pop %v2999
      %v3001 = vmul.f32 %v2965, 1.442695
      %v3002 = vpow.pop %v3001
      %v3003 = vmul.f32 %v2966, 1.442695
      %v3004 = vpow.pop %v3003
      %v3005 = vmul.f32 %v2967, 1.442695
      %v3006 = vpow.pop %v3005
      %v3007 = vmul.f32 %v2968, 1.442695
      %v3008 = vpow.pop %v3007
      %v3009 = vmul.f32 %v2969, 1.442695
      %v3010 = vpow.pop %v3009
      %v3011 = vmul.f32 %v2970, 1.442695
      %v3012 = vpow.pop %v3011
      %v3013 = vmul.f32 %v2971, 1.442695
      %v3014 = vpow.pop %v3013
      %v3015 = vmul.f32 %v2972, 1.442695
      %v3016 = vpow.pop %v3015
      %v3017 = vmul.f32 %v2973, 1.442695
      %v3018 = vpow.pop %v3017
      %v3019 = vmul.f32 %v2974, 1.442695
      %v3020 = vpow.pop %v3019
      %v3021 = vmul.f32 %v2975, 1.442695
      %v3022 = vpow.pop %v3021
      %v3023 = vmul.f32 %v2976, 1.442695
      %v3024 = vpow.pop %v3023
      %v3025 = vmul.f32 %v2977, 1.442695
      %v3026 = vpow.pop %v3025
      %v3027 = vmul.f32 %v2978, 1.442695
      %v3028 = vpow.pop %v3027
      %v3029 = vmul.f32 %v2979, 1.442695
      %v3030 = vpow.pop %v3029
      %v3031 = vmul.f32 %v2980, 1.442695
      %v3032 = vpow.pop %v3031
      %v3033 = vmul.f32 %v2981, 1.442695
      %v3034 = vpow.pop %v3033
      %v3035 = vmul.f32 %v2982, 1.442695
      %v3036 = vpow.pop %v3035
      %v3037 = vmul.f32 %v2983, 1.442695
      %v3038 = vpow.pop %v3037
      %v3039 = vmul.f32 %v2984, 1.442695
      %v3040 = vpow.pop %v3039
      %v3041 = vmul.f32 %v2985, 1.442695
      %v3042 = vpow.pop %v3041
      %v3043 = vmul.f32 %v2986, 1.442695
      %v3044 = vpow.pop %v3043
      %v3045 = vmul.f32 %v2987, 1.442695
      %v3046 = vpow.pop %v3045
      %v3047 = vmul.f32 %v2988, 1.442695
      %v3048 = vpow.pop %v3047
      %v3049 = vmul.f32 %v2989, 1.442695
      %v3050 = vpow.pop %v3049
      %v3051 = vmul.f32 %v2990, 1.442695
      %v3052 = vpow.pop %v3051
      %v3053 = vmul.f32 %v2991, 1.442695
      %v3054 = vpow.pop %v3053
      %v3055 = vmul.f32 %v2992, 1.442695
      %v3056 = vpow.pop %v3055
      %v3057 = vsub.f32 %v2994, 1.0
      %v3058 = vsub.f32 %v2996, 1.0
      %v3059 = vsub.f32 %v2998, 1.0
      %v3060 = vsub.f32 %v3000, 1.0
      %v3061 = vsub.f32 %v3002, 1.0
      %v3062 = vsub.f32 %v3004, 1.0
      %v3063 = vsub.f32 %v3006, 1.0
      %v3064 = vsub.f32 %v3008, 1.0
      %v3065 = vsub.f32 %v3010, 1.0
      %v3066 = vsub.f32 %v3012, 1.0
      %v3067 = vsub.f32 %v3014, 1.0
      %v3068 = vsub.f32 %v3016, 1.0
      %v3069 = vsub.f32 %v3018, 1.0
      %v3070 = vsub.f32 %v3020, 1.0
      %v3071 = vsub.f32 %v3022, 1.0
      %v3072 = vsub.f32 %v3024, 1.0
      %v3073 = vsub.f32 %v3026, 1.0
      %v3074 = vsub.f32 %v3028, 1.0
      %v3075 = vsub.f32 %v3030, 1.0
      %v3076 = vsub.f32 %v3032, 1.0
      %v3077 = vsub.f32 %v3034, 1.0
      %v3078 = vsub.f32 %v3036, 1.0
      %v3079 = vsub.f32 %v3038, 1.0
      %v3080 = vsub.f32 %v3040, 1.0
      %v3081 = vsub.f32 %v3042, 1.0
      %v3082 = vsub.f32 %v3044, 1.0
      %v3083 = vsub.f32 %v3046, 1.0
      %v3084 = vsub.f32 %v3048, 1.0
      %v3085 = vsub.f32 %v3050, 1.0
      %v3086 = vsub.f32 %v3052, 1.0
      %v3087 = vsub.f32 %v3054, 1.0
      %v3088 = vsub.f32 %v3056, 1.0
      %v3089 = vsel %vm2929, %v2897, %v3057
      %v3090 = vsel %vm2930, %v2898, %v3058
      %v3091 = vsel %vm2931, %v2899, %v3059
      %v3092 = vsel %vm2932, %v2900, %v3060
      %v3093 = vsel %vm2933, %v2901, %v3061
      %v3094 = vsel %vm2934, %v2902, %v3062
      %v3095 = vsel %vm2935, %v2903, %v3063
      %v3096 = vsel %vm2936, %v2904, %v3064
      %v3097 = vsel %vm2937, %v2905, %v3065
      %v3098 = vsel %vm2938, %v2906, %v3066
      %v3099 = vsel %vm2939, %v2907, %v3067
      %v3100 = vsel %vm2940, %v2908, %v3068
      %v3101 = vsel %vm2941, %v2909, %v3069
      %v3102 = vsel %vm2942, %v2910, %v3070
      %v3103 = vsel %vm2943, %v2911, %v3071
      %v3104 = vsel %vm2944, %v2912, %v3072
      %v3105 = vsel %vm2945, %v2913, %v3073
      %v3106 = vsel %vm2946, %v2914, %v3074
      %v3107 = vsel %vm2947, %v2915, %v3075
      %v3108 = vsel %vm2948, %v2916, %v3076
      %v3109 = vsel %vm2949, %v2917, %v3077
      %v3110 = vsel %vm2950, %v2918, %v3078
      %v3111 = vsel %vm2951, %v2919, %v3079
      %v3112 = vsel %vm2952, %v2920, %v3080
      %v3113 = vsel %vm2953, %v2921, %v3081
      %v3114 = vsel %vm2954, %v2922, %v3082
      %v3115 = vsel %vm2955, %v2923, %v3083
      %v3116 = vsel %vm2956, %v2924, %v3084
      %v3117 = vsel %vm2957, %v2925, %v3085
      %v3118 = vsel %vm2958, %v2926, %v3086
      %v3119 = vsel %vm2959, %v2927, %v3087
      %v3120 = vsel %vm2960, %v2928, %v3088
      %v3153 = vrot.slane %v3089, 7
      %v3154 = vrot.slane %v3090, 7
      %v3155 = vsel %vm1017, %v3153, %v3154
      %v3156 = vrot.slane %v3091, 7
      %v3157 = vrot.slane %v3092, 7
      %v3158 = vsel %vm1017, %v3156, %v3157
      %v3159 = vrot.slane %v3093, 7
      %v3160 = vrot.slane %v3094, 7
      %v3161 = vsel %vm1017, %v3159, %v3160
      %v3162 = vrot.slane %v3095, 7
      %v3163 = vrot.slane %v3096, 7
      %v3164 = vsel %vm1017, %v3162, %v3163
      %v3165 = vrot.slane %v3097, 7
      %v3166 = vrot.slane %v3098, 7
      %v3167 = vsel %vm1017, %v3165, %v3166
      %v3168 = vrot.slane %v3099, 7
      %v3169 = vrot.slane %v3100, 7
      %v3170 = vsel %vm1017, %v3168, %v3169
      %v3171 = vrot.slane %v3101, 7
      %v3172 = vrot.slane %v3102, 7
      %v3173 = vsel %vm1017, %v3171, %v3172
      %v3174 = vrot.slane %v3103, 7
      %v3175 = vrot.slane %v3104, 7
      %v3176 = vsel %vm1017, %v3174, %v3175
      %v3177 = vrot.slane %v3105, 7
      %v3178 = vrot.slane %v3106, 7
      %v3179 = vsel %vm1017, %v3177, %v3178
      %v3180 = vrot.slane %v3107, 7
      %v3181 = vrot.slane %v3108, 7
      %v3182 = vsel %vm1017, %v3180, %v3181
      %v3183 = vrot.slane %v3109, 7
      %v3184 = vrot.slane %v3110, 7
      %v3185 = vsel %vm1017, %v3183, %v3184
      %v3186 = vrot.slane %v3111, 7
      %v3187 = vrot.slane %v3112, 7
      %v3188 = vsel %vm1017, %v3186, %v3187
      %v3189 = vrot.slane %v3113, 7
      %v3190 = vrot.slane %v3114, 7
      %v3191 = vsel %vm1017, %v3189, %v3190
      %v3192 = vrot.slane %v3115, 7
      %v3193 = vrot.slane %v3116, 7
      %v3194 = vsel %vm1017, %v3192, %v3193
      %v3195 = vrot.slane %v3117, 7
      %v3196 = vrot.slane %v3118, 7
      %v3197 = vsel %vm1017, %v3195, %v3196
      %v3198 = vrot.slane %v3119, 7
      %v3199 = vrot.slane %v3120, 7
      %v3200 = vsel %vm1017, %v3198, %v3199
      %v3249 = vrot.slane %v3090, 6
      %v3250 = vrot.slane %v3092, 6
      %v3251 = vrot.slane %v3094, 6
      %v3252 = vrot.slane %v3096, 6
      %v3253 = vrot.slane %v3098, 6
      %v3254 = vrot.slane %v3100, 6
      %v3255 = vrot.slane %v3102, 6
      %v3256 = vrot.slane %v3104, 6
      %v3257 = vrot.slane %v3106, 6
      %v3258 = vrot.slane %v3108, 6
      %v3259 = vrot.slane %v3110, 6
      %v3260 = vrot.slane %v3112, 6
      %v3261 = vrot.slane %v3114, 6
      %v3262 = vrot.slane %v3116, 6
      %v3263 = vrot.slane %v3118, 6
      %v3264 = vrot.slane %v3120, 6
      %v3281 = vsel %vm1017, %v3089, %v3153
      %v3282 = vsel %vm1017, %v3091, %v3156
      %v3283 = vsel %vm1017, %v3093, %v3159
      %v3284 = vsel %vm1017, %v3095, %v3162
      %v3285 = vsel %vm1017, %v3097, %v3165
      %v3286 = vsel %vm1017, %v3099, %v3168
      %v3287 = vsel %vm1017, %v3101, %v3171
      %v3288 = vsel %vm1017, %v3103, %v3174
      %v3289 = vsel %vm1017, %v3105, %v3177
      %v3290 = vsel %vm1017, %v3107, %v3180
      %v3291 = vsel %vm1017, %v3109, %v3183
      %v3292 = vsel %vm1017, %v3111, %v3186
      %v3293 = vsel %vm1017, %v3113, %v3189
      %v3294 = vsel %vm1017, %v3115, %v3192
      %v3295 = vsel %vm1017, %v3117, %v3195
      %v3296 = vsel %vm1017, %v3119, %v3198
      %v3297 = vsel %vm1017, %v3154, %v3249
      %v3298 = vsel %vm1017, %v3157, %v3250
      %v3299 = vsel %vm1017, %v3160, %v3251
      %v3300 = vsel %vm1017, %v3163, %v3252
      %v3301 = vsel %vm1017, %v3166, %v3253
      %v3302 = vsel %vm1017, %v3169, %v3254
      %v3303 = vsel %vm1017, %v3172, %v3255
      %v3304 = vsel %vm1017, %v3175, %v3256
      %v3305 = vsel %vm1017, %v3178, %v3257
      %v3306 = vsel %vm1017, %v3181, %v3258
      %v3307 = vsel %vm1017, %v3184, %v3259
      %v3308 = vsel %vm1017, %v3187, %v3260
      %v3309 = vsel %vm1017, %v3190, %v3261
      %v3310 = vsel %vm1017, %v3193, %v3262
      %v3311 = vsel %vm1017, %v3196, %v3263
      %v3312 = vsel %vm1017, %v3199, %v3264
      %v3343 = vrot.slane %v3281, 1
      %v3344 = vrot.slane %v3155, 1
      %v3345 = vsel %vm1207, %v3343, %v3344
      %v3346 = vrot.slane %v3297, 1
      %v3347 = vsel %vm1207, %v3344, %v3346
      %v3348 = vrot.slane %v3282, 1
      %v3349 = vrot.slane %v3158, 1
      %v3350 = vsel %vm1207, %v3348, %v3349
      %v3351 = vrot.slane %v3298, 1
      %v3352 = vsel %vm1207, %v3349, %v3351
      %v3353 = vrot.slane %v3283, 1
      %v3354 = vrot.slane %v3161, 1
      %v3355 = vsel %vm1207, %v3353, %v3354
      %v3356 = vrot.slane %v3299, 1
      %v3357 = vsel %vm1207, %v3354, %v3356
      %v3358 = vrot.slane %v3284, 1
      %v3359 = vrot.slane %v3164, 1
      %v3360 = vsel %vm1207, %v3358, %v3359
      %v3361 = vrot.slane %v3300, 1
      %v3362 = vsel %vm1207, %v3359, %v3361
      %v3363 = vrot.slane %v3285, 1
      %v3364 = vrot.slane %v3167, 1
      %v3365 = vsel %vm1207, %v3363, %v3364
      %v3366 = vrot.slane %v3301, 1
      %v3367 = vsel %vm1207, %v3364, %v3366
      %v3368 = vrot.slane %v3286, 1
      %v3369 = vrot.slane %v3170, 1
      %v3370 = vsel %vm1207, %v3368, %v3369
      %v3371 = vrot.slane %v3302, 1
      %v3372 = vsel %vm1207, %v3369, %v3371
      %v3373 = vrot.slane %v3287, 1
      %v3374 = vrot.slane %v3173, 1
      %v3375 = vsel %vm1207, %v3373, %v3374
      %v3376 = vrot.slane %v3303, 1
      %v3377 = vsel %vm1207, %v3374, %v3376
      %v3378 = vrot.slane %v3288, 1
      %v3379 = vrot.slane %v3176, 1
      %v3380 = vsel %vm1207, %v3378, %v3379
      %v3381 = vrot.slane %v3304, 1
      %v3382 = vsel %vm1207, %v3379, %v3381
      %v3383 = vrot.slane %v3289, 1
      %v3384 = vrot.slane %v3179, 1
      %v3385 = vsel %vm1207, %v3383, %v3384
      %v3386 = vrot.slane %v3305, 1
      %v3387 = vsel %vm1207, %v3384, %v3386
      %v3388 = vrot.slane %v3290, 1
      %v3389 = vrot.slane %v3182, 1
      %v3390 = vsel %vm1207, %v3388, %v3389
      %v3391 = vrot.slane %v3306, 1
      %v3392 = vsel %vm1207, %v3389, %v3391
      %v3393 = vrot.slane %v3291, 1
      %v3394 = vrot.slane %v3185, 1
      %v3395 = vsel %vm1207, %v3393, %v3394
      %v3396 = vrot.slane %v3307, 1
      %v3397 = vsel %vm1207, %v3394, %v3396
      %v3398 = vrot.slane %v3292, 1
      %v3399 = vrot.slane %v3188, 1
      %v3400 = vsel %vm1207, %v3398, %v3399
      %v3401 = vrot.slane %v3308, 1
      %v3402 = vsel %vm1207, %v3399, %v3401
      %v3403 = vrot.slane %v3293, 1
      %v3404 = vrot.slane %v3191, 1
      %v3405 = vsel %vm1207, %v3403, %v3404
      %v3406 = vrot.slane %v3309, 1
      %v3407 = vsel %vm1207, %v3404, %v3406
      %v3408 = vrot.slane %v3294, 1
      %v3409 = vrot.slane %v3194, 1
      %v3410 = vsel %vm1207, %v3408, %v3409
      %v3411 = vrot.slane %v3310, 1
      %v3412 = vsel %vm1207, %v3409, %v3411
      %v3413 = vrot.slane %v3295, 1
      %v3414 = vrot.slane %v3197, 1
      %v3415 = vsel %vm1207, %v3413, %v3414
      %v3416 = vrot.slane %v3311, 1
      %v3417 = vsel %vm1207, %v3414, %v3416
      %v3418 = vrot.slane %v3281, 2
      %v3419 = vrot.slane %v3155, 2
      %v3420 = vsel %vm1283, %v3418, %v3419
      %v3421 = vrot.slane %v3297, 2
      %v3422 = vsel %vm1283, %v3419, %v3421
      %v3423 = vrot.slane %v3282, 2
      %v3424 = vrot.slane %v3158, 2
      %v3425 = vsel %vm1283, %v3423, %v3424
      %v3426 = vrot.slane %v3298, 2
      %v3427 = vsel %vm1283, %v3424, %v3426
      %v3428 = vrot.slane %v3283, 2
      %v3429 = vrot.slane %v3161, 2
      %v3430 = vsel %vm1283, %v3428, %v3429
      %v3431 = vrot.slane %v3299, 2
      %v3432 = vsel %vm1283, %v3429, %v3431
      %v3433 = vrot.slane %v3284, 2
      %v3434 = vrot.slane %v3164, 2
      %v3435 = vsel %vm1283, %v3433, %v3434
      %v3436 = vrot.slane %v3300, 2
      %v3437 = vsel %vm1283, %v3434, %v3436
      %v3438 = vrot.slane %v3285, 2
      %v3439 = vrot.slane %v3167, 2
      %v3440 = vsel %vm1283, %v3438, %v3439
      %v3441 = vrot.slane %v3301, 2
      %v3442 = vsel %vm1283, %v3439, %v3441
      %v3443 = vrot.slane %v3286, 2
      %v3444 = vrot.slane %v3170, 2
      %v3445 = vsel %vm1283, %v3443, %v3444
      %v3446 = vrot.slane %v3302, 2
      %v3447 = vsel %vm1283, %v3444, %v3446
      %v3448 = vrot.slane %v3287, 2
      %v3449 = vrot.slane %v3173, 2
      %v3450 = vsel %vm1283, %v3448, %v3449
      %v3451 = vrot.slane %v3303, 2
      %v3452 = vsel %vm1283, %v3449, %v3451
      %v3453 = vrot.slane %v3288, 2
      %v3454 = vrot.slane %v3176, 2
      %v3455 = vsel %vm1283, %v3453, %v3454
      %v3456 = vrot.slane %v3304, 2
      %v3457 = vsel %vm1283, %v3454, %v3456
      %v3458 = vrot.slane %v3289, 2
      %v3459 = vrot.slane %v3179, 2
      %v3460 = vsel %vm1283, %v3458, %v3459
      %v3461 = vrot.slane %v3305, 2
      %v3462 = vsel %vm1283, %v3459, %v3461
      %v3463 = vrot.slane %v3290, 2
      %v3464 = vrot.slane %v3182, 2
      %v3465 = vsel %vm1283, %v3463, %v3464
      %v3466 = vrot.slane %v3306, 2
      %v3467 = vsel %vm1283, %v3464, %v3466
      %v3468 = vrot.slane %v3291, 2
      %v3469 = vrot.slane %v3185, 2
      %v3470 = vsel %vm1283, %v3468, %v3469
      %v3471 = vrot.slane %v3307, 2
      %v3472 = vsel %vm1283, %v3469, %v3471
      %v3473 = vrot.slane %v3292, 2
      %v3474 = vrot.slane %v3188, 2
      %v3475 = vsel %vm1283, %v3473, %v3474
      %v3476 = vrot.slane %v3308, 2
      %v3477 = vsel %vm1283, %v3474, %v3476
      %v3478 = vrot.slane %v3293, 2
      %v3479 = vrot.slane %v3191, 2
      %v3480 = vsel %vm1283, %v3478, %v3479
      %v3481 = vrot.slane %v3309, 2
      %v3482 = vsel %vm1283, %v3479, %v3481
      %v3483 = vrot.slane %v3294, 2
      %v3484 = vrot.slane %v3194, 2
      %v3485 = vsel %vm1283, %v3483, %v3484
      %v3486 = vrot.slane %v3310, 2
      %v3487 = vsel %vm1283, %v3484, %v3486
      %v3488 = vrot.slane %v3295, 2
      %v3489 = vrot.slane %v3197, 2
      %v3490 = vsel %vm1283, %v3488, %v3489
      %v3491 = vrot.slane %v3311, 2
      %v3492 = vsel %vm1283, %v3489, %v3491
      %v3525 = vrot.slane %v3296, 1
      %v3526 = vrot.slane %v3200, 1
      %v3527 = vsel %vm1207, %v3525, %v3526
      %v3528 = vrot.slane %v3312, 1
      %v3529 = vsel %vm1207, %v3526, %v3528
      %v3562 = vrot.slane %v3296, 2
      %v3563 = vrot.slane %v3200, 2
      %v3564 = vsel %vm1283, %v3562, %v3563
      %v3565 = vrot.slane %v3312, 2
      %v3566 = vsel %vm1283, %v3563, %v3565
      %3569 = vrot.lane.b32.xlu0 %v3345, 64
      %v3570 = vpop.permute.xlu0 %3569
      %3571 = vrot.lane.b32.xlu0 %v3347, 64
      %v3572 = vpop.permute.xlu0 %3571
      %3573 = vrot.lane.b32.xlu0 %v3350, 64
      %v3574 = vpop.permute.xlu0 %3573
      %3575 = vrot.lane.b32.xlu0 %v3352, 64
      %v3576 = vpop.permute.xlu0 %3575
      %3577 = vrot.lane.b32.xlu0 %v3355, 64
      %v3578 = vpop.permute.xlu0 %3577
      %3579 = vrot.lane.b32.xlu0 %v3357, 64
      %v3580 = vpop.permute.xlu0 %3579
      %3581 = vrot.lane.b32.xlu0 %v3360, 64
      %v3582 = vpop.permute.xlu0 %3581
      %3583 = vrot.lane.b32.xlu0 %v3362, 64
      %v3584 = vpop.permute.xlu0 %3583
      %3585 = vrot.lane.b32.xlu0 %v3365, 64
      %v3586 = vpop.permute.xlu0 %3585
      %3587 = vrot.lane.b32.xlu0 %v3367, 64
      %v3588 = vpop.permute.xlu0 %3587
      %3589 = vrot.lane.b32.xlu0 %v3370, 64
      %v3590 = vpop.permute.xlu0 %3589
      %3591 = vrot.lane.b32.xlu0 %v3372, 64
      %v3592 = vpop.permute.xlu0 %3591
      %3593 = vrot.lane.b32.xlu0 %v3375, 64
      %v3594 = vpop.permute.xlu0 %3593
      %3595 = vrot.lane.b32.xlu0 %v3377, 64
      %v3596 = vpop.permute.xlu0 %3595
      %3597 = vrot.lane.b32.xlu0 %v3380, 64
      %v3598 = vpop.permute.xlu0 %3597
      %3599 = vrot.lane.b32.xlu0 %v3382, 64
      %v3600 = vpop.permute.xlu0 %3599
      %3601 = vrot.lane.b32.xlu0 %v3385, 64
      %v3602 = vpop.permute.xlu0 %3601
      %3603 = vrot.lane.b32.xlu0 %v3387, 64
      %v3604 = vpop.permute.xlu0 %3603
      %3605 = vrot.lane.b32.xlu0 %v3390, 64
      %v3606 = vpop.permute.xlu0 %3605
      %3607 = vrot.lane.b32.xlu0 %v3392, 64
      %v3608 = vpop.permute.xlu0 %3607
      %3609 = vrot.lane.b32.xlu0 %v3395, 64
      %v3610 = vpop.permute.xlu0 %3609
      %3611 = vrot.lane.b32.xlu0 %v3397, 64
      %v3612 = vpop.permute.xlu0 %3611
      %3613 = vrot.lane.b32.xlu0 %v3400, 64
      %v3614 = vpop.permute.xlu0 %3613
      %3615 = vrot.lane.b32.xlu0 %v3402, 64
      %v3616 = vpop.permute.xlu0 %3615
      %3617 = vrot.lane.b32.xlu0 %v3405, 64
      %v3618 = vpop.permute.xlu0 %3617
      %3619 = vrot.lane.b32.xlu0 %v3407, 64
      %v3620 = vpop.permute.xlu0 %3619
      %3621 = vrot.lane.b32.xlu0 %v3410, 64
      %v3622 = vpop.permute.xlu0 %3621
      %3623 = vrot.lane.b32.xlu0 %v3412, 64
      %v3624 = vpop.permute.xlu0 %3623
      %3625 = vrot.lane.b32.xlu0 %v3415, 64
      %v3626 = vpop.permute.xlu0 %3625
      %3627 = vrot.lane.b32.xlu0 %v3417, 64
      %v3628 = vpop.permute.xlu0 %3627
      %3659 = vrot.lane.b32.xlu0 %v3281, 64
      %v3660 = vpop.permute.xlu0 %3659
      %3661 = vrot.lane.b32.xlu0 %v3155, 64
      %v3662 = vpop.permute.xlu0 %3661
      %3663 = vrot.lane.b32.xlu0 %v3282, 64
      %v3664 = vpop.permute.xlu0 %3663
      %3665 = vrot.lane.b32.xlu0 %v3158, 64
      %v3666 = vpop.permute.xlu0 %3665
      %3667 = vrot.lane.b32.xlu0 %v3283, 64
      %v3668 = vpop.permute.xlu0 %3667
      %3669 = vrot.lane.b32.xlu0 %v3161, 64
      %v3670 = vpop.permute.xlu0 %3669
      %3671 = vrot.lane.b32.xlu0 %v3284, 64
      %v3672 = vpop.permute.xlu0 %3671
      %3673 = vrot.lane.b32.xlu0 %v3164, 64
      %v3674 = vpop.permute.xlu0 %3673
      %3675 = vrot.lane.b32.xlu0 %v3285, 64
      %v3676 = vpop.permute.xlu0 %3675
      %3677 = vrot.lane.b32.xlu0 %v3167, 64
      %v3678 = vpop.permute.xlu0 %3677
      %3679 = vrot.lane.b32.xlu0 %v3286, 64
      %v3680 = vpop.permute.xlu0 %3679
      %3681 = vrot.lane.b32.xlu0 %v3170, 64
      %v3682 = vpop.permute.xlu0 %3681
      %3683 = vrot.lane.b32.xlu0 %v3287, 64
      %v3684 = vpop.permute.xlu0 %3683
      %3685 = vrot.lane.b32.xlu0 %v3173, 64
      %v3686 = vpop.permute.xlu0 %3685
      %3687 = vrot.lane.b32.xlu0 %v3288, 64
      %v3688 = vpop.permute.xlu0 %3687
      %3689 = vrot.lane.b32.xlu0 %v3176, 64
      %v3690 = vpop.permute.xlu0 %3689
      %3691 = vrot.lane.b32.xlu0 %v3289, 64
      %v3692 = vpop.permute.xlu0 %3691
      %3693 = vrot.lane.b32.xlu0 %v3179, 64
      %v3694 = vpop.permute.xlu0 %3693
      %3695 = vrot.lane.b32.xlu0 %v3290, 64
      %v3696 = vpop.permute.xlu0 %3695
      %3697 = vrot.lane.b32.xlu0 %v3182, 64
      %v3698 = vpop.permute.xlu0 %3697
      %3699 = vrot.lane.b32.xlu0 %v3291, 64
      %v3700 = vpop.permute.xlu0 %3699
      %3701 = vrot.lane.b32.xlu0 %v3185, 64
      %v3702 = vpop.permute.xlu0 %3701
      %3703 = vrot.lane.b32.xlu0 %v3292, 64
      %v3704 = vpop.permute.xlu0 %3703
      %3705 = vrot.lane.b32.xlu0 %v3188, 64
      %v3706 = vpop.permute.xlu0 %3705
      %3707 = vrot.lane.b32.xlu0 %v3293, 64
      %v3708 = vpop.permute.xlu0 %3707
      %3709 = vrot.lane.b32.xlu0 %v3191, 64
      %v3710 = vpop.permute.xlu0 %3709
      %3711 = vrot.lane.b32.xlu0 %v3294, 64
      %v3712 = vpop.permute.xlu0 %3711
      %3713 = vrot.lane.b32.xlu0 %v3194, 64
      %v3714 = vpop.permute.xlu0 %3713
      %3715 = vrot.lane.b32.xlu0 %v3295, 64
      %v3716 = vpop.permute.xlu0 %3715
      %3717 = vrot.lane.b32.xlu0 %v3197, 64
      %v3718 = vpop.permute.xlu0 %3717
      %3719 = vrot.lane.b32.xlu0 %v3296, 64
      %v3720 = vpop.permute.xlu0 %3719
      %3721 = vrot.lane.b32.xlu0 %v3200, 64
      %v3722 = vpop.permute.xlu0 %3721
      %3755 = vrot.lane.b32.xlu0 %v3420, 64
      %v3756 = vpop.permute.xlu0 %3755
      %3757 = vrot.lane.b32.xlu0 %v3422, 64
      %v3758 = vpop.permute.xlu0 %3757
      %3759 = vrot.lane.b32.xlu0 %v3425, 64
      %v3760 = vpop.permute.xlu0 %3759
      %3761 = vrot.lane.b32.xlu0 %v3427, 64
      %v3762 = vpop.permute.xlu0 %3761
      %3763 = vrot.lane.b32.xlu0 %v3430, 64
      %v3764 = vpop.permute.xlu0 %3763
      %3765 = vrot.lane.b32.xlu0 %v3432, 64
      %v3766 = vpop.permute.xlu0 %3765
      %3767 = vrot.lane.b32.xlu0 %v3435, 64
      %v3768 = vpop.permute.xlu0 %3767
      %3769 = vrot.lane.b32.xlu0 %v3437, 64
      %v3770 = vpop.permute.xlu0 %3769
      %3771 = vrot.lane.b32.xlu0 %v3440, 64
      %v3772 = vpop.permute.xlu0 %3771
      %3773 = vrot.lane.b32.xlu0 %v3442, 64
      %v3774 = vpop.permute.xlu0 %3773
      %3775 = vrot.lane.b32.xlu0 %v3445, 64
      %v3776 = vpop.permute.xlu0 %3775
      %3777 = vrot.lane.b32.xlu0 %v3447, 64
      %v3778 = vpop.permute.xlu0 %3777
      %3779 = vrot.lane.b32.xlu0 %v3450, 64
      %v3780 = vpop.permute.xlu0 %3779
      %3781 = vrot.lane.b32.xlu0 %v3452, 64
      %v3782 = vpop.permute.xlu0 %3781
      %3783 = vrot.lane.b32.xlu0 %v3455, 64
      %v3784 = vpop.permute.xlu0 %3783
      %3785 = vrot.lane.b32.xlu0 %v3457, 64
      %v3786 = vpop.permute.xlu0 %3785
      %3787 = vrot.lane.b32.xlu0 %v3460, 64
      %v3788 = vpop.permute.xlu0 %3787
      %3789 = vrot.lane.b32.xlu0 %v3462, 64
      %v3790 = vpop.permute.xlu0 %3789
      %3791 = vrot.lane.b32.xlu0 %v3465, 64
      %v3792 = vpop.permute.xlu0 %3791
      %3793 = vrot.lane.b32.xlu0 %v3467, 64
      %v3794 = vpop.permute.xlu0 %3793
      %3795 = vrot.lane.b32.xlu0 %v3470, 64
      %v3796 = vpop.permute.xlu0 %3795
      %3797 = vrot.lane.b32.xlu0 %v3472, 64
      %v3798 = vpop.permute.xlu0 %3797
      %3799 = vrot.lane.b32.xlu0 %v3475, 64
      %v3800 = vpop.permute.xlu0 %3799
      %3801 = vrot.lane.b32.xlu0 %v3477, 64
      %v3802 = vpop.permute.xlu0 %3801
      %3803 = vrot.lane.b32.xlu0 %v3480, 64
      %v3804 = vpop.permute.xlu0 %3803
      %3805 = vrot.lane.b32.xlu0 %v3482, 64
      %v3806 = vpop.permute.xlu0 %3805
      %3807 = vrot.lane.b32.xlu0 %v3485, 64
      %v3808 = vpop.permute.xlu0 %3807
      %3809 = vrot.lane.b32.xlu0 %v3487, 64
      %v3810 = vpop.permute.xlu0 %3809
      %3811 = vrot.lane.b32.xlu0 %v3490, 64
      %v3812 = vpop.permute.xlu0 %3811
      %3813 = vrot.lane.b32.xlu0 %v3492, 64
      %v3814 = vpop.permute.xlu0 %3813
      %3815 = vrot.lane.b32.xlu0 %v3564, 64
      %v3816 = vpop.permute.xlu0 %3815
      %3817 = vrot.lane.b32.xlu0 %v3566, 64
      %v3818 = vpop.permute.xlu0 %3817
      %3851 = vrot.lane.b32.xlu0 %v3527, 64
      %v3852 = vpop.permute.xlu0 %3851
      %3853 = vrot.lane.b32.xlu0 %v3529, 64
      %v3854 = vpop.permute.xlu0 %3853
      %v3857 = vsel %vm2015, %v3281, %v3570
      %v3858 = vsel %vm2015, %v3155, %v3572
      %v3859 = vsel %vm2015, %v3282, %v3574
      %v3860 = vsel %vm2015, %v3158, %v3576
      %v3861 = vsel %vm2015, %v3283, %v3578
      %v3862 = vsel %vm2015, %v3161, %v3580
      %v3863 = vsel %vm2015, %v3284, %v3582
      %v3864 = vsel %vm2015, %v3164, %v3584
      %v3865 = vsel %vm2015, %v3285, %v3586
      %v3866 = vsel %vm2015, %v3167, %v3588
      %v3867 = vsel %vm2015, %v3286, %v3590
      %v3868 = vsel %vm2015, %v3170, %v3592
      %v3869 = vsel %vm2015, %v3287, %v3594
      %v3870 = vsel %vm2015, %v3173, %v3596
      %v3871 = vsel %vm2015, %v3288, %v3598
      %v3872 = vsel %vm2015, %v3176, %v3600
      %v3873 = vsel %vm2015, %v3289, %v3602
      %v3874 = vsel %vm2015, %v3179, %v3604
      %v3875 = vsel %vm2015, %v3290, %v3606
      %v3876 = vsel %vm2015, %v3182, %v3608
      %v3877 = vsel %vm2015, %v3291, %v3610
      %v3878 = vsel %vm2015, %v3185, %v3612
      %v3879 = vsel %vm2015, %v3292, %v3614
      %v3880 = vsel %vm2015, %v3188, %v3616
      %v3881 = vsel %vm2015, %v3293, %v3618
      %v3882 = vsel %vm2015, %v3191, %v3620
      %v3883 = vsel %vm2015, %v3294, %v3622
      %v3884 = vsel %vm2015, %v3194, %v3624
      %v3885 = vsel %vm2015, %v3295, %v3626
      %v3886 = vsel %vm2015, %v3197, %v3628
      %v3887 = vsel %vm2015, %v3420, %v3660
      %v3888 = vsel %vm2015, %v3422, %v3662
      %v3889 = vsel %vm2015, %v3420, %v3664
      %v3890 = vsel %vm2015, %v3422, %v3666
      %v3891 = vsel %vm2015, %v3425, %v3668
      %v3892 = vsel %vm2015, %v3427, %v3670
      %v3893 = vsel %vm2015, %v3430, %v3672
      %v3894 = vsel %vm2015, %v3432, %v3674
      %v3895 = vsel %vm2015, %v3435, %v3676
      %v3896 = vsel %vm2015, %v3437, %v3678
      %v3897 = vsel %vm2015, %v3440, %v3680
      %v3898 = vsel %vm2015, %v3442, %v3682
      %v3899 = vsel %vm2015, %v3445, %v3684
      %v3900 = vsel %vm2015, %v3447, %v3686
      %v3901 = vsel %vm2015, %v3450, %v3688
      %v3902 = vsel %vm2015, %v3452, %v3690
      %v3903 = vsel %vm2015, %v3455, %v3692
      %v3904 = vsel %vm2015, %v3457, %v3694
      %v3905 = vsel %vm2015, %v3460, %v3696
      %v3906 = vsel %vm2015, %v3462, %v3698
      %v3907 = vsel %vm2015, %v3465, %v3700
      %v3908 = vsel %vm2015, %v3467, %v3702
      %v3909 = vsel %vm2015, %v3470, %v3704
      %v3910 = vsel %vm2015, %v3472, %v3706
      %v3911 = vsel %vm2015, %v3475, %v3708
      %v3912 = vsel %vm2015, %v3477, %v3710
      %v3913 = vsel %vm2015, %v3480, %v3712
      %v3914 = vsel %vm2015, %v3482, %v3714
      %v3915 = vsel %vm2015, %v3485, %v3716
      %v3916 = vsel %vm2015, %v3487, %v3718
      %v3917 = vsel %vm2015, %v3490, %v3720
      %v3918 = vsel %vm2015, %v3492, %v3722
      %v3919 = vsel %vm2015, %v3345, %v3756
      %v3920 = vsel %vm2015, %v3347, %v3758
      %v3921 = vsel %vm2015, %v3350, %v3760
      %v3922 = vsel %vm2015, %v3352, %v3762
      %v3923 = vsel %vm2015, %v3355, %v3764
      %v3924 = vsel %vm2015, %v3357, %v3766
      %v3925 = vsel %vm2015, %v3360, %v3768
      %v3926 = vsel %vm2015, %v3362, %v3770
      %v3927 = vsel %vm2015, %v3365, %v3772
      %v3928 = vsel %vm2015, %v3367, %v3774
      %v3929 = vsel %vm2015, %v3370, %v3776
      %v3930 = vsel %vm2015, %v3372, %v3778
      %v3931 = vsel %vm2015, %v3375, %v3780
      %v3932 = vsel %vm2015, %v3377, %v3782
      %v3933 = vsel %vm2015, %v3380, %v3784
      %v3934 = vsel %vm2015, %v3382, %v3786
      %v3935 = vsel %vm2015, %v3385, %v3788
      %v3936 = vsel %vm2015, %v3387, %v3790
      %v3937 = vsel %vm2015, %v3390, %v3792
      %v3938 = vsel %vm2015, %v3392, %v3794
      %v3939 = vsel %vm2015, %v3395, %v3796
      %v3940 = vsel %vm2015, %v3397, %v3798
      %v3941 = vsel %vm2015, %v3400, %v3800
      %v3942 = vsel %vm2015, %v3402, %v3802
      %v3943 = vsel %vm2015, %v3405, %v3804
      %v3944 = vsel %vm2015, %v3407, %v3806
      %v3945 = vsel %vm2015, %v3410, %v3808
      %v3946 = vsel %vm2015, %v3412, %v3810
      %v3947 = vsel %vm2015, %v3415, %v3812
      %v3948 = vsel %vm2015, %v3417, %v3814
      %v3949 = vsel %vm2015, %v3527, %v3816
      %v3950 = vsel %vm2015, %v3529, %v3818
      %v3951 = vsel %vm2015, %v3296, %v3852
      %v3952 = vsel %vm2015, %v3200, %v3854
      %v3953 = vpack.c.bf16 %v3858, %v3857
      %v3954 = vpack.c.bf16 %v3888, %v3887
      %v3955 = vpack.c.bf16 %v3920, %v3919
      %v3956 = vpack.c.bf16 %v3860, %v3859
      %v3957 = vpack.c.bf16 %v3427, %v3425
      %v3958 = vpack.c.bf16 %v3890, %v3889
      %v3959 = vpack.c.bf16 %v3922, %v3921
      %v3960 = vpack.c.bf16 %v3862, %v3861
      %v3961 = vpack.c.bf16 %v3432, %v3430
      %v3962 = vpack.c.bf16 %v3892, %v3891
      %v3963 = vpack.c.bf16 %v3924, %v3923
      %v3964 = vpack.c.bf16 %v3864, %v3863
      %v3965 = vpack.c.bf16 %v3437, %v3435
      %v3966 = vpack.c.bf16 %v3894, %v3893
      %v3967 = vpack.c.bf16 %v3926, %v3925
      %v3968 = vpack.c.bf16 %v3866, %v3865
      %v3969 = vpack.c.bf16 %v3442, %v3440
      %v3970 = vpack.c.bf16 %v3896, %v3895
      %v3971 = vpack.c.bf16 %v3928, %v3927
      %v3972 = vpack.c.bf16 %v3868, %v3867
      %v3973 = vpack.c.bf16 %v3447, %v3445
      %v3974 = vpack.c.bf16 %v3898, %v3897
      %v3975 = vpack.c.bf16 %v3930, %v3929
      %v3976 = vpack.c.bf16 %v3870, %v3869
      %v3977 = vpack.c.bf16 %v3452, %v3450
      %v3978 = vpack.c.bf16 %v3900, %v3899
      %v3979 = vpack.c.bf16 %v3932, %v3931
      %v3980 = vpack.c.bf16 %v3872, %v3871
      %v3981 = vpack.c.bf16 %v3457, %v3455
      %v3982 = vpack.c.bf16 %v3902, %v3901
      %v3983 = vpack.c.bf16 %v3934, %v3933
      %v3984 = vpack.c.bf16 %v3874, %v3873
      %v3985 = vpack.c.bf16 %v3462, %v3460
      %v3986 = vpack.c.bf16 %v3904, %v3903
      %v3987 = vpack.c.bf16 %v3936, %v3935
      %v3988 = vpack.c.bf16 %v3876, %v3875
      %v3989 = vpack.c.bf16 %v3467, %v3465
      %v3990 = vpack.c.bf16 %v3906, %v3905
      %v3991 = vpack.c.bf16 %v3938, %v3937
      %v3992 = vpack.c.bf16 %v3878, %v3877
      %v3993 = vpack.c.bf16 %v3472, %v3470
      %v3994 = vpack.c.bf16 %v3908, %v3907
      %v3995 = vpack.c.bf16 %v3940, %v3939
      %v3996 = vpack.c.bf16 %v3880, %v3879
      %v3997 = vpack.c.bf16 %v3477, %v3475
      %v3998 = vpack.c.bf16 %v3910, %v3909
      %v3999 = vpack.c.bf16 %v3942, %v3941
      %v4000 = vpack.c.bf16 %v3882, %v3881
      %v4001 = vpack.c.bf16 %v3482, %v3480
      %v4002 = vpack.c.bf16 %v3912, %v3911
      %v4003 = vpack.c.bf16 %v3944, %v3943
      %v4004 = vpack.c.bf16 %v3884, %v3883
      %v4005 = vpack.c.bf16 %v3487, %v3485
      %v4006 = vpack.c.bf16 %v3914, %v3913
      %v4007 = vpack.c.bf16 %v3946, %v3945
      %v4008 = vpack.c.bf16 %v3886, %v3885
      %v4009 = vpack.c.bf16 %v3492, %v3490
      %v4010 = vpack.c.bf16 %v3916, %v3915
      %v4011 = vpack.c.bf16 %v3948, %v3947
      %v4012 = vpack.c.bf16 %v3952, %v3951
      %v4013 = vpack.c.bf16 %v3566, %v3564
      %v4014 = vpack.c.bf16 %v3918, %v3917
      %v4015 = vpack.c.bf16 %v3950, %v3949
      %v4016 = vld [vmem:[%s5] sm:$0xf]
      %v4017 = vld [vmem:[%s5 + $0x4] sm:$0xf]
      %v4018 = vld [vmem:[%s5 + $0x8] sm:$0xf]
      %v4019 = vld [vmem:[%s5 + $0xc] sm:$0xf]
      %v4020 = vld [vmem:[%s5 + $0x10] sm:$0xf]
      %v4021 = vld [vmem:[%s5 + $0x14] sm:$0xf]
      %v4022 = vld [vmem:[%s5 + $0x18] sm:$0xf]
      %v4023 = vld [vmem:[%s5 + $0x1c] sm:$0xf]
      %v4024 = vld [vmem:[%s5 + $0x20] sm:$0xf]
      %v4025 = vld [vmem:[%s5 + $0x24] sm:$0xf]
      %v4026 = vld [vmem:[%s5 + $0x28] sm:$0xf]
      %v4027 = vld [vmem:[%s5 + $0x2c] sm:$0xf]
      %v4028 = vld [vmem:[%s5 + $0x30] sm:$0xf]
      %v4029 = vld [vmem:[%s5 + $0x34] sm:$0xf]
      %v4030 = vld [vmem:[%s5 + $0x38] sm:$0xf]
      %v4031 = vld [vmem:[%s5 + $0x3c] sm:$0xf]
      %v4032 = vld [vmem:[%s5 + $0x40] sm:$0xf]
      %v4033 = vld [vmem:[%s5 + $0x44] sm:$0xf]
      %v4034 = vld [vmem:[%s5 + $0x48] sm:$0xf]
      %v4035 = vld [vmem:[%s5 + $0x4c] sm:$0xf]
      %v4036 = vld [vmem:[%s5 + $0x50] sm:$0xf]
      %v4037 = vld [vmem:[%s5 + $0x54] sm:$0xf]
      %v4038 = vld [vmem:[%s5 + $0x58] sm:$0xf]
      %v4039 = vld [vmem:[%s5 + $0x5c] sm:$0xf]
      %v4040 = vld [vmem:[%s5 + $0x60] sm:$0xf]
      %v4041 = vld [vmem:[%s5 + $0x64] sm:$0xf]
      %v4042 = vld [vmem:[%s5 + $0x68] sm:$0xf]
      %v4043 = vld [vmem:[%s5 + $0x6c] sm:$0xf]
      %v4044 = vld [vmem:[%s5 + $0x70] sm:$0xf]
      %v4045 = vld [vmem:[%s5 + $0x74] sm:$0xf]
      %v4046 = vld [vmem:[%s5 + $0x78] sm:$0xf]
      %v4047 = vld [vmem:[%s5 + $0x7c] sm:$0xf]
      %v4048 = vld [vmem:[%s5 + $0x80] sm:$0xf]
      %v4049 = vld [vmem:[%s5 + $0x84] sm:$0xf]
      %v4050 = vld [vmem:[%s5 + $0x88] sm:$0xf]
      %v4051 = vld [vmem:[%s5 + $0x8c] sm:$0xf]
      %v4052 = vld [vmem:[%s5 + $0x90] sm:$0xf]
      %v4053 = vld [vmem:[%s5 + $0x94] sm:$0xf]
      %v4054 = vld [vmem:[%s5 + $0x98] sm:$0xf]
      %v4055 = vld [vmem:[%s5 + $0x9c] sm:$0xf]
      %v4056 = vld [vmem:[%s5 + $0xa0] sm:$0xf]
      %v4057 = vld [vmem:[%s5 + $0xa4] sm:$0xf]
      %v4058 = vld [vmem:[%s5 + $0xa8] sm:$0xf]
      %v4059 = vld [vmem:[%s5 + $0xac] sm:$0xf]
      %v4060 = vld [vmem:[%s5 + $0xb0] sm:$0xf]
      %v4061 = vld [vmem:[%s5 + $0xb4] sm:$0xf]
      %v4062 = vld [vmem:[%s5 + $0xb8] sm:$0xf]
      %v4063 = vld [vmem:[%s5 + $0xbc] sm:$0xf]
      %v4064 = vld [vmem:[%s5 + $0xc0] sm:$0xf]
      %v4065 = vld [vmem:[%s5 + $0xc4] sm:$0xf]
      %v4066 = vld [vmem:[%s5 + $0xc8] sm:$0xf]
      %v4067 = vld [vmem:[%s5 + $0xcc] sm:$0xf]
      %v4068 = vld [vmem:[%s5 + $0xd0] sm:$0xf]
      %v4069 = vld [vmem:[%s5 + $0xd4] sm:$0xf]
      %v4070 = vld [vmem:[%s5 + $0xd8] sm:$0xf]
      %v4071 = vld [vmem:[%s5 + $0xdc] sm:$0xf]
      %v4072 = vld [vmem:[%s5 + $0xe0] sm:$0xf]
      %v4073 = vld [vmem:[%s5 + $0xe4] sm:$0xf]
      %v4074 = vld [vmem:[%s5 + $0xe8] sm:$0xf]
      %v4075 = vld [vmem:[%s5 + $0xec] sm:$0xf]
      %v4076 = vld [vmem:[%s5 + $0xf0] sm:$0xf]
      %v4077 = vld [vmem:[%s5 + $0xf4] sm:$0xf]
      %v4078 = vld [vmem:[%s5 + $0xf8] sm:$0xf]
      %v4079 = vld [vmem:[%s5 + $0xfc] sm:$0xf]
      %v4080 = vld [vmem:[%s5 + $0x100] sm:$0xf]
      %v4081 = vld [vmem:[%s5 + $0x104] sm:$0xf]
      %v4082 = vld [vmem:[%s5 + $0x108] sm:$0xf]
      %v4083 = vld [vmem:[%s5 + $0x10c] sm:$0xf]
      %v4084 = vld [vmem:[%s5 + $0x110] sm:$0xf]
      %v4085 = vld [vmem:[%s5 + $0x114] sm:$0xf]
      %v4086 = vld [vmem:[%s5 + $0x118] sm:$0xf]
      %v4087 = vld [vmem:[%s5 + $0x11c] sm:$0xf]
      %v4088 = vld [vmem:[%s6] sm:$0x1]
      %v4090 = vperm.slane %v4088, 0
      %v4164 = vunpack.c.l.b16 %v4016
      %v4165 = vunpack.c.l.b16 %v4017
      %v4166 = vunpack.c.l.b16 %v4018
      %v4167 = vunpack.c.l.b16 %v4019
      %v4168 = vunpack.c.l.b16 %v4020
      %v4169 = vunpack.c.l.b16 %v4021
      %v4170 = vunpack.c.l.b16 %v4022
      %v4171 = vunpack.c.l.b16 %v4023
      %v4172 = vunpack.c.l.b16 %v4024
      %v4173 = vunpack.c.l.b16 %v4025
      %v4174 = vunpack.c.l.b16 %v4026
      %v4175 = vunpack.c.l.b16 %v4027
      %v4176 = vunpack.c.l.b16 %v4028
      %v4177 = vunpack.c.l.b16 %v4029
      %v4178 = vunpack.c.l.b16 %v4030
      %v4179 = vunpack.c.l.b16 %v4031
      %v4180 = vunpack.c.l.b16 %v4032
      %v4181 = vunpack.c.l.b16 %v4033
      %v4182 = vunpack.c.l.b16 %v4034
      %v4183 = vunpack.c.l.b16 %v4035
      %v4184 = vunpack.c.l.b16 %v4036
      %v4185 = vunpack.c.l.b16 %v4037
      %v4186 = vunpack.c.l.b16 %v4038
      %v4187 = vunpack.c.l.b16 %v4039
      %v4188 = vunpack.c.l.b16 %v4040
      %v4189 = vunpack.c.l.b16 %v4041
      %v4190 = vunpack.c.l.b16 %v4042
      %v4191 = vunpack.c.l.b16 %v4043
      %v4192 = vunpack.c.l.b16 %v4044
      %v4193 = vunpack.c.l.b16 %v4045
      %v4194 = vunpack.c.l.b16 %v4046
      %v4195 = vunpack.c.l.b16 %v4047
      %v4196 = vunpack.c.l.b16 %v4048
      %v4197 = vunpack.c.l.b16 %v4049
      %v4198 = vunpack.c.l.b16 %v4050
      %v4199 = vunpack.c.l.b16 %v4051
      %v4200 = vunpack.c.l.b16 %v4052
      %v4201 = vunpack.c.l.b16 %v4053
      %v4202 = vunpack.c.l.b16 %v4054
      %v4203 = vunpack.c.l.b16 %v4055
      %v4204 = vunpack.c.l.b16 %v4056
      %v4205 = vunpack.c.l.b16 %v4057
      %v4206 = vunpack.c.l.b16 %v4058
      %v4207 = vunpack.c.l.b16 %v4059
      %v4208 = vunpack.c.l.b16 %v4060
      %v4209 = vunpack.c.l.b16 %v4061
      %v4210 = vunpack.c.l.b16 %v4062
      %v4211 = vunpack.c.l.b16 %v4063
      %v4212 = vunpack.c.l.b16 %v4064
      %v4213 = vunpack.c.l.b16 %v4065
      %v4214 = vunpack.c.l.b16 %v4066
      %v4215 = vunpack.c.l.b16 %v4067
      %v4216 = vunpack.c.l.b16 %v4068
      %v4217 = vunpack.c.l.b16 %v4069
      %v4218 = vunpack.c.l.b16 %v4070
      %v4219 = vunpack.c.l.b16 %v4071
      %v4220 = vunpack.c.l.b16 %v4072
      %v4221 = vunpack.c.l.b16 %v4073
      %v4222 = vunpack.c.l.b16 %v4074
      %v4223 = vunpack.c.l.b16 %v4075
      %v4224 = vunpack.c.l.b16 %v4076
      %v4225 = vunpack.c.l.b16 %v4077
      %v4226 = vunpack.c.l.b16 %v4078
      %v4227 = vunpack.c.l.b16 %v4079
      %v4228 = vunpack.c.l.b16 %v4080
      %v4229 = vunpack.c.l.b16 %v4081
      %v4230 = vunpack.c.l.b16 %v4082
      %v4231 = vunpack.c.l.b16 %v4083
      %v4232 = vunpack.c.l.b16 %v4084
      %v4233 = vunpack.c.l.b16 %v4085
      %v4234 = vunpack.c.l.b16 %v4086
      %v4235 = vunpack.c.l.b16 %v4087
      %v4236 = vpack.c.b16 %v4165, %v4164
      %v4237 = vpack.c.b16 %v4167, %v4166
      %v4238 = vpack.c.b16 %v4169, %v4168
      %v4239 = vpack.c.b16 %v4171, %v4170
      %v4240 = vpack.c.b16 %v4173, %v4172
      %v4241 = vpack.c.b16 %v4175, %v4174
      %v4242 = vpack.c.b16 %v4177, %v4176
      %v4243 = vpack.c.b16 %v4179, %v4178
      %v4244 = vpack.c.b16 %v4181, %v4180
      %v4245 = vpack.c.b16 %v4183, %v4182
      %v4246 = vpack.c.b16 %v4185, %v4184
      %v4247 = vpack.c.b16 %v4187, %v4186
      %v4248 = vpack.c.b16 %v4189, %v4188
      %v4249 = vpack.c.b16 %v4191, %v4190
      %v4250 = vpack.c.b16 %v4193, %v4192
      %v4251 = vpack.c.b16 %v4195, %v4194
      %v4252 = vpack.c.b16 %v4197, %v4196
      %v4253 = vpack.c.b16 %v4199, %v4198
      %v4254 = vpack.c.b16 %v4201, %v4200
      %v4255 = vpack.c.b16 %v4203, %v4202
      %v4256 = vpack.c.b16 %v4205, %v4204
      %v4257 = vpack.c.b16 %v4207, %v4206
      %v4258 = vpack.c.b16 %v4209, %v4208
      %v4259 = vpack.c.b16 %v4211, %v4210
      %v4260 = vpack.c.b16 %v4213, %v4212
      %v4261 = vpack.c.b16 %v4215, %v4214
      %v4262 = vpack.c.b16 %v4217, %v4216
      %v4263 = vpack.c.b16 %v4219, %v4218
      %v4264 = vpack.c.b16 %v4221, %v4220
      %v4265 = vpack.c.b16 %v4223, %v4222
      %v4266 = vpack.c.b16 %v4225, %v4224
      %v4267 = vpack.c.b16 %v4227, %v4226
      %v4268 = vpack.c.b16 %v4229, %v4228
      %v4269 = vpack.c.b16 %v4231, %v4230
      %v4270 = vpack.c.b16 %v4233, %v4232
      %v4271 = vpack.c.b16 %v4235, %v4234
      %v4309 = vsel %vm2015, %v3957, 0
      %v4312 = vsel %vm2015, %v3961, 0
      %v4315 = vsel %vm2015, %v3965, 0
      %v4318 = vsel %vm2015, %v3969, 0
      %v4321 = vsel %vm2015, %v3973, 0
      %v4324 = vsel %vm2015, %v3977, 0
      %v4327 = vsel %vm2015, %v3981, 0
      %v4330 = vsel %vm2015, %v3985, 0
      %v4333 = vsel %vm2015, %v3989, 0
      %v4336 = vsel %vm2015, %v3993, 0
      %v4339 = vsel %vm2015, %v3997, 0
      %v4342 = vsel %vm2015, %v4001, 0
      %v4345 = vsel %vm2015, %v4005, 0
      %v4348 = vsel %vm2015, %v4009, 0
      %v4351 = vsel %vm2015, %v4013, 0
      %4353 = vmatpush.bf16.msra.mxu0 %v4243
      %4354 = vmatpush.bf16.msra.mxu0 %v4242
      %4355 = vmatpush.bf16.msra.mxu0 %v4241
      %4356 = vmatpush.bf16.msra.mxu0 %v4240
      %4357 = vmatpush.bf16.msra.mxu0 %v4239
      %4358 = vmatpush.bf16.msra.mxu0 %v4238
      %4359 = vmatpush.bf16.msra.mxu0 %v4237
      %4360 = vmatpush.bf16.msra.mxu0 %v4236
      %4361 = vmatmul.bf16.gmra.mxu0 %v3953
      %v4362 = vpop.f32.mrf.mxu0
      %v4363 = vadd.f32 %v4090, %v4362
      %v4364 = vpop.f32.mrf.mxu0
      %v4365 = vadd.f32 %v4090, %v4364
      %4366 = vmatmul.bf16.gmra.mxu0 %v3953
      %v4367 = vpop.f32.mrf.mxu0
      %v4368 = vadd.f32 %v4090, %v4367
      %v4369 = vpop.f32.mrf.mxu0
      %v4370 = vadd.f32 %v4090, %v4369
      %4371 = vmatmul.bf16.gmra.mxu0 %v3956
      %v4372 = vpop.f32.mrf.mxu0
      %v4373 = vadd.f32 %v4090, %v4372
      %v4374 = vpop.f32.mrf.mxu0
      %v4375 = vadd.f32 %v4090, %v4374
      %4376 = vmatmul.bf16.gmra.mxu0 %v3960
      %v4377 = vpop.f32.mrf.mxu0
      %v4378 = vadd.f32 %v4090, %v4377
      %v4379 = vpop.f32.mrf.mxu0
      %v4380 = vadd.f32 %v4090, %v4379
      %4381 = vmatmul.bf16.gmra.mxu0 %v3964
      %v4382 = vpop.f32.mrf.mxu0
      %v4383 = vadd.f32 %v4090, %v4382
      %v4384 = vpop.f32.mrf.mxu0
      %v4385 = vadd.f32 %v4090, %v4384
      %4386 = vmatmul.bf16.gmra.mxu0 %v3968
      %v4387 = vpop.f32.mrf.mxu0
      %v4388 = vadd.f32 %v4090, %v4387
      %v4389 = vpop.f32.mrf.mxu0
      %v4390 = vadd.f32 %v4090, %v4389
      %4391 = vmatmul.bf16.gmra.mxu0 %v3972
      %v4392 = vpop.f32.mrf.mxu0
      %v4393 = vadd.f32 %v4090, %v4392
      %v4394 = vpop.f32.mrf.mxu0
      %v4395 = vadd.f32 %v4090, %v4394
      %4396 = vmatmul.bf16.gmra.mxu0 %v3976
      %v4397 = vpop.f32.mrf.mxu0
      %v4398 = vadd.f32 %v4090, %v4397
      %v4399 = vpop.f32.mrf.mxu0
      %v4400 = vadd.f32 %v4090, %v4399
      %4401 = vmatmul.bf16.gmra.mxu0 %v3980
      %v4402 = vpop.f32.mrf.mxu0
      %v4403 = vadd.f32 %v4090, %v4402
      %v4404 = vpop.f32.mrf.mxu0
      %v4405 = vadd.f32 %v4090, %v4404
      %4406 = vmatmul.bf16.gmra.mxu0 %v3984
      %v4407 = vpop.f32.mrf.mxu0
      %v4408 = vadd.f32 %v4090, %v4407
      %v4409 = vpop.f32.mrf.mxu0
      %v4410 = vadd.f32 %v4090, %v4409
      %4411 = vmatmul.bf16.gmra.mxu0 %v3988
      %v4412 = vpop.f32.mrf.mxu0
      %v4413 = vadd.f32 %v4090, %v4412
      %v4414 = vpop.f32.mrf.mxu0
      %v4415 = vadd.f32 %v4090, %v4414
      %4416 = vmatmul.bf16.gmra.mxu0 %v3992
      %v4417 = vpop.f32.mrf.mxu0
      %v4418 = vadd.f32 %v4090, %v4417
      %v4419 = vpop.f32.mrf.mxu0
      %v4420 = vadd.f32 %v4090, %v4419
      %4421 = vmatmul.bf16.gmra.mxu0 %v3996
      %v4422 = vpop.f32.mrf.mxu0
      %v4423 = vadd.f32 %v4090, %v4422
      %v4424 = vpop.f32.mrf.mxu0
      %v4425 = vadd.f32 %v4090, %v4424
      %4426 = vmatmul.bf16.gmra.mxu0 %v4000
      %v4427 = vpop.f32.mrf.mxu0
      %v4428 = vadd.f32 %v4090, %v4427
      %v4429 = vpop.f32.mrf.mxu0
      %v4430 = vadd.f32 %v4090, %v4429
      %4431 = vmatmul.bf16.gmra.mxu0 %v4004
      %v4432 = vpop.f32.mrf.mxu0
      %v4433 = vadd.f32 %v4090, %v4432
      %v4434 = vpop.f32.mrf.mxu0
      %v4435 = vadd.f32 %v4090, %v4434
      %4436 = vmatmul.bf16.gmra.mxu0 %v4008
      %v4437 = vpop.f32.mrf.mxu0
      %v4438 = vadd.f32 %v4090, %v4437
      %v4439 = vpop.f32.mrf.mxu0
      %v4440 = vadd.f32 %v4090, %v4439
      %4441 = vdwg.mxu0
      %4442 = vmatpush.bf16.msra.mxu0 %v4251
      %4443 = vmatpush.bf16.msra.mxu0 %v4250
      %4444 = vmatpush.bf16.msra.mxu0 %v4249
      %4445 = vmatpush.bf16.msra.mxu0 %v4248
      %4446 = vmatpush.bf16.msra.mxu0 %v4247
      %4447 = vmatpush.bf16.msra.mxu0 %v4246
      %4448 = vmatpush.bf16.msra.mxu0 %v4245
      %4449 = vmatpush.bf16.msra.mxu0 %v4244
      %4450 = vmatmul.bf16.gmra.mxu0 %v3954
      %v4451 = vpop.f32.mrf.mxu0
      %v4452 = vadd.f32 %v4363, %v4451
      %v4453 = vpop.f32.mrf.mxu0
      %v4454 = vadd.f32 %v4365, %v4453
      %4455 = vmatmul.bf16.gmra.mxu0 %v3958
      %v4456 = vpop.f32.mrf.mxu0
      %v4457 = vadd.f32 %v4368, %v4456
      %v4458 = vpop.f32.mrf.mxu0
      %v4459 = vadd.f32 %v4370, %v4458
      %4460 = vmatmul.bf16.gmra.mxu0 %v3962
      %v4461 = vpop.f32.mrf.mxu0
      %v4462 = vadd.f32 %v4373, %v4461
      %v4463 = vpop.f32.mrf.mxu0
      %v4464 = vadd.f32 %v4375, %v4463
      %4465 = vmatmul.bf16.gmra.mxu0 %v3966
      %v4466 = vpop.f32.mrf.mxu0
      %v4467 = vadd.f32 %v4378, %v4466
      %v4468 = vpop.f32.mrf.mxu0
      %v4469 = vadd.f32 %v4380, %v4468
      %4470 = vmatmul.bf16.gmra.mxu0 %v3970
      %v4471 = vpop.f32.mrf.mxu0
      %v4472 = vadd.f32 %v4383, %v4471
      %v4473 = vpop.f32.mrf.mxu0
      %v4474 = vadd.f32 %v4385, %v4473
      %4475 = vmatmul.bf16.gmra.mxu0 %v3974
      %v4476 = vpop.f32.mrf.mxu0
      %v4477 = vadd.f32 %v4388, %v4476
      %v4478 = vpop.f32.mrf.mxu0
      %v4479 = vadd.f32 %v4390, %v4478
      %4480 = vmatmul.bf16.gmra.mxu0 %v3978
      %v4481 = vpop.f32.mrf.mxu0
      %v4482 = vadd.f32 %v4393, %v4481
      %v4483 = vpop.f32.mrf.mxu0
      %v4484 = vadd.f32 %v4395, %v4483
      %4485 = vmatmul.bf16.gmra.mxu0 %v3982
      %v4486 = vpop.f32.mrf.mxu0
      %v4487 = vadd.f32 %v4398, %v4486
      %v4488 = vpop.f32.mrf.mxu0
      %v4489 = vadd.f32 %v4400, %v4488
      %4490 = vmatmul.bf16.gmra.mxu0 %v3986
      %v4491 = vpop.f32.mrf.mxu0
      %v4492 = vadd.f32 %v4403, %v4491
      %v4493 = vpop.f32.mrf.mxu0
      %v4494 = vadd.f32 %v4405, %v4493
      %4495 = vmatmul.bf16.gmra.mxu0 %v3990
      %v4496 = vpop.f32.mrf.mxu0
      %v4497 = vadd.f32 %v4408, %v4496
      %v4498 = vpop.f32.mrf.mxu0
      %v4499 = vadd.f32 %v4410, %v4498
      %4500 = vmatmul.bf16.gmra.mxu0 %v3994
      %v4501 = vpop.f32.mrf.mxu0
      %v4502 = vadd.f32 %v4413, %v4501
      %v4503 = vpop.f32.mrf.mxu0
      %v4504 = vadd.f32 %v4415, %v4503
      %4505 = vmatmul.bf16.gmra.mxu0 %v3998
      %v4506 = vpop.f32.mrf.mxu0
      %v4507 = vadd.f32 %v4418, %v4506
      %v4508 = vpop.f32.mrf.mxu0
      %v4509 = vadd.f32 %v4420, %v4508
      %4510 = vmatmul.bf16.gmra.mxu0 %v4002
      %v4511 = vpop.f32.mrf.mxu0
      %v4512 = vadd.f32 %v4423, %v4511
      %v4513 = vpop.f32.mrf.mxu0
      %v4514 = vadd.f32 %v4425, %v4513
      %4515 = vmatmul.bf16.gmra.mxu0 %v4006
      %v4516 = vpop.f32.mrf.mxu0
      %v4517 = vadd.f32 %v4428, %v4516
      %v4518 = vpop.f32.mrf.mxu0
      %v4519 = vadd.f32 %v4430, %v4518
      %4520 = vmatmul.bf16.gmra.mxu0 %v4010
      %v4521 = vpop.f32.mrf.mxu0
      %v4522 = vadd.f32 %v4433, %v4521
      %v4523 = vpop.f32.mrf.mxu0
      %v4524 = vadd.f32 %v4435, %v4523
      %4525 = vmatmul.bf16.gmra.mxu0 %v4014
      %v4526 = vpop.f32.mrf.mxu0
      %v4527 = vadd.f32 %v4438, %v4526
      %v4528 = vpop.f32.mrf.mxu0
      %v4529 = vadd.f32 %v4440, %v4528
      %4530 = vdwg.mxu0
      %4531 = vmatpush.bf16.msra.mxu0 %v4259
      %4532 = vmatpush.bf16.msra.mxu0 %v4258
      %4533 = vmatpush.bf16.msra.mxu0 %v4257
      %4534 = vmatpush.bf16.msra.mxu0 %v4256
      %4535 = vmatpush.bf16.msra.mxu0 %v4255
      %4536 = vmatpush.bf16.msra.mxu0 %v4254
      %4537 = vmatpush.bf16.msra.mxu0 %v4253
      %4538 = vmatpush.bf16.msra.mxu0 %v4252
      %4539 = vmatmul.bf16.gmra.mxu0 %v3955
      %v4540 = vpop.f32.mrf.mxu0
      %v4541 = vadd.f32 %v4452, %v4540
      %v4542 = vpop.f32.mrf.mxu0
      %v4543 = vadd.f32 %v4454, %v4542
      %4544 = vmatmul.bf16.gmra.mxu0 %v3959
      %v4545 = vpop.f32.mrf.mxu0
      %v4546 = vadd.f32 %v4457, %v4545
      %v4547 = vpop.f32.mrf.mxu0
      %v4548 = vadd.f32 %v4459, %v4547
      %4549 = vmatmul.bf16.gmra.mxu0 %v3963
      %v4550 = vpop.f32.mrf.mxu0
      %v4551 = vadd.f32 %v4462, %v4550
      %v4552 = vpop.f32.mrf.mxu0
      %v4553 = vadd.f32 %v4464, %v4552
      %4554 = vmatmul.bf16.gmra.mxu0 %v3967
      %v4555 = vpop.f32.mrf.mxu0
      %v4556 = vadd.f32 %v4467, %v4555
      %v4557 = vpop.f32.mrf.mxu0
      %v4558 = vadd.f32 %v4469, %v4557
      %4559 = vmatmul.bf16.gmra.mxu0 %v3971
      %v4560 = vpop.f32.mrf.mxu0
      %v4561 = vadd.f32 %v4472, %v4560
      %v4562 = vpop.f32.mrf.mxu0
      %v4563 = vadd.f32 %v4474, %v4562
      %4564 = vmatmul.bf16.gmra.mxu0 %v3975
      %v4565 = vpop.f32.mrf.mxu0
      %v4566 = vadd.f32 %v4477, %v4565
      %v4567 = vpop.f32.mrf.mxu0
      %v4568 = vadd.f32 %v4479, %v4567
      %4569 = vmatmul.bf16.gmra.mxu0 %v3979
      %v4570 = vpop.f32.mrf.mxu0
      %v4571 = vadd.f32 %v4482, %v4570
      %v4572 = vpop.f32.mrf.mxu0
      %v4573 = vadd.f32 %v4484, %v4572
      %4574 = vmatmul.bf16.gmra.mxu0 %v3983
      %v4575 = vpop.f32.mrf.mxu0
      %v4576 = vadd.f32 %v4487, %v4575
      %v4577 = vpop.f32.mrf.mxu0
      %v4578 = vadd.f32 %v4489, %v4577
      %4579 = vmatmul.bf16.gmra.mxu0 %v3987
      %v4580 = vpop.f32.mrf.mxu0
      %v4581 = vadd.f32 %v4492, %v4580
      %v4582 = vpop.f32.mrf.mxu0
      %v4583 = vadd.f32 %v4494, %v4582
      %4584 = vmatmul.bf16.gmra.mxu0 %v3991
      %v4585 = vpop.f32.mrf.mxu0
      %v4586 = vadd.f32 %v4497, %v4585
      %v4587 = vpop.f32.mrf.mxu0
      %v4588 = vadd.f32 %v4499, %v4587
      %4589 = vmatmul.bf16.gmra.mxu0 %v3995
      %v4590 = vpop.f32.mrf.mxu0
      %v4591 = vadd.f32 %v4502, %v4590
      %v4592 = vpop.f32.mrf.mxu0
      %v4593 = vadd.f32 %v4504, %v4592
      %4594 = vmatmul.bf16.gmra.mxu0 %v3999
      %v4595 = vpop.f32.mrf.mxu0
      %v4596 = vadd.f32 %v4507, %v4595
      %v4597 = vpop.f32.mrf.mxu0
      %v4598 = vadd.f32 %v4509, %v4597
      %4599 = vmatmul.bf16.gmra.mxu0 %v4003
      %v4600 = vpop.f32.mrf.mxu0
      %v4601 = vadd.f32 %v4512, %v4600
      %v4602 = vpop.f32.mrf.mxu0
      %v4603 = vadd.f32 %v4514, %v4602
      %4604 = vmatmul.bf16.gmra.mxu0 %v4007
      %v4605 = vpop.f32.mrf.mxu0
      %v4606 = vadd.f32 %v4517, %v4605
      %v4607 = vpop.f32.mrf.mxu0
      %v4608 = vadd.f32 %v4519, %v4607
      %4609 = vmatmul.bf16.gmra.mxu0 %v4011
      %v4610 = vpop.f32.mrf.mxu0
      %v4611 = vadd.f32 %v4522, %v4610
      %v4612 = vpop.f32.mrf.mxu0
      %v4613 = vadd.f32 %v4524, %v4612
      %4614 = vmatmul.bf16.gmra.mxu0 %v4015
      %v4615 = vpop.f32.mrf.mxu0
      %v4616 = vadd.f32 %v4527, %v4615
      %v4617 = vpop.f32.mrf.mxu0
      %v4618 = vadd.f32 %v4529, %v4617
      %4619 = vdwg.mxu0
      %4620 = vmatpush.bf16.msra.mxu0 %v4267
      %4621 = vmatpush.bf16.msra.mxu0 %v4266
      %4622 = vmatpush.bf16.msra.mxu0 %v4265
      %4623 = vmatpush.bf16.msra.mxu0 %v4264
      %4624 = vmatpush.bf16.msra.mxu0 %v4263
      %4625 = vmatpush.bf16.msra.mxu0 %v4262
      %4626 = vmatpush.bf16.msra.mxu0 %v4261
      %4627 = vmatpush.bf16.msra.mxu0 %v4260
      %4628 = vmatmul.bf16.gmra.mxu0 %v3956
      %v4629 = vpop.f32.mrf.mxu0
      %v4630 = vadd.f32 %v4541, %v4629
      %v4631 = vpop.f32.mrf.mxu0
      %v4632 = vadd.f32 %v4543, %v4631
      %4633 = vmatmul.bf16.gmra.mxu0 %v3960
      %v4634 = vpop.f32.mrf.mxu0
      %v4635 = vadd.f32 %v4546, %v4634
      %v4636 = vpop.f32.mrf.mxu0
      %v4637 = vadd.f32 %v4548, %v4636
      %4638 = vmatmul.bf16.gmra.mxu0 %v3964
      %v4639 = vpop.f32.mrf.mxu0
      %v4640 = vadd.f32 %v4551, %v4639
      %v4641 = vpop.f32.mrf.mxu0
      %v4642 = vadd.f32 %v4553, %v4641
      %4643 = vmatmul.bf16.gmra.mxu0 %v3968
      %v4644 = vpop.f32.mrf.mxu0
      %v4645 = vadd.f32 %v4556, %v4644
      %v4646 = vpop.f32.mrf.mxu0
      %v4647 = vadd.f32 %v4558, %v4646
      %4648 = vmatmul.bf16.gmra.mxu0 %v3972
      %v4649 = vpop.f32.mrf.mxu0
      %v4650 = vadd.f32 %v4561, %v4649
      %v4651 = vpop.f32.mrf.mxu0
      %v4652 = vadd.f32 %v4563, %v4651
      %4653 = vmatmul.bf16.gmra.mxu0 %v3976
      %v4654 = vpop.f32.mrf.mxu0
      %v4655 = vadd.f32 %v4566, %v4654
      %v4656 = vpop.f32.mrf.mxu0
      %v4657 = vadd.f32 %v4568, %v4656
      %4658 = vmatmul.bf16.gmra.mxu0 %v3980
      %v4659 = vpop.f32.mrf.mxu0
      %v4660 = vadd.f32 %v4571, %v4659
      %v4661 = vpop.f32.mrf.mxu0
      %v4662 = vadd.f32 %v4573, %v4661
      %4663 = vmatmul.bf16.gmra.mxu0 %v3984
      %v4664 = vpop.f32.mrf.mxu0
      %v4665 = vadd.f32 %v4576, %v4664
      %v4666 = vpop.f32.mrf.mxu0
      %v4667 = vadd.f32 %v4578, %v4666
      %4668 = vmatmul.bf16.gmra.mxu0 %v3988
      %v4669 = vpop.f32.mrf.mxu0
      %v4670 = vadd.f32 %v4581, %v4669
      %v4671 = vpop.f32.mrf.mxu0
      %v4672 = vadd.f32 %v4583, %v4671
      %4673 = vmatmul.bf16.gmra.mxu0 %v3992
      %v4674 = vpop.f32.mrf.mxu0
      %v4675 = vadd.f32 %v4586, %v4674
      %v4676 = vpop.f32.mrf.mxu0
      %v4677 = vadd.f32 %v4588, %v4676
      %4678 = vmatmul.bf16.gmra.mxu0 %v3996
      %v4679 = vpop.f32.mrf.mxu0
      %v4680 = vadd.f32 %v4591, %v4679
      %v4681 = vpop.f32.mrf.mxu0
      %v4682 = vadd.f32 %v4593, %v4681
      %4683 = vmatmul.bf16.gmra.mxu0 %v4000
      %v4684 = vpop.f32.mrf.mxu0
      %v4685 = vadd.f32 %v4596, %v4684
      %v4686 = vpop.f32.mrf.mxu0
      %v4687 = vadd.f32 %v4598, %v4686
      %4688 = vmatmul.bf16.gmra.mxu0 %v4004
      %v4689 = vpop.f32.mrf.mxu0
      %v4690 = vadd.f32 %v4601, %v4689
      %v4691 = vpop.f32.mrf.mxu0
      %v4692 = vadd.f32 %v4603, %v4691
      %4693 = vmatmul.bf16.gmra.mxu0 %v4008
      %v4694 = vpop.f32.mrf.mxu0
      %v4695 = vadd.f32 %v4606, %v4694
      %v4696 = vpop.f32.mrf.mxu0
      %v4697 = vadd.f32 %v4608, %v4696
      %4698 = vmatmul.bf16.gmra.mxu0 %v4012
      %v4699 = vpop.f32.mrf.mxu0
      %v4700 = vadd.f32 %v4611, %v4699
      %v4701 = vpop.f32.mrf.mxu0
      %v4702 = vadd.f32 %v4613, %v4701
      %4703 = vmatmul.bf16.gmra.mxu0 %v4012
      %v4704 = vpop.f32.mrf.mxu0
      %v4705 = vadd.f32 %v4616, %v4704
      %v4706 = vpop.f32.mrf.mxu0
      %v4707 = vadd.f32 %v4618, %v4706
      %4708 = vdwg.mxu0
      %4709 = vmatpush.bf16.msra.mxu0 0
      %4710 = vmatpush.bf16.msra.mxu0 0
      %4711 = vmatpush.bf16.msra.mxu0 0
      %4712 = vmatpush.bf16.msra.mxu0 0
      %4713 = vmatpush.bf16.msra.mxu0 %v4271
      %4714 = vmatpush.bf16.msra.mxu0 %v4270
      %4715 = vmatpush.bf16.msra.mxu0 %v4269
      %4716 = vmatpush.bf16.msra.mxu0 %v4268
      %4717 = vmatmul.bf16.gmra.mxu0 %v4309
      %v4718 = vpop.f32.mrf.mxu0
      %v4719 = vadd.f32 %v4630, %v4718
      %v4720 = vpop.f32.mrf.mxu0
      %v4721 = vadd.f32 %v4632, %v4720
      %4722 = vmatmul.bf16.gmra.mxu0 %v4312
      %v4723 = vpop.f32.mrf.mxu0
      %v4724 = vadd.f32 %v4635, %v4723
      %v4725 = vpop.f32.mrf.mxu0
      %v4726 = vadd.f32 %v4637, %v4725
      %4727 = vmatmul.bf16.gmra.mxu0 %v4315
      %v4728 = vpop.f32.mrf.mxu0
      %v4729 = vadd.f32 %v4640, %v4728
      %v4730 = vpop.f32.mrf.mxu0
      %v4731 = vadd.f32 %v4642, %v4730
      %4732 = vmatmul.bf16.gmra.mxu0 %v4318
      %v4733 = vpop.f32.mrf.mxu0
      %v4734 = vadd.f32 %v4645, %v4733
      %v4735 = vpop.f32.mrf.mxu0
      %v4736 = vadd.f32 %v4647, %v4735
      %4737 = vmatmul.bf16.gmra.mxu0 %v4321
      %v4738 = vpop.f32.mrf.mxu0
      %v4739 = vadd.f32 %v4650, %v4738
      %v4740 = vpop.f32.mrf.mxu0
      %v4741 = vadd.f32 %v4652, %v4740
      %4742 = vmatmul.bf16.gmra.mxu0 %v4324
      %v4743 = vpop.f32.mrf.mxu0
      %v4744 = vadd.f32 %v4655, %v4743
      %v4745 = vpop.f32.mrf.mxu0
      %v4746 = vadd.f32 %v4657, %v4745
      %4747 = vmatmul.bf16.gmra.mxu0 %v4327
      %v4748 = vpop.f32.mrf.mxu0
      %v4749 = vadd.f32 %v4660, %v4748
      %v4750 = vpop.f32.mrf.mxu0
      %v4751 = vadd.f32 %v4662, %v4750
      %4752 = vmatmul.bf16.gmra.mxu0 %v4330
      %v4753 = vpop.f32.mrf.mxu0
      %v4754 = vadd.f32 %v4665, %v4753
      %v4755 = vpop.f32.mrf.mxu0
      %v4756 = vadd.f32 %v4667, %v4755
      %4757 = vmatmul.bf16.gmra.mxu0 %v4333
      %v4758 = vpop.f32.mrf.mxu0
      %v4759 = vadd.f32 %v4670, %v4758
      %v4760 = vpop.f32.mrf.mxu0
      %v4761 = vadd.f32 %v4672, %v4760
      %4762 = vmatmul.bf16.gmra.mxu0 %v4336
      %v4763 = vpop.f32.mrf.mxu0
      %v4764 = vadd.f32 %v4675, %v4763
      %v4765 = vpop.f32.mrf.mxu0
      %v4766 = vadd.f32 %v4677, %v4765
      %4767 = vmatmul.bf16.gmra.mxu0 %v4339
      %v4768 = vpop.f32.mrf.mxu0
      %v4769 = vadd.f32 %v4680, %v4768
      %v4770 = vpop.f32.mrf.mxu0
      %v4771 = vadd.f32 %v4682, %v4770
      %4772 = vmatmul.bf16.gmra.mxu0 %v4342
      %v4773 = vpop.f32.mrf.mxu0
      %v4774 = vadd.f32 %v4685, %v4773
      %v4775 = vpop.f32.mrf.mxu0
      %v4776 = vadd.f32 %v4687, %v4775
      %4777 = vmatmul.bf16.gmra.mxu0 %v4345
      %v4778 = vpop.f32.mrf.mxu0
      %v4779 = vadd.f32 %v4690, %v4778
      %v4780 = vpop.f32.mrf.mxu0
      %v4781 = vadd.f32 %v4692, %v4780
      %4782 = vmatmul.bf16.gmra.mxu0 %v4348
      %v4783 = vpop.f32.mrf.mxu0
      %v4784 = vadd.f32 %v4695, %v4783
      %v4785 = vpop.f32.mrf.mxu0
      %v4786 = vadd.f32 %v4697, %v4785
      %4787 = vmatmul.bf16.gmra.mxu0 %v4351
      %v4788 = vpop.f32.mrf.mxu0
      %v4789 = vadd.f32 %v4700, %v4788
      %v4790 = vpop.f32.mrf.mxu0
      %v4791 = vadd.f32 %v4702, %v4790
      %4792 = vmatmul.bf16.gmra.mxu0 %v4351
      %v4793 = vpop.f32.mrf.mxu0
      %v4794 = vadd.f32 %v4705, %v4793
      %v4795 = vpop.f32.mrf.mxu0
      %v4796 = vadd.f32 %v4707, %v4795
      %4797 = vdwg.mxu0
      %v4798 = vadd.f32 %v4719, %v4721
      %v4799 = vadd.f32 %v4798, %v4724
      %v4800 = vadd.f32 %v4799, %v4726
      %v4801 = vadd.f32 %v4800, %v4729
      %v4802 = vadd.f32 %v4801, %v4731
      %v4803 = vadd.f32 %v4802, %v4734
      %v4804 = vadd.f32 %v4803, %v4736
      %v4805 = vadd.f32 %v4804, %v4739
      %v4806 = vadd.f32 %v4805, %v4741
      %v4807 = vadd.f32 %v4806, %v4744
      %v4808 = vadd.f32 %v4807, %v4746
      %v4809 = vadd.f32 %v4808, %v4749
      %v4810 = vadd.f32 %v4809, %v4751
      %v4811 = vadd.f32 %v4810, %v4754
      %v4812 = vadd.f32 %v4811, %v4756
      %v4813 = vadd.f32 %v4812, %v4759
      %v4814 = vadd.f32 %v4813, %v4761
      %v4815 = vadd.f32 %v4814, %v4764
      %v4816 = vadd.f32 %v4815, %v4766
      %v4817 = vadd.f32 %v4816, %v4769
      %v4818 = vadd.f32 %v4817, %v4771
      %v4819 = vadd.f32 %v4818, %v4774
      %v4820 = vadd.f32 %v4819, %v4776
      %v4821 = vadd.f32 %v4820, %v4779
      %v4822 = vadd.f32 %v4821, %v4781
      %v4823 = vadd.f32 %v4822, %v4784
      %v4824 = vadd.f32 %v4823, %v4786
      %v4825 = vadd.f32 %v4824, %v4789
      %v4826 = vadd.f32 %v4825, %v4791
      %v4827 = vadd.f32 %v4826, %v4794
      %v4828 = vadd.f32 %v4827, %v4796
      %v4829 = vrot.slane %v4828, 4
      %v4830 = vadd.f32 %v4828, %v4829
      %v4831 = vrot.slane %v4830, 2
      %v4832 = vadd.f32 %v4830, %v4831
      %v4833 = vrot.slane %v4832, 1
      %v4834 = vadd.f32 %v4832, %v4833
      %v4835 = vmul.f32 %v4834, %v614
      %v4836 = vsub.f32 %v4719, %v4835
      %v4837 = vsub.f32 %v4721, %v4835
      %v4838 = vsub.f32 %v4724, %v4835
      %v4839 = vsub.f32 %v4726, %v4835
      %v4840 = vsub.f32 %v4729, %v4835
      %v4841 = vsub.f32 %v4731, %v4835
      %v4842 = vsub.f32 %v4734, %v4835
      %v4843 = vsub.f32 %v4736, %v4835
      %v4844 = vsub.f32 %v4739, %v4835
      %v4845 = vsub.f32 %v4741, %v4835
      %v4846 = vsub.f32 %v4744, %v4835
      %v4847 = vsub.f32 %v4746, %v4835
      %v4848 = vsub.f32 %v4749, %v4835
      %v4849 = vsub.f32 %v4751, %v4835
      %v4850 = vsub.f32 %v4754, %v4835
      %v4851 = vsub.f32 %v4756, %v4835
      %v4852 = vsub.f32 %v4759, %v4835
      %v4853 = vsub.f32 %v4761, %v4835
      %v4854 = vsub.f32 %v4764, %v4835
      %v4855 = vsub.f32 %v4766, %v4835
      %v4856 = vsub.f32 %v4769, %v4835
      %v4857 = vsub.f32 %v4771, %v4835
      %v4858 = vsub.f32 %v4774, %v4835
      %v4859 = vsub.f32 %v4776, %v4835
      %v4860 = vsub.f32 %v4779, %v4835
      %v4861 = vsub.f32 %v4781, %v4835
      %v4862 = vsub.f32 %v4784, %v4835
      %v4863 = vsub.f32 %v4786, %v4835
      %v4864 = vsub.f32 %v4789, %v4835
      %v4865 = vsub.f32 %v4791, %v4835
      %v4866 = vsub.f32 %v4794, %v4835
      %v4867 = vsub.f32 %v4796, %v4835
      %v4868 = vmul.f32 %v4836, %v4836
      %v4869 = vmul.f32 %v4837, %v4837
      %v4870 = vmul.f32 %v4838, %v4838
      %v4871 = vmul.f32 %v4839, %v4839
      %v4872 = vmul.f32 %v4840, %v4840
      %v4873 = vmul.f32 %v4841, %v4841
      %v4874 = vmul.f32 %v4842, %v4842
      %v4875 = vmul.f32 %v4843, %v4843
      %v4876 = vmul.f32 %v4844, %v4844
      %v4877 = vmul.f32 %v4845, %v4845
      %v4878 = vmul.f32 %v4846, %v4846
      %v4879 = vmul.f32 %v4847, %v4847
      %v4880 = vmul.f32 %v4848, %v4848
      %v4881 = vmul.f32 %v4849, %v4849
      %v4882 = vmul.f32 %v4850, %v4850
      %v4883 = vmul.f32 %v4851, %v4851
      %v4884 = vmul.f32 %v4852, %v4852
      %v4885 = vmul.f32 %v4853, %v4853
      %v4886 = vmul.f32 %v4854, %v4854
      %v4887 = vmul.f32 %v4855, %v4855
      %v4888 = vmul.f32 %v4856, %v4856
      %v4889 = vmul.f32 %v4857, %v4857
      %v4890 = vmul.f32 %v4858, %v4858
      %v4891 = vmul.f32 %v4859, %v4859
      %v4892 = vmul.f32 %v4860, %v4860
      %v4893 = vmul.f32 %v4861, %v4861
      %v4894 = vmul.f32 %v4862, %v4862
      %v4895 = vmul.f32 %v4863, %v4863
      %v4896 = vmul.f32 %v4864, %v4864
      %v4897 = vmul.f32 %v4865, %v4865
      %v4898 = vmul.f32 %v4866, %v4866
      %v4899 = vmul.f32 %v4867, %v4867
      %v4900 = vadd.f32 %v4868, %v4869
      %v4901 = vadd.f32 %v4900, %v4870
      %v4902 = vadd.f32 %v4901, %v4871
      %v4903 = vadd.f32 %v4902, %v4872
      %v4904 = vadd.f32 %v4903, %v4873
      %v4905 = vadd.f32 %v4904, %v4874
      %v4906 = vadd.f32 %v4905, %v4875
      %v4907 = vadd.f32 %v4906, %v4876
      %v4908 = vadd.f32 %v4907, %v4877
      %v4909 = vadd.f32 %v4908, %v4878
      %v4910 = vadd.f32 %v4909, %v4879
      %v4911 = vadd.f32 %v4910, %v4880
      %v4912 = vadd.f32 %v4911, %v4881
      %v4913 = vadd.f32 %v4912, %v4882
      %v4914 = vadd.f32 %v4913, %v4883
      %v4915 = vadd.f32 %v4914, %v4884
      %v4916 = vadd.f32 %v4915, %v4885
      %v4917 = vadd.f32 %v4916, %v4886
      %v4918 = vadd.f32 %v4917, %v4887
      %v4919 = vadd.f32 %v4918, %v4888
      %v4920 = vadd.f32 %v4919, %v4889
      %v4921 = vadd.f32 %v4920, %v4890
      %v4922 = vadd.f32 %v4921, %v4891
      %v4923 = vadd.f32 %v4922, %v4892
      %v4924 = vadd.f32 %v4923, %v4893
      %v4925 = vadd.f32 %v4924, %v4894
      %v4926 = vadd.f32 %v4925, %v4895
      %v4927 = vadd.f32 %v4926, %v4896
      %v4928 = vadd.f32 %v4927, %v4897
      %v4929 = vadd.f32 %v4928, %v4898
      %v4930 = vadd.f32 %v4929, %v4899
      %v4931 = vrot.slane %v4930, 4
      %v4932 = vadd.f32 %v4930, %v4931
      %v4933 = vrot.slane %v4932, 2
      %v4934 = vadd.f32 %v4932, %v4933
      %v4935 = vrot.slane %v4934, 1
      %v4936 = vadd.f32 %v4934, %v4935
      %v4937 = vmul.f32 %v4936, %v614
      %v4938 = vadd.f32 %v4937, 1e-05
      %v4939 = vrsqrt.pop %v4938
      %v4940 = vmul.f32 %v4939, %v4938
      %v4941 = vmul.f32 %v4940, %v4939
      %v4942 = vmul.f32 0.5, %v4941
      %v4943 = vsub.f32 1.5, %v4942
      %v4944 = vmul.f32 %v4939, %v4943
      %vm4945 = vweird.f32 %v4938
      %vm4946 = vweird.f32 %v4939
      %vm4947 = vmor %vm4945, %vm4946
      %v4948 = vsel %vm4947, %v4939, %v4944
      %v4949 = vmul.f32 %v4836, %v4948
      %v4950 = vmul.f32 %v4837, %v4948
      %v4951 = vmul.f32 %v4838, %v4948
      %v4952 = vmul.f32 %v4839, %v4948
      %v4953 = vmul.f32 %v4840, %v4948
      %v4954 = vmul.f32 %v4841, %v4948
      %v4955 = vmul.f32 %v4842, %v4948
      %v4956 = vmul.f32 %v4843, %v4948
      %v4957 = vmul.f32 %v4844, %v4948
      %v4958 = vmul.f32 %v4845, %v4948
      %v4959 = vmul.f32 %v4846, %v4948
      %v4960 = vmul.f32 %v4847, %v4948
      %v4961 = vmul.f32 %v4848, %v4948
      %v4962 = vmul.f32 %v4849, %v4948
      %v4963 = vmul.f32 %v4850, %v4948
      %v4964 = vmul.f32 %v4851, %v4948
      %v4965 = vmul.f32 %v4852, %v4948
      %v4966 = vmul.f32 %v4853, %v4948
      %v4967 = vmul.f32 %v4854, %v4948
      %v4968 = vmul.f32 %v4855, %v4948
      %v4969 = vmul.f32 %v4856, %v4948
      %v4970 = vmul.f32 %v4857, %v4948
      %v4971 = vmul.f32 %v4858, %v4948
      %v4972 = vmul.f32 %v4859, %v4948
      %v4973 = vmul.f32 %v4860, %v4948
      %v4974 = vmul.f32 %v4861, %v4948
      %v4975 = vmul.f32 %v4862, %v4948
      %v4976 = vmul.f32 %v4863, %v4948
      %v4977 = vmul.f32 %v4864, %v4948
      %v4978 = vmul.f32 %v4865, %v4948
      %v4979 = vmul.f32 %v4866, %v4948
      %v4980 = vmul.f32 %v4867, %v4948
      %vm4981 = vcmp.gt.f32.partialorder %v4949, 0.0
      %vm4982 = vcmp.gt.f32.partialorder %v4950, 0.0
      %vm4983 = vcmp.gt.f32.partialorder %v4951, 0.0
      %vm4984 = vcmp.gt.f32.partialorder %v4952, 0.0
      %vm4985 = vcmp.gt.f32.partialorder %v4953, 0.0
      %vm4986 = vcmp.gt.f32.partialorder %v4954, 0.0
      %vm4987 = vcmp.gt.f32.partialorder %v4955, 0.0
      %vm4988 = vcmp.gt.f32.partialorder %v4956, 0.0
      %vm4989 = vcmp.gt.f32.partialorder %v4957, 0.0
      %vm4990 = vcmp.gt.f32.partialorder %v4958, 0.0
      %vm4991 = vcmp.gt.f32.partialorder %v4959, 0.0
      %vm4992 = vcmp.gt.f32.partialorder %v4960, 0.0
      %vm4993 = vcmp.gt.f32.partialorder %v4961, 0.0
      %vm4994 = vcmp.gt.f32.partialorder %v4962, 0.0
      %vm4995 = vcmp.gt.f32.partialorder %v4963, 0.0
      %vm4996 = vcmp.gt.f32.partialorder %v4964, 0.0
      %vm4997 = vcmp.gt.f32.partialorder %v4965, 0.0
      %vm4998 = vcmp.gt.f32.partialorder %v4966, 0.0
      %vm4999 = vcmp.gt.f32.partialorder %v4967, 0.0
      %vm5000 = vcmp.gt.f32.partialorder %v4968, 0.0
      %vm5001 = vcmp.gt.f32.partialorder %v4969, 0.0
      %vm5002 = vcmp.gt.f32.partialorder %v4970, 0.0
      %vm5003 = vcmp.gt.f32.partialorder %v4971, 0.0
      %vm5004 = vcmp.gt.f32.partialorder %v4972, 0.0
      %vm5005 = vcmp.gt.f32.partialorder %v4973, 0.0
      %vm5006 = vcmp.gt.f32.partialorder %v4974, 0.0
      %vm5007 = vcmp.gt.f32.partialorder %v4975, 0.0
      %vm5008 = vcmp.gt.f32.partialorder %v4976, 0.0
      %vm5009 = vcmp.gt.f32.partialorder %v4977, 0.0
      %vm5010 = vcmp.gt.f32.partialorder %v4978, 0.0
      %vm5011 = vcmp.gt.f32.partialorder %v4979, 0.0
      %vm5012 = vcmp.gt.f32.partialorder %v4980, 0.0
      %v5013 = vmin.f32 %v4949, 0.0
      %v5014 = vmin.f32 %v4950, 0.0
      %v5015 = vmin.f32 %v4951, 0.0
      %v5016 = vmin.f32 %v4952, 0.0
      %v5017 = vmin.f32 %v4953, 0.0
      %v5018 = vmin.f32 %v4954, 0.0
      %v5019 = vmin.f32 %v4955, 0.0
      %v5020 = vmin.f32 %v4956, 0.0
      %v5021 = vmin.f32 %v4957, 0.0
      %v5022 = vmin.f32 %v4958, 0.0
      %v5023 = vmin.f32 %v4959, 0.0
      %v5024 = vmin.f32 %v4960, 0.0
      %v5025 = vmin.f32 %v4961, 0.0
      %v5026 = vmin.f32 %v4962, 0.0
      %v5027 = vmin.f32 %v4963, 0.0
      %v5028 = vmin.f32 %v4964, 0.0
      %v5029 = vmin.f32 %v4965, 0.0
      %v5030 = vmin.f32 %v4966, 0.0
      %v5031 = vmin.f32 %v4967, 0.0
      %v5032 = vmin.f32 %v4968, 0.0
      %v5033 = vmin.f32 %v4969, 0.0
      %v5034 = vmin.f32 %v4970, 0.0
      %v5035 = vmin.f32 %v4971, 0.0
      %v5036 = vmin.f32 %v4972, 0.0
      %v5037 = vmin.f32 %v4973, 0.0
      %v5038 = vmin.f32 %v4974, 0.0
      %v5039 = vmin.f32 %v4975, 0.0
      %v5040 = vmin.f32 %v4976, 0.0
      %v5041 = vmin.f32 %v4977, 0.0
      %v5042 = vmin.f32 %v4978, 0.0
      %v5043 = vmin.f32 %v4979, 0.0
      %v5044 = vmin.f32 %v4980, 0.0
      %v5045 = vmul.f32 %v5013, 1.442695
      %v5046 = vpow.pop %v5045
      %v5047 = vmul.f32 %v5014, 1.442695
      %v5048 = vpow.pop %v5047
      %v5049 = vmul.f32 %v5015, 1.442695
      %v5050 = vpow.pop %v5049
      %v5051 = vmul.f32 %v5016, 1.442695
      %v5052 = vpow.pop %v5051
      %v5053 = vmul.f32 %v5017, 1.442695
      %v5054 = vpow.pop %v5053
      %v5055 = vmul.f32 %v5018, 1.442695
      %v5056 = vpow.pop %v5055
      %v5057 = vmul.f32 %v5019, 1.442695
      %v5058 = vpow.pop %v5057
      %v5059 = vmul.f32 %v5020, 1.442695
      %v5060 = vpow.pop %v5059
      %v5061 = vmul.f32 %v5021, 1.442695
      %v5062 = vpow.pop %v5061
      %v5063 = vmul.f32 %v5022, 1.442695
      %v5064 = vpow.pop %v5063
      %v5065 = vmul.f32 %v5023, 1.442695
      %v5066 = vpow.pop %v5065
      %v5067 = vmul.f32 %v5024, 1.442695
      %v5068 = vpow.pop %v5067
      %v5069 = vmul.f32 %v5025, 1.442695
      %v5070 = vpow.pop %v5069
      %v5071 = vmul.f32 %v5026, 1.442695
      %v5072 = vpow.pop %v5071
      %v5073 = vmul.f32 %v5027, 1.442695
      %v5074 = vpow.pop %v5073
      %v5075 = vmul.f32 %v5028, 1.442695
      %v5076 = vpow.pop %v5075
      %v5077 = vmul.f32 %v5029, 1.442695
      %v5078 = vpow.pop %v5077
      %v5079 = vmul.f32 %v5030, 1.442695
      %v5080 = vpow.pop %v5079
      %v5081 = vmul.f32 %v5031, 1.442695
      %v5082 = vpow.pop %v5081
      %v5083 = vmul.f32 %v5032, 1.442695
      %v5084 = vpow.pop %v5083
      %v5085 = vmul.f32 %v5033, 1.442695
      %v5086 = vpow.pop %v5085
      %v5087 = vmul.f32 %v5034, 1.442695
      %v5088 = vpow.pop %v5087
      %v5089 = vmul.f32 %v5035, 1.442695
      %v5090 = vpow.pop %v5089
      %v5091 = vmul.f32 %v5036, 1.442695
      %v5092 = vpow.pop %v5091
      %v5093 = vmul.f32 %v5037, 1.442695
      %v5094 = vpow.pop %v5093
      %v5095 = vmul.f32 %v5038, 1.442695
      %v5096 = vpow.pop %v5095
      %v5097 = vmul.f32 %v5039, 1.442695
      %v5098 = vpow.pop %v5097
      %v5099 = vmul.f32 %v5040, 1.442695
      %v5100 = vpow.pop %v5099
      %v5101 = vmul.f32 %v5041, 1.442695
      %v5102 = vpow.pop %v5101
      %v5103 = vmul.f32 %v5042, 1.442695
      %v5104 = vpow.pop %v5103
      %v5105 = vmul.f32 %v5043, 1.442695
      %v5106 = vpow.pop %v5105
      %v5107 = vmul.f32 %v5044, 1.442695
      %v5108 = vpow.pop %v5107
      %v5109 = vsub.f32 %v5046, 1.0
      %v5110 = vsub.f32 %v5048, 1.0
      %v5111 = vsub.f32 %v5050, 1.0
      %v5112 = vsub.f32 %v5052, 1.0
      %v5113 = vsub.f32 %v5054, 1.0
      %v5114 = vsub.f32 %v5056, 1.0
      %v5115 = vsub.f32 %v5058, 1.0
      %v5116 = vsub.f32 %v5060, 1.0
      %v5117 = vsub.f32 %v5062, 1.0
      %v5118 = vsub.f32 %v5064, 1.0
      %v5119 = vsub.f32 %v5066, 1.0
      %v5120 = vsub.f32 %v5068, 1.0
      %v5121 = vsub.f32 %v5070, 1.0
      %v5122 = vsub.f32 %v5072, 1.0
      %v5123 = vsub.f32 %v5074, 1.0
      %v5124 = vsub.f32 %v5076, 1.0
      %v5125 = vsub.f32 %v5078, 1.0
      %v5126 = vsub.f32 %v5080, 1.0
      %v5127 = vsub.f32 %v5082, 1.0
      %v5128 = vsub.f32 %v5084, 1.0
      %v5129 = vsub.f32 %v5086, 1.0
      %v5130 = vsub.f32 %v5088, 1.0
      %v5131 = vsub.f32 %v5090, 1.0
      %v5132 = vsub.f32 %v5092, 1.0
      %v5133 = vsub.f32 %v5094, 1.0
      %v5134 = vsub.f32 %v5096, 1.0
      %v5135 = vsub.f32 %v5098, 1.0
      %v5136 = vsub.f32 %v5100, 1.0
      %v5137 = vsub.f32 %v5102, 1.0
      %v5138 = vsub.f32 %v5104, 1.0
      %v5139 = vsub.f32 %v5106, 1.0
      %v5140 = vsub.f32 %v5108, 1.0
      %v5141 = vsel %vm4981, %v4949, %v5109
      %v5142 = vsel %vm4982, %v4950, %v5110
      %v5143 = vsel %vm4983, %v4951, %v5111
      %v5144 = vsel %vm4984, %v4952, %v5112
      %v5145 = vsel %vm4985, %v4953, %v5113
      %v5146 = vsel %vm4986, %v4954, %v5114
      %v5147 = vsel %vm4987, %v4955, %v5115
      %v5148 = vsel %vm4988, %v4956, %v5116
      %v5149 = vsel %vm4989, %v4957, %v5117
      %v5150 = vsel %vm4990, %v4958, %v5118
      %v5151 = vsel %vm4991, %v4959, %v5119
      %v5152 = vsel %vm4992, %v4960, %v5120
      %v5153 = vsel %vm4993, %v4961, %v5121
      %v5154 = vsel %vm4994, %v4962, %v5122
      %v5155 = vsel %vm4995, %v4963, %v5123
      %v5156 = vsel %vm4996, %v4964, %v5124
      %v5157 = vsel %vm4997, %v4965, %v5125
      %v5158 = vsel %vm4998, %v4966, %v5126
      %v5159 = vsel %vm4999, %v4967, %v5127
      %v5160 = vsel %vm5000, %v4968, %v5128
      %v5161 = vsel %vm5001, %v4969, %v5129
      %v5162 = vsel %vm5002, %v4970, %v5130
      %v5163 = vsel %vm5003, %v4971, %v5131
      %v5164 = vsel %vm5004, %v4972, %v5132
      %v5165 = vsel %vm5005, %v4973, %v5133
      %v5166 = vsel %vm5006, %v4974, %v5134
      %v5167 = vsel %vm5007, %v4975, %v5135
      %v5168 = vsel %vm5008, %v4976, %v5136
      %v5169 = vsel %vm5009, %v4977, %v5137
      %v5170 = vsel %vm5010, %v4978, %v5138
      %v5171 = vsel %vm5011, %v4979, %v5139
      %v5172 = vsel %vm5012, %v4980, %v5140
      %5173 = vxpose.xlu0.b32.start [1/16] %v5141, 128
      %5174 = vxpose.xlu0.b32.cont [2/16] %v5142, 128
      %5175 = vxpose.xlu0.b32.cont [3/16] %v5143, 128
      %5176 = vxpose.xlu0.b32.cont [4/16] %v5144, 128
      %5177 = vxpose.xlu0.b32.cont [5/16] %v5145, 128
      %5178 = vxpose.xlu0.b32.cont [6/16] %v5146, 128
      %5179 = vxpose.xlu0.b32.cont [7/16] %v5147, 128
      %5180 = vxpose.xlu0.b32.cont [8/16] %v5148, 128
      %5181 = vxpose.xlu0.b32.cont [9/16] %v5149, 128
      %5182 = vxpose.xlu0.b32.cont [10/16] %v5150, 128
      %5183 = vxpose.xlu0.b32.cont [11/16] %v5151, 128
      %5184 = vxpose.xlu0.b32.cont [12/16] %v5152, 128
      %5185 = vxpose.xlu0.b32.cont [13/16] %v5153, 128
      %5186 = vxpose.xlu0.b32.cont [14/16] %v5154, 128
      %5187 = vxpose.xlu0.b32.cont [15/16] %v5155, 128
      %5188 = vxpose.xlu0.b32.end [16/16] %v5156, 128
      %v5189 = vpop.trf.xlu0
      %v5190 = vpop.trf.xlu0
      %v5191 = vpop.trf.xlu0
      %v5192 = vpop.trf.xlu0
      %v5193 = vpop.trf.xlu0
      %v5194 = vpop.trf.xlu0
      %v5195 = vpop.trf.xlu0
      %v5196 = vpop.trf.xlu0
      %v5197 = vpop.trf.xlu0
      %v5198 = vpop.trf.xlu0
      %v5199 = vpop.trf.xlu0
      %v5200 = vpop.trf.xlu0
      %v5201 = vpop.trf.xlu0
      %v5202 = vpop.trf.xlu0
      %v5203 = vpop.trf.xlu0
      %v5204 = vpop.trf.xlu0
      %5205 = vxpose.xlu0.b32.start [1/16] %v5157, 128
      %5206 = vxpose.xlu0.b32.cont [2/16] %v5158, 128
      %5207 = vxpose.xlu0.b32.cont [3/16] %v5159, 128
      %5208 = vxpose.xlu0.b32.cont [4/16] %v5160, 128
      %5209 = vxpose.xlu0.b32.cont [5/16] %v5161, 128
      %5210 = vxpose.xlu0.b32.cont [6/16] %v5162, 128
      %5211 = vxpose.xlu0.b32.cont [7/16] %v5163, 128
      %5212 = vxpose.xlu0.b32.cont [8/16] %v5164, 128
      %5213 = vxpose.xlu0.b32.cont [9/16] %v5165, 128
      %5214 = vxpose.xlu0.b32.cont [10/16] %v5166, 128
      %5215 = vxpose.xlu0.b32.cont [11/16] %v5167, 128
      %5216 = vxpose.xlu0.b32.cont [12/16] %v5168, 128
      %5217 = vxpose.xlu0.b32.cont [13/16] %v5169, 128
      %5218 = vxpose.xlu0.b32.cont [14/16] %v5170, 128
      %5219 = vxpose.xlu0.b32.cont [15/16] %v5171, 128
      %5220 = vxpose.xlu0.b32.end [16/16] %v5172, 128
      %v5221 = vpop.trf.xlu0
      %v5222 = vpop.trf.xlu0
      %v5223 = vpop.trf.xlu0
      %v5224 = vpop.trf.xlu0
      %v5225 = vpop.trf.xlu0
      %v5226 = vpop.trf.xlu0
      %v5227 = vpop.trf.xlu0
      %v5228 = vpop.trf.xlu0
      %v5229 = vpop.trf.xlu0
      %v5230 = vpop.trf.xlu0
      %v5231 = vpop.trf.xlu0
      %v5232 = vpop.trf.xlu0
      %v5233 = vpop.trf.xlu0
      %v5234 = vpop.trf.xlu0
      %v5235 = vpop.trf.xlu0
      %v5236 = vpop.trf.xlu0
      %v5237 = vpack.c.bf16 %v5190, %v5189
      %v5238 = vpack.c.bf16 %v5222, %v5221
      %v5239 = vpack.c.bf16 %v5192, %v5191
      %v5240 = vpack.c.bf16 %v5224, %v5223
      %v5241 = vpack.c.bf16 %v5194, %v5193
      %v5242 = vpack.c.bf16 %v5226, %v5225
      %v5243 = vpack.c.bf16 %v5196, %v5195
      %v5244 = vpack.c.bf16 %v5228, %v5227
      %v5245 = vpack.c.bf16 %v5198, %v5197
      %v5246 = vpack.c.bf16 %v5230, %v5229
      %v5247 = vpack.c.bf16 %v5200, %v5199
      %v5248 = vpack.c.bf16 %v5232, %v5231
      %v5249 = vpack.c.bf16 %v5202, %v5201
      %v5250 = vpack.c.bf16 %v5234, %v5233
      %v5251 = vpack.c.bf16 %v5204, %v5203
      %v5252 = vpack.c.bf16 %v5236, %v5235
      %v5253 = vld [vmem:[%s7] sm:$0xf]
      %v5254 = vld [vmem:[%s7 + $0x4] sm:$0xf]
      %v5255 = vld [vmem:[%s7 + $0x8] sm:$0xf]
      %v5256 = vld [vmem:[%s7 + $0xc] sm:$0xf]
      %v5257 = vld [vmem:[%s8] sm:$0xff]
      %v5258 = vld [vmem:[%s8 + $0x8] sm:$0xff]
      %v5259 = vld [vmem:[%s8 + $0x10] sm:$0xff]
      %v5260 = vld [vmem:[%s8 + $0x18] sm:$0xff]
      %5262 = vset.pattern.permute.xlu0 0
      %5263 = vperm.xlu0 %5262, %v5257
      %v5264 = vpop.permute.xlu0 %5263
      %5267 = vset.pattern.permute.xlu0 0
      %5268 = vperm.xlu0 %5267, %v5258
      %v5269 = vpop.permute.xlu0 %5268
      %5272 = vset.pattern.permute.xlu0 0
      %5273 = vperm.xlu0 %5272, %v5259
      %v5274 = vpop.permute.xlu0 %5273
      %5277 = vset.pattern.permute.xlu0 0
      %5278 = vperm.xlu0 %5277, %v5260
      %v5279 = vpop.permute.xlu0 %5278
      %v5285 = vunpack.c.l.b16 %v5253
      %v5286 = vunpack.c.l.b16 %v5254
      %v5287 = vunpack.c.l.b16 %v5255
      %v5288 = vunpack.c.l.b16 %v5256
      %v5289 = vpack.c.b16 %v5286, %v5285
      %v5290 = vpack.c.b16 %v5288, %v5287
      %5293 = vmatpush.bf16.msra.mxu0 %v5251
      %5294 = vmatpush.bf16.msra.mxu0 %v5249
      %5295 = vmatpush.bf16.msra.mxu0 %v5247
      %5296 = vmatpush.bf16.msra.mxu0 %v5245
      %5297 = vmatpush.bf16.msra.mxu0 %v5243
      %5298 = vmatpush.bf16.msra.mxu0 %v5241
      %5299 = vmatpush.bf16.msra.mxu0 %v5239
      %5300 = vmatpush.bf16.msra.mxu0 %v5237
      %5301 = vmatmul.bf16.gmra.mxu0 %v5289
      %v5302 = vpop.f32.mrf.mxu0
      %v5303 = vadd.f32 %v5264, %v5302
      %v5304 = vpop.f32.mrf.mxu0
      %v5305 = vadd.f32 %v5269, %v5304
      %5306 = vmatmul.bf16.gmra.mxu0 %v5290
      %v5307 = vpop.f32.mrf.mxu0
      %v5308 = vadd.f32 %v5274, %v5307
      %v5309 = vpop.f32.mrf.mxu0
      %v5310 = vadd.f32 %v5279, %v5309
      %5311 = vdwg.mxu0
      %5312 = vmatpush.bf16.msra.mxu0 %v5252
      %5313 = vmatpush.bf16.msra.mxu0 %v5250
      %5314 = vmatpush.bf16.msra.mxu0 %v5248
      %5315 = vmatpush.bf16.msra.mxu0 %v5246
      %5316 = vmatpush.bf16.msra.mxu0 %v5244
      %5317 = vmatpush.bf16.msra.mxu0 %v5242
      %5318 = vmatpush.bf16.msra.mxu0 %v5240
      %5319 = vmatpush.bf16.msra.mxu0 %v5238
      %5320 = vmatmul.bf16.gmra.mxu0 %v5289
      %v5321 = vpop.f32.mrf.mxu0
      %v5322 = vadd.f32 %v5264, %v5321
      %v5323 = vpop.f32.mrf.mxu0
      %v5324 = vadd.f32 %v5269, %v5323
      %5325 = vmatmul.bf16.gmra.mxu0 %v5290
      %v5326 = vpop.f32.mrf.mxu0
      %v5327 = vadd.f32 %v5274, %v5326
      %v5328 = vpop.f32.mrf.mxu0
      %v5329 = vadd.f32 %v5279, %v5328
      %5330 = vdwg.mxu0
      %5331 = vst [vmem:[%s332] sm:$0xff] %v5303
      %5332 = vst [vmem:[%s332 + $0x8] sm:$0xff] %v5322
      %5333 = vst [vmem:[%s332 + $0x10] sm:$0xff] %v5305
      %5334 = vst [vmem:[%s332 + $0x18] sm:$0xff] %v5324
      %5335 = vst [vmem:[%s332 + $0x20] sm:$0xff] %v5308
      %5336 = vst [vmem:[%s332 + $0x28] sm:$0xff] %v5327
      %5337 = vst [vmem:[%s332 + $0x30] sm:$0xff] %v5310
      %5338 = vst [vmem:[%s332 + $0x38] sm:$0xff] %v5329
      %p5339 = scmp.lt.s32.totalorder %s20, 1
      %s5340 = scalar_select %p5339, %s20, 1
      %s5341 = smul.addr %s5340, 8
      %s5342 = smul.addr %s5341, 8
      %s5343 = scalar_lea.vmem %s9, %s5342
      // Predicated region
      $region57: #{random_input_head.1} parent=55 // pred_check
        %p5344 = pneg %p232
      $region58: #{random_input_head.1} parent=55 // pred_check_branch
        %5346 = sbr.rel (%p5344) target = $region60
      $region59: #{random_input_head.1} parent=55 // pred_region
        _
      $region60: #{random_input_head.1} parent=55 // pred_fallthru
        _
    $region56: #{random_input_head.1} parent=5 // pred_fallthru
      _
    %p5347 = scmp.le.s32.totalorder 2, %s15
    // Predicated region
    $region61: #{random_input_head.1} parent=5 // pred_check
      %p5348 = pneg %p5347
    $region62: #{random_input_head.1} parent=5 // pred_check_branch
      %5350 = sbr.rel (%p5348) target = $region64
    $region63: #{random_input_head.1} parent=5 // pred_region
      %s5351 = ssub.s32 %s15, 2
      // Predicated region
      $region65: #{random_input_head.1} parent=63 // pred_check
        %p5352 = pneg %p238
      $region66: #{random_input_head.1} parent=63 // pred_check_branch
        %5354 = sbr.rel (%p5352) target = $region68
      $region67: #{random_input_head.1} parent=63 // pred_region
        %p5355 = scmp.lt.s32.totalorder %s21, 1
        %s5356 = scalar_select %p5355, %s21, 1
        %s5357 = smul.addr %s5356, 8
        %s5358 = smul.addr %s5357, 8
        %s5359 = scalar_lea.vmem %s9, %s5358
      $region68: #{random_input_head.1} parent=63 // pred_fallthru
        _
    $region64: #{random_input_head.1} parent=5 // pred_fallthru
      _
  $region6: #{random_input_head.1} parent=0 // loop_footer
    %s19 = sadd.s32 1, %s15
  $region7: #{random_input_head.1} parent=0 // loop_footer_branch
    %14 = sbr.rel target = $region3
  $region8: #{random_input_head.1} parent=0 // loop_exit
    _

</llo_original>
